<compile_context>
chip_gen: v7x
topology: tpu7x:2x2x1
jax: 0.10.0
libtpu: 0.0.40
codegen_flags: <defaults>
</compile_context>

<pallas_src>
import math

import jax
import jax.numpy as jnp
from jax.experimental import pallas as pl
from jax.experimental.pallas import tpu as pltpu

N_CLASSES = 10
LAYER_SIZES = [784, 512, 256, 64, 16, N_CLASSES]
LANE = 128


def _round_up(v, m):
    return (v + m - 1) // m * m


# Lane-padded layer widths: 784 -> 512 -> 256 -> 128 -> 128 -> 128.
# The 784 input width is NOT padded (no wasted layer-1 FLOPs, no extra HBM
# pass); the small hidden dims (64, 16) and the class dim are zero-padded to
# lane width 128, which is numerically exact through Linear(+ReLU).
PADDED_SIZES = [LAYER_SIZES[0]] + [_round_up(s, LANE) for s in LAYER_SIZES[1:]]


def mlnn_kernel(x_ref,
                w1_ref, b1_ref,
                w2_ref, b2_ref,
                w3_ref, b3_ref,
                w4_ref, b4_ref,
                w5_ref, b5_ref,
                out_ref):
    """Fused forward: 4 x (Linear + ReLU) + Linear head.

    f32 input cast to bf16 in-kernel; MXU matmuls with f32 accumulation;
    bias add in f32; ReLU / inter-layer activations in bf16; bf16 lane-dense
    output writeback."""

    def hidden(h, w_ref, b_ref):
        a = jnp.dot(h, w_ref[...], preferred_element_type=jnp.float32)
        a = (a + b_ref[...]).astype(jnp.bfloat16)
        return jnp.maximum(a, 0)      # ReLU in bf16 (== relu-then-round)

    h = x_ref[...].astype(jnp.bfloat16)      # (bt, 784)
    h = hidden(h, w1_ref, b1_ref)            # (bt, 512)
    h = hidden(h, w2_ref, b2_ref)            # (bt, 256)
    h = hidden(h, w3_ref, b3_ref)            # (bt, 128)
    h = hidden(h, w4_ref, b4_ref)            # (bt, 128)
    out = jnp.dot(h, w5_ref[...], preferred_element_type=jnp.float32)
    out = out + b5_ref[...]                  # f32 (bt, 128)
    out_ref[...] = out.astype(out_ref.dtype)  # bf16 writeback


def _pad_params(params):
    """Weights -> bf16, zero-padded only where the layer width is padded;
    biases -> f32 (1, padded_out)."""
    flat = []
    for idx, (w, b) in enumerate(params):
        d_in, d_out = LAYER_SIZES[idx], LAYER_SIZES[idx + 1]
        p_in, p_out = PADDED_SIZES[idx], PADDED_SIZES[idx + 1]
        w_bf16 = w.astype(jnp.bfloat16)
        if (p_in, p_out) != (d_in, d_out):
            w_p = jnp.zeros((p_in, p_out), jnp.bfloat16)
            w_p = w_p.at[:d_in, :d_out].set(w_bf16)
        else:
            w_p = w_bf16
        b_p = jnp.zeros((1, p_out), jnp.float32)
        b_p = b_p.at[0, :d_out].set(b.astype(jnp.float32))
        flat.extend([w_p, b_p])
    return flat


def _choose_batch_tile(n):
    """Small N: one grid step of ~N rows. Larger N: >=2 grid steps (both v7x
    TensorCores busy) of up to 2048 rows (amortizes the ~0.35us/step pipeline
    overhead, stays inside v7x's 64 MiB VMEM)."""
    n16 = _round_up(max(n, 16), 16)
    if n16 <= 512:
        return n16
    n_steps = max(2, pl.cdiv(n16, 2048))
    return min(2048, _round_up(pl.cdiv(n16, n_steps), 16))


def mlnn_forward(x, params, *, batch_tile=None):
    """x: (..., 784) float32 (flattened like x.view(-1, 784)).
    params: list of (W (in,out) f32, b (out,) f32).
    Returns (N, n_classes) float32 logits."""
    x = x.reshape(-1, LAYER_SIZES[0])
    n, d_in = x.shape
    d_out_pad = PADDED_SIZES[-1]

    if batch_tile is None:
        batch_tile = _choose_batch_tile(n)
    batch_tile = max(16, _round_up(min(batch_tile, max(n, 16)), 16))
    n_pad = _round_up(n, batch_tile)
    grid = (n_pad // batch_tile,)

    # Only the batch dim ever needs padding; features stay at 784 and x stays
    # f32 (the bf16 cast happens inside the kernel -> no extra HBM pass).
    if n_pad != n:
        x = jnp.pad(x, ((0, n_pad - n), (0, 0)))

    flat_params = _pad_params(params)

    flops = 2 * n_pad * sum(PADDED_SIZES[i] * PADDED_SIZES[i + 1]
                            for i in range(len(PADDED_SIZES) - 1))
    bytes_accessed = (n_pad * d_in * 4
                      + sum(int(p.size) * p.dtype.itemsize for p in flat_params)
                      + n_pad * d_out_pad * 2)
    cost = pl.CostEstimate(flops=flops, transcendentals=0,
                           bytes_accessed=bytes_accessed)

    in_specs = [pl.BlockSpec((batch_tile, d_in), lambda i: (i, 0))]
    # Weights/biases: whole-array blocks with constant index_maps (resident
    # in VMEM across the batch grid).
    in_specs += [pl.BlockSpec(p.shape, lambda i: (0, 0)) for p in flat_params]
    out_spec = pl.BlockSpec((batch_tile, d_out_pad), lambda i: (i, 0))

    out_pad = pl.pallas_call(
        mlnn_kernel,
        out_shape=jax.ShapeDtypeStruct((n_pad, d_out_pad), jnp.bfloat16),
        grid_spec=pltpu.PrefetchScalarGridSpec(
            num_scalar_prefetch=0,
            grid=grid,
            in_specs=in_specs,
            out_specs=out_spec,
        ),
        compiler_params=pltpu.CompilerParams(
            dimension_semantics=("parallel",),
            vmem_limit_bytes=48 * 1024 * 1024,
        ),
        cost_estimate=cost,
    )(x, *flat_params)

    return out_pad[:n, :N_CLASSES].astype(jnp.float32)


def init_params(key):
    """PyTorch nn.Linear-style init. Weights stored as (in_features, out)."""
    params = []
    for idx in range(len(LAYER_SIZES) - 1):
        d_in, d_out = LAYER_SIZES[idx], LAYER_SIZES[idx + 1]
        key, kw, kb = jax.random.split(key, 3)
        bound = 1.0 / math.sqrt(d_in)
        w = jax.random.uniform(kw, (d_in, d_out), jnp.float32, -bound, bound)
        b = jax.random.uniform(kb, (d_out,), jnp.float32, -bound, bound)
        params.append((w, b))
    return params


def reference_forward(x, params):
    """Pure-JAX reference matching the kernel numerics: bf16 MXU operands,
    f32 accumulation + bias, bf16 activations, bf16 logit writeback."""
    x = x.reshape(-1, LAYER_SIZES[0])
    h = x.astype(jnp.bfloat16)
    for w, b in params[:-1]:
        a = jnp.dot(h, w.astype(jnp.bfloat16),
                    preferred_element_type=jnp.float32) + b
        h = jnp.maximum(a.astype(jnp.bfloat16), 0)
    w, b = params[-1]
    out = jnp.dot(h, w.astype(jnp.bfloat16),
                  preferred_element_type=jnp.float32) + b
    return out.astype(jnp.bfloat16).astype(jnp.float32)


# TODO(synk): optimizer construction (RMSProp / SGD variants) is training
# state, not part of the forward pass, so it is not translated to Pallas.

if __name__ == "__main__":
    key = jax.random.PRNGKey(0)
    kx, kp = jax.random.split(key)

    # Small MNIST-like batch: (N, 1, 28, 28) NCHW, flattened to (N, 784).
    batch = 128
    x_nchw = jax.random.normal(kx, (batch, 1, 28, 28), jnp.float32)
    x = x_nchw.reshape(-1, 784)

    params = init_params(kp)

    # Auto tile policy -> single 128-row grid step for this small batch.
    out = mlnn_forward(x, params)
    out = jax.block_until_ready(out)

    ref = reference_forward(x, params)
    assert out.shape == (batch, N_CLASSES)
    max_err = float(jnp.max(jnp.abs(out - ref)))
    assert jnp.allclose(out, ref, atol=1e-2, rtol=1e-2), max_err

    print("KERNEL_OK")
</pallas_src>

<mosaic_0001>
module attributes {stable_mosaic.version = 11 : i64} {
  func.func @mlnn_kernel(%arg0: i32, %arg1: memref<128x784xf32, #tpu.memory_space<vmem>>, %arg2: memref<784x512xbf16, #tpu.memory_space<vmem>>, %arg3: memref<1x512xf32, #tpu.memory_space<vmem>>, %arg4: memref<512x256xbf16, #tpu.memory_space<vmem>>, %arg5: memref<1x256xf32, #tpu.memory_space<vmem>>, %arg6: memref<256x128xbf16, #tpu.memory_space<vmem>>, %arg7: memref<1x128xf32, #tpu.memory_space<vmem>>, %arg8: memref<128x128xbf16, #tpu.memory_space<vmem>>, %arg9: memref<1x128xf32, #tpu.memory_space<vmem>>, %arg10: memref<128x128xbf16, #tpu.memory_space<vmem>>, %arg11: memref<1x128xf32, #tpu.memory_space<vmem>>, %arg12: memref<128x128xbf16, #tpu.memory_space<vmem>>) attributes {dimension_semantics = [#tpu.dimension_semantics<parallel>], iteration_bounds = array<i64: 1>, scalar_prefetch = 0 : i64, scratch_operands = 0 : i64, tpu.core_type = #tpu.core_type<tc>, window_params = [{transform_indices = @transform_0, window_bounds = array<i64: 128, 784>}, {pipeline_mode = #tpu.pipeline_mode<synchronous>, transform_indices = @transform_1, window_bounds = array<i64: 784, 512>}, {pipeline_mode = #tpu.pipeline_mode<synchronous>, transform_indices = @transform_2, window_bounds = array<i64: 1, 512>}, {pipeline_mode = #tpu.pipeline_mode<synchronous>, transform_indices = @transform_3, window_bounds = array<i64: 512, 256>}, {pipeline_mode = #tpu.pipeline_mode<synchronous>, transform_indices = @transform_4, window_bounds = array<i64: 1, 256>}, {pipeline_mode = #tpu.pipeline_mode<synchronous>, transform_indices = @transform_5, window_bounds = array<i64: 256, 128>}, {pipeline_mode = #tpu.pipeline_mode<synchronous>, transform_indices = @transform_6, window_bounds = array<i64: 1, 128>}, {pipeline_mode = #tpu.pipeline_mode<synchronous>, transform_indices = @transform_7, window_bounds = array<i64: 128, 128>}, {pipeline_mode = #tpu.pipeline_mode<synchronous>, transform_indices = @transform_8, window_bounds = array<i64: 1, 128>}, {pipeline_mode = #tpu.pipeline_mode<synchronous>, transform_indices = @transform_9, window_bounds = array<i64: 128, 128>}, {pipeline_mode = #tpu.pipeline_mode<synchronous>, transform_indices = @transform_10, window_bounds = array<i64: 1, 128>}, {transform_indices = @transform_11, window_bounds = array<i64: 128, 128>}]} {
    %c0 = arith.constant 0 : index
    %c0_0 = arith.constant 0 : index
    %0 = vector.load %arg1[%c0, %c0_0] : memref<128x784xf32, #tpu.memory_space<vmem>>, vector<128x784xf32>
    %1 = arith.truncf %0 : vector<128x784xf32> to vector<128x784xbf16>
    %c0_1 = arith.constant 0 : index
    %c0_2 = arith.constant 0 : index
    %2 = vector.load %arg2[%c0_1, %c0_2] : memref<784x512xbf16, #tpu.memory_space<vmem>>, vector<784x512xbf16>
    %cst = arith.constant dense<0.000000e+00> : vector<128x512xf32>
    %3 = tpu.matmul %1, %2, %cst {dimension_numbers = #tpu.dot_dimension_numbers<[1], [0], [0], [1], [0, 0, 1, 1], [], []>} : vector<128x784xbf16>, vector<784x512xbf16>, vector<128x512xf32> -> vector<128x512xf32>
    %c0_3 = arith.constant 0 : index
    %c0_4 = arith.constant 0 : index
    %4 = vector.load %arg3[%c0_3, %c0_4] : memref<1x512xf32, #tpu.memory_space<vmem>>, vector<1x512xf32>
    %5 = vector.broadcast %4 : vector<1x512xf32> to vector<128x512xf32>
    %6 = arith.addf %3, %5 : vector<128x512xf32>
    %7 = arith.truncf %6 : vector<128x512xf32> to vector<128x512xbf16>
    %cst_5 = arith.constant 0.000000e+00 : bf16
    %8 = vector.broadcast %cst_5 : bf16 to vector<128x512xbf16>
    %9 = arith.maximumf %7, %8 : vector<128x512xbf16>
    %c0_6 = arith.constant 0 : index
    %c0_7 = arith.constant 0 : index
    %10 = vector.load %arg4[%c0_6, %c0_7] : memref<512x256xbf16, #tpu.memory_space<vmem>>, vector<512x256xbf16>
    %cst_8 = arith.constant dense<0.000000e+00> : vector<128x256xf32>
    %11 = tpu.matmul %9, %10, %cst_8 {dimension_numbers = #tpu.dot_dimension_numbers<[1], [0], [0], [1], [0, 0, 1, 1], [], []>} : vector<128x512xbf16>, vector<512x256xbf16>, vector<128x256xf32> -> vector<128x256xf32>
    %c0_9 = arith.constant 0 : index
    %c0_10 = arith.constant 0 : index
    %12 = vector.load %arg5[%c0_9, %c0_10] : memref<1x256xf32, #tpu.memory_space<vmem>>, vector<1x256xf32>
    %13 = vector.broadcast %12 : vector<1x256xf32> to vector<128x256xf32>
    %14 = arith.addf %11, %13 : vector<128x256xf32>
    %15 = arith.truncf %14 : vector<128x256xf32> to vector<128x256xbf16>
    %cst_11 = arith.constant 0.000000e+00 : bf16
    %16 = vector.broadcast %cst_11 : bf16 to vector<128x256xbf16>
    %17 = arith.maximumf %15, %16 : vector<128x256xbf16>
    %c0_12 = arith.constant 0 : index
    %c0_13 = arith.constant 0 : index
    %18 = vector.load %arg6[%c0_12, %c0_13] : memref<256x128xbf16, #tpu.memory_space<vmem>>, vector<256x128xbf16>
    %cst_14 = arith.constant dense<0.000000e+00> : vector<128x128xf32>
    %19 = tpu.matmul %17, %18, %cst_14 {dimension_numbers = #tpu.dot_dimension_numbers<[1], [0], [0], [1], [0, 0, 1, 1], [], []>} : vector<128x256xbf16>, vector<256x128xbf16>, vector<128x128xf32> -> vector<128x128xf32>
    %c0_15 = arith.constant 0 : index
    %c0_16 = arith.constant 0 : index
    %20 = vector.load %arg7[%c0_15, %c0_16] : memref<1x128xf32, #tpu.memory_space<vmem>>, vector<1x128xf32>
    %21 = vector.broadcast %20 : vector<1x128xf32> to vector<128x128xf32>
    %22 = arith.addf %19, %21 : vector<128x128xf32>
    %23 = arith.truncf %22 : vector<128x128xf32> to vector<128x128xbf16>
    %cst_17 = arith.constant 0.000000e+00 : bf16
    %24 = vector.broadcast %cst_17 : bf16 to vector<128x128xbf16>
    %25 = arith.maximumf %23, %24 : vector<128x128xbf16>
    %c0_18 = arith.constant 0 : index
    %c0_19 = arith.constant 0 : index
    %26 = vector.load %arg8[%c0_18, %c0_19] : memref<128x128xbf16, #tpu.memory_space<vmem>>, vector<128x128xbf16>
    %cst_20 = arith.constant dense<0.000000e+00> : vector<128x128xf32>
    %27 = tpu.matmul %25, %26, %cst_20 {dimension_numbers = #tpu.dot_dimension_numbers<[1], [0], [0], [1], [0, 0, 1, 1], [], []>} : vector<128x128xbf16>, vector<128x128xbf16>, vector<128x128xf32> -> vector<128x128xf32>
    %c0_21 = arith.constant 0 : index
    %c0_22 = arith.constant 0 : index
    %28 = vector.load %arg9[%c0_21, %c0_22] : memref<1x128xf32, #tpu.memory_space<vmem>>, vector<1x128xf32>
    %29 = vector.broadcast %28 : vector<1x128xf32> to vector<128x128xf32>
    %30 = arith.addf %27, %29 : vector<128x128xf32>
    %31 = arith.truncf %30 : vector<128x128xf32> to vector<128x128xbf16>
    %cst_23 = arith.constant 0.000000e+00 : bf16
    %32 = vector.broadcast %cst_23 : bf16 to vector<128x128xbf16>
    %33 = arith.maximumf %31, %32 : vector<128x128xbf16>
    %c0_24 = arith.constant 0 : index
    %c0_25 = arith.constant 0 : index
    %34 = vector.load %arg10[%c0_24, %c0_25] : memref<128x128xbf16, #tpu.memory_space<vmem>>, vector<128x128xbf16>
    %cst_26 = arith.constant dense<0.000000e+00> : vector<128x128xf32>
    %35 = tpu.matmul %33, %34, %cst_26 {dimension_numbers = #tpu.dot_dimension_numbers<[1], [0], [0], [1], [0, 0, 1, 1], [], []>} : vector<128x128xbf16>, vector<128x128xbf16>, vector<128x128xf32> -> vector<128x128xf32>
    %c0_27 = arith.constant 0 : index
    %c0_28 = arith.constant 0 : index
    %36 = vector.load %arg11[%c0_27, %c0_28] : memref<1x128xf32, #tpu.memory_space<vmem>>, vector<1x128xf32>
    %37 = vector.broadcast %36 : vector<1x128xf32> to vector<128x128xf32>
    %38 = arith.addf %35, %37 : vector<128x128xf32>
    %39 = arith.truncf %38 : vector<128x128xf32> to vector<128x128xbf16>
    %c0_29 = arith.constant 0 : index
    %c0_30 = arith.constant 0 : index
    %40 = vector.load %arg12[%c0_29, %c0_30] : memref<128x128xbf16, #tpu.memory_space<vmem>>, vector<128x128xbf16>
    tpu.vector_store %arg12[%c0_29, %c0_30], %39 {strides = array<i32>} : memref<128x128xbf16, #tpu.memory_space<vmem>>, vector<128x128xbf16>,
    return
  }
  func.func @transform_0(%arg0: i32) -> (i32, i32) {
    %c0_i32 = arith.constant 0 : i32
    %c0_i32_0 = arith.constant 0 : i32
    return %arg0, %c0_i32 : i32, i32
  }
  func.func @transform_1(%arg0: i32) -> (i32, i32) {
    %c0_i32 = arith.constant 0 : i32
    %c0_i32_0 = arith.constant 0 : i32
    %c0_i32_1 = arith.constant 0 : i32
    return %c0_i32, %c0_i32_0 : i32, i32
  }
  func.func @transform_2(%arg0: i32) -> (i32, i32) {
    %c0_i32 = arith.constant 0 : i32
    %c0_i32_0 = arith.constant 0 : i32
    %c0_i32_1 = arith.constant 0 : i32
    return %c0_i32, %c0_i32_0 : i32, i32
  }
  func.func @transform_3(%arg0: i32) -> (i32, i32) {
    %c0_i32 = arith.constant 0 : i32
    %c0_i32_0 = arith.constant 0 : i32
    %c0_i32_1 = arith.constant 0 : i32
    return %c0_i32, %c0_i32_0 : i32, i32
  }
  func.func @transform_4(%arg0: i32) -> (i32, i32) {
    %c0_i32 = arith.constant 0 : i32
    %c0_i32_0 = arith.constant 0 : i32
    %c0_i32_1 = arith.constant 0 : i32
    return %c0_i32, %c0_i32_0 : i32, i32
  }
  func.func @transform_5(%arg0: i32) -> (i32, i32) {
    %c0_i32 = arith.constant 0 : i32
    %c0_i32_0 = arith.constant 0 : i32
    %c0_i32_1 = arith.constant 0 : i32
    return %c0_i32, %c0_i32_0 : i32, i32
  }
  func.func @transform_6(%arg0: i32) -> (i32, i32) {
    %c0_i32 = arith.constant 0 : i32
    %c0_i32_0 = arith.constant 0 : i32
    %c0_i32_1 = arith.constant 0 : i32
    return %c0_i32, %c0_i32_0 : i32, i32
  }
  func.func @transform_7(%arg0: i32) -> (i32, i32) {
    %c0_i32 = arith.constant 0 : i32
    %c0_i32_0 = arith.constant 0 : i32
    %c0_i32_1 = arith.constant 0 : i32
    return %c0_i32, %c0_i32_0 : i32, i32
  }
  func.func @transform_8(%arg0: i32) -> (i32, i32) {
    %c0_i32 = arith.constant 0 : i32
    %c0_i32_0 = arith.constant 0 : i32
    %c0_i32_1 = arith.constant 0 : i32
    return %c0_i32, %c0_i32_0 : i32, i32
  }
  func.func @transform_9(%arg0: i32) -> (i32, i32) {
    %c0_i32 = arith.constant 0 : i32
    %c0_i32_0 = arith.constant 0 : i32
    %c0_i32_1 = arith.constant 0 : i32
    return %c0_i32, %c0_i32_0 : i32, i32
  }
  func.func @transform_10(%arg0: i32) -> (i32, i32) {
    %c0_i32 = arith.constant 0 : i32
    %c0_i32_0 = arith.constant 0 : i32
    %c0_i32_1 = arith.constant 0 : i32
    return %c0_i32, %c0_i32_0 : i32, i32
  }
  func.func @transform_11(%arg0: i32) -> (i32, i32) {
    %c0_i32 = arith.constant 0 : i32
    %c0_i32_0 = arith.constant 0 : i32
    return %arg0, %c0_i32 : i32, i32
  }
}

</mosaic_0001>

<llo_original>
// kernel: tpu_custom_call.1
$region0: #{tpu_custom_call.1}
  #allocation0 [shape = 'u32[]', space=smem, size = 0x4, offset = 0x4, fixed_abs, tag = 'smem constant byte address 0x4 - core index']
  #allocation1 [shape = 'u32[144,128]{1,0:T(1,128)}', space=vmem, size = 0x12000, scoped, tag = 'internal scratch']
  %s0 = inlined_call_operand.vmem [shape: f32[128,784], index: 0, kind: input, shape index: {}]
  %s1 = inlined_call_operand.vmem [shape: bf16[784,512], index: 1, kind: input, shape index: {}]
  %s2 = inlined_call_operand.hbm [shape: f32[1,512], index: 2, kind: input, shape index: {}]
  %s3 = inlined_call_operand.hbm [shape: bf16[512,256], index: 3, kind: input, shape index: {}]
  %s4 = inlined_call_operand.vmem [shape: f32[1,256], index: 4, kind: input, shape index: {}]
  %s5 = inlined_call_operand.vmem [shape: bf16[256,128], index: 5, kind: input, shape index: {}]
  %s6 = inlined_call_operand.hbm [shape: f32[1,128], index: 6, kind: input, shape index: {}]
  %s7 = inlined_call_operand.hbm [shape: bf16[128,128], index: 7, kind: input, shape index: {}]
  %s8 = inlined_call_operand.hbm [shape: f32[1,128], index: 8, kind: input, shape index: {}]
  %s9 = inlined_call_operand.hbm [shape: bf16[128,128], index: 9, kind: input, shape index: {}]
  %s10 = inlined_call_operand.vmem [shape: f32[1,128], index: 10, kind: input, shape index: {}]
  %s11 = inlined_call_operand.hbm [shape: bf16[128,128], index: 11, kind: output, shape index: {}]
  %s12 = sld [smem:[#allocation0]]
  $region78: #{tpu_custom_call.1} parent=0
    _
  %s14 = ssub.s32 1, %s12
  %s15 = scalar_select 0, %s14, %s12
  $region1: #{tpu_custom_call.1} parent=0
    #allocation2 [shape = 'u8[2048]{0}', space=vmem, size = 0x800, scoped, tag = 'input window, operand 2, single buffered']
    #allocation3 [shape = 's32[1]{0}', space=sflag, size = 0x4, scoped, tag = 'scoped memory for tpu_custom_call.1']
    #allocation4 [shape = 's32[1]{0}', space=sflag, size = 0x4, scoped, tag = 'scoped memory for tpu_custom_call.1']
    #allocation5 [shape = 'u8[262144]{0}', space=vmem, size = 0x40000, scoped, tag = 'input window, operand 3, single buffered']
    #allocation6 [shape = 's32[1]{0}', space=sflag, size = 0x4, scoped, tag = 'scoped memory for tpu_custom_call.1']
    #allocation7 [shape = 'u8[512]{0}', space=vmem, size = 0x400, scoped, tag = 'input window, operand 6, single buffered']
    #allocation8 [shape = 'u8[32768]{0}', space=vmem, size = 0x8000, scoped, tag = 'input window, operand 7, single buffered']
    #allocation9 [shape = 's32[1]{0}', space=sflag, size = 0x4, scoped, tag = 'scoped memory for tpu_custom_call.1']
    #allocation10 [shape = 'u8[512]{0}', space=vmem, size = 0x400, scoped, tag = 'input window, operand 8, single buffered']
    #allocation11 [shape = 'u8[32768]{0}', space=vmem, size = 0x8000, scoped, tag = 'input window, operand 9, single buffered']
    #allocation12 [shape = 's32[1]{0}', space=sflag, size = 0x4, scoped, tag = 'scoped memory for tpu_custom_call.1']
    #allocation13 [shape = 'u8[32768]{0}', space=vmem, size = 0x8000, scoped, tag = 'output window, operand 0, single buffered']
    %16 = vsyncpa [#allocation3], 0
    %17 = vsyncpa [#allocation6], 0
    %18 = vsyncpa [#allocation9], 0
    %19 = vsyncpa [#allocation12], 0
    %20 = vsyncpa [#allocation4], 0
    // Predicated region
    $region2: #{tpu_custom_call.1} parent=1 // pred_check
      _
    $region3: #{tpu_custom_call.1} parent=1 // pred_check_branch
      %22 = sbr.rel (0) target = $region5
    $region4: #{tpu_custom_call.1} parent=1 // pred_region
      _
    $region5: #{tpu_custom_call.1} parent=1 // pred_fallthru
      _
    // Predicated region
    $region6: #{tpu_custom_call.1} parent=1 // pred_check
      _
    $region7: #{tpu_custom_call.1} parent=1 // pred_check_branch
      %24 = sbr.rel (0) target = $region9
    $region8: #{tpu_custom_call.1} parent=1 // pred_region
      _
    $region9: #{tpu_custom_call.1} parent=1 // pred_fallthru
      _
    // Predicated region
    $region10: #{tpu_custom_call.1} parent=1 // pred_check
      _
    $region11: #{tpu_custom_call.1} parent=1 // pred_check_branch
      %26 = sbr.rel (0) target = $region13
    $region12: #{tpu_custom_call.1} parent=1 // pred_region
      %s28 = ssub.s32 64, 64
      %29 = vsyncadd [#allocation3], %s28
      %s31 = sshll.u32 [#allocation2], 4
      %s32 = int_to_ptr.vmem [resolvable:$true] %s31
      %34 = dma.hbm_to_vmem [thread:$0]  %s2, 64, %s32, [#allocation3]
    $region13: #{tpu_custom_call.1} parent=1 // pred_fallthru
      _
    // Predicated region
    $region14: #{tpu_custom_call.1} parent=1 // pred_check
      _
    $region15: #{tpu_custom_call.1} parent=1 // pred_check_branch
      %36 = sbr.rel (0) target = $region17
    $region16: #{tpu_custom_call.1} parent=1 // pred_region
      %s38 = ssub.s32 8192, 8192
      %39 = vsyncadd [#allocation6], %s38
      %s40 = sshll.u32 [#allocation5], 4
      %s41 = int_to_ptr.vmem [resolvable:$true] %s40
      %46 = dma.hbm_to_vmem [thread:$0]  %s3, 8192, %s41, [#allocation6], 128, 128, 8
    $region17: #{tpu_custom_call.1} parent=1 // pred_fallthru
      _
    // Predicated region
    $region18: #{tpu_custom_call.1} parent=1 // pred_check
      _
    $region19: #{tpu_custom_call.1} parent=1 // pred_check_branch
      %48 = sbr.rel (0) target = $region21
    $region20: #{tpu_custom_call.1} parent=1 // pred_region
      _
    $region21: #{tpu_custom_call.1} parent=1 // pred_fallthru
      _
    // Predicated region
    $region22: #{tpu_custom_call.1} parent=1 // pred_check
      _
    $region23: #{tpu_custom_call.1} parent=1 // pred_check_branch
      %50 = sbr.rel (0) target = $region25
    $region24: #{tpu_custom_call.1} parent=1 // pred_region
      _
    $region25: #{tpu_custom_call.1} parent=1 // pred_fallthru
      _
    // Predicated region
    $region26: #{tpu_custom_call.1} parent=1 // pred_check
      _
    $region27: #{tpu_custom_call.1} parent=1 // pred_check_branch
      %52 = sbr.rel (0) target = $region29
    $region28: #{tpu_custom_call.1} parent=1 // pred_region
      %s54 = ssub.s32 16, 16
      %55 = vsyncadd [#allocation6], %s54
      %s57 = sshll.u32 [#allocation7], 4
      %s58 = int_to_ptr.vmem [resolvable:$true] %s57
      %60 = dma.hbm_to_vmem [thread:$0]  %s6, 16, %s58, [#allocation6]
    $region29: #{tpu_custom_call.1} parent=1 // pred_fallthru
      _
    // Predicated region
    $region30: #{tpu_custom_call.1} parent=1 // pred_check
      _
    $region31: #{tpu_custom_call.1} parent=1 // pred_check_branch
      %62 = sbr.rel (0) target = $region33
    $region32: #{tpu_custom_call.1} parent=1 // pred_region
      %s64 = ssub.s32 1024, 1024
      %65 = vsyncadd [#allocation9], %s64
      %s66 = sshll.u32 [#allocation8], 4
      %s67 = int_to_ptr.vmem [resolvable:$true] %s66
      %72 = dma.hbm_to_vmem [thread:$0]  %s7, 1024, %s67, [#allocation9], 64, 64, 4
    $region33: #{tpu_custom_call.1} parent=1 // pred_fallthru
      _
    // Predicated region
    $region34: #{tpu_custom_call.1} parent=1 // pred_check
      _
    $region35: #{tpu_custom_call.1} parent=1 // pred_check_branch
      %74 = sbr.rel (0) target = $region37
    $region36: #{tpu_custom_call.1} parent=1 // pred_region
      %s76 = ssub.s32 16, 16
      %77 = vsyncadd [#allocation9], %s76
      %s79 = sshll.u32 [#allocation10], 4
      %s80 = int_to_ptr.vmem [resolvable:$true] %s79
      %82 = dma.hbm_to_vmem [thread:$0]  %s8, 16, %s80, [#allocation9]
    $region37: #{tpu_custom_call.1} parent=1 // pred_fallthru
      _
    // Predicated region
    $region38: #{tpu_custom_call.1} parent=1 // pred_check
      _
    $region39: #{tpu_custom_call.1} parent=1 // pred_check_branch
      %84 = sbr.rel (0) target = $region41
    $region40: #{tpu_custom_call.1} parent=1 // pred_region
      %s86 = ssub.s32 1024, 1024
      %87 = vsyncadd [#allocation12], %s86
      %s88 = sshll.u32 [#allocation11], 4
      %s89 = int_to_ptr.vmem [resolvable:$true] %s88
      %94 = dma.hbm_to_vmem [thread:$0]  %s9, 1024, %s89, [#allocation12], 64, 64, 4
    $region41: #{tpu_custom_call.1} parent=1 // pred_fallthru
      _
    // Predicated region
    $region42: #{tpu_custom_call.1} parent=1 // pred_check
      _
    $region43: #{tpu_custom_call.1} parent=1 // pred_check_branch
      %96 = sbr.rel (0) target = $region45
    $region44: #{tpu_custom_call.1} parent=1 // pred_region
      _
    $region45: #{tpu_custom_call.1} parent=1 // pred_fallthru
      _
    // Predicated region
    $region46: #{tpu_custom_call.1} parent=1 // pred_check
      _
    $region47: #{tpu_custom_call.1} parent=1 // pred_check_branch
      %98 = sbr.rel (0) target = $region49
    $region48: #{tpu_custom_call.1} parent=1 // pred_region
      %99 = dma.done [#allocation3], 64
    $region49: #{tpu_custom_call.1} parent=1 // pred_fallthru
      _
    // Predicated region
    $region50: #{tpu_custom_call.1} parent=1 // pred_check
      _
    $region51: #{tpu_custom_call.1} parent=1 // pred_check_branch
      %101 = sbr.rel (0) target = $region53
    $region52: #{tpu_custom_call.1} parent=1 // pred_region
      %102 = dma.done [#allocation6], 8192
    $region53: #{tpu_custom_call.1} parent=1 // pred_fallthru
      _
    // Predicated region
    $region54: #{tpu_custom_call.1} parent=1 // pred_check
      _
    $region55: #{tpu_custom_call.1} parent=1 // pred_check_branch
      %104 = sbr.rel (0) target = $region57
    $region56: #{tpu_custom_call.1} parent=1 // pred_region
      %105 = dma.done [#allocation6], 16
    $region57: #{tpu_custom_call.1} parent=1 // pred_fallthru
      _
    // Predicated region
    $region58: #{tpu_custom_call.1} parent=1 // pred_check
      _
    $region59: #{tpu_custom_call.1} parent=1 // pred_check_branch
      %107 = sbr.rel (0) target = $region61
    $region60: #{tpu_custom_call.1} parent=1 // pred_region
      %108 = dma.done [#allocation9], 1024
    $region61: #{tpu_custom_call.1} parent=1 // pred_fallthru
      _
    // Predicated region
    $region62: #{tpu_custom_call.1} parent=1 // pred_check
      _
    $region63: #{tpu_custom_call.1} parent=1 // pred_check_branch
      %110 = sbr.rel (0) target = $region65
    $region64: #{tpu_custom_call.1} parent=1 // pred_region
      %111 = dma.done [#allocation9], 16
    $region65: #{tpu_custom_call.1} parent=1 // pred_fallthru
      _
    // Predicated region
    $region66: #{tpu_custom_call.1} parent=1 // pred_check
      _
    $region67: #{tpu_custom_call.1} parent=1 // pred_check_branch
      %113 = sbr.rel (0) target = $region69
    $region68: #{tpu_custom_call.1} parent=1 // pred_region
      %114 = dma.done [#allocation12], 1024
    $region69: #{tpu_custom_call.1} parent=1 // pred_fallthru
      _
    %v116 = vld [vmem:[%s0] sm:$0xff]
    %v117 = vld [vmem:[%s0 + $0x8] sm:$0xff]
    %v118 = vld [vmem:[%s0 + $0x10] sm:$0xff]
    %v119 = vld [vmem:[%s0 + $0x18] sm:$0xff]
    %v120 = vld [vmem:[%s0 + $0x20] sm:$0xff]
    %v121 = vld [vmem:[%s0 + $0x28] sm:$0xff]
    %v122 = vld [vmem:[%s0 + $0x30] sm:$0xff]
    %v123 = vld [vmem:[%s0 + $0x38] sm:$0xff]
    %v124 = vld [vmem:[%s0 + $0x40] sm:$0xff]
    %v125 = vld [vmem:[%s0 + $0x48] sm:$0xff]
    %v126 = vld [vmem:[%s0 + $0x50] sm:$0xff]
    %v127 = vld [vmem:[%s0 + $0x58] sm:$0xff]
    %v128 = vld [vmem:[%s0 + $0x60] sm:$0xff]
    %v129 = vld [vmem:[%s0 + $0x68] sm:$0xff]
    %v130 = vld [vmem:[%s0 + $0x70] sm:$0xff]
    %v131 = vld [vmem:[%s0 + $0x78] sm:$0xff]
    %v132 = vld [vmem:[%s0 + $0x80] sm:$0xff]
    %v133 = vld [vmem:[%s0 + $0x88] sm:$0xff]
    %v134 = vld [vmem:[%s0 + $0x90] sm:$0xff]
    %v135 = vld [vmem:[%s0 + $0x98] sm:$0xff]
    %v136 = vld [vmem:[%s0 + $0xa0] sm:$0xff]
    %v137 = vld [vmem:[%s0 + $0xa8] sm:$0xff]
    %v138 = vld [vmem:[%s0 + $0xb0] sm:$0xff]
    %v139 = vld [vmem:[%s0 + $0xb8] sm:$0xff]
    %v140 = vld [vmem:[%s0 + $0xc0] sm:$0xff]
    %v141 = vld [vmem:[%s0 + $0xc8] sm:$0xff]
    %v142 = vld [vmem:[%s0 + $0xd0] sm:$0xff]
    %v143 = vld [vmem:[%s0 + $0xd8] sm:$0xff]
    %v144 = vld [vmem:[%s0 + $0xe0] sm:$0xff]
    %v145 = vld [vmem:[%s0 + $0xe8] sm:$0xff]
    %v146 = vld [vmem:[%s0 + $0xf0] sm:$0xff]
    %v147 = vld [vmem:[%s0 + $0xf8] sm:$0xff]
    %v148 = vld [vmem:[%s0 + $0x100] sm:$0xff]
    %v149 = vld [vmem:[%s0 + $0x108] sm:$0xff]
    %v150 = vld [vmem:[%s0 + $0x110] sm:$0xff]
    %v151 = vld [vmem:[%s0 + $0x118] sm:$0xff]
    %v152 = vld [vmem:[%s0 + $0x120] sm:$0xff]
    %v153 = vld [vmem:[%s0 + $0x128] sm:$0xff]
    %v154 = vld [vmem:[%s0 + $0x130] sm:$0xff]
    %v155 = vld [vmem:[%s0 + $0x138] sm:$0xff]
    %v156 = vld [vmem:[%s0 + $0x140] sm:$0xff]
    %v157 = vld [vmem:[%s0 + $0x148] sm:$0xff]
    %v158 = vld [vmem:[%s0 + $0x150] sm:$0xff]
    %v159 = vld [vmem:[%s0 + $0x158] sm:$0xff]
    %v160 = vld [vmem:[%s0 + $0x160] sm:$0xff]
    %v161 = vld [vmem:[%s0 + $0x168] sm:$0xff]
    %v162 = vld [vmem:[%s0 + $0x170] sm:$0xff]
    %v163 = vld [vmem:[%s0 + $0x178] sm:$0xff]
    %v164 = vld [vmem:[%s0 + $0x180] sm:$0xff]
    %v165 = vld [vmem:[%s0 + $0x188] sm:$0xff]
    %v166 = vld [vmem:[%s0 + $0x190] sm:$0xff]
    %v167 = vld [vmem:[%s0 + $0x198] sm:$0xff]
    %v168 = vld [vmem:[%s0 + $0x1a0] sm:$0xff]
    %v169 = vld [vmem:[%s0 + $0x1a8] sm:$0xff]
    %v170 = vld [vmem:[%s0 + $0x1b0] sm:$0xff]
    %v171 = vld [vmem:[%s0 + $0x1b8] sm:$0xff]
    %v172 = vld [vmem:[%s0 + $0x1c0] sm:$0xff]
    %v173 = vld [vmem:[%s0 + $0x1c8] sm:$0xff]
    %v174 = vld [vmem:[%s0 + $0x1d0] sm:$0xff]
    %v175 = vld [vmem:[%s0 + $0x1d8] sm:$0xff]
    %v176 = vld [vmem:[%s0 + $0x1e0] sm:$0xff]
    %v177 = vld [vmem:[%s0 + $0x1e8] sm:$0xff]
    %v178 = vld [vmem:[%s0 + $0x1f0] sm:$0xff]
    %v179 = vld [vmem:[%s0 + $0x1f8] sm:$0xff]
    %v180 = vld [vmem:[%s0 + $0x200] sm:$0xff]
    %v181 = vld [vmem:[%s0 + $0x208] sm:$0xff]
    %v182 = vld [vmem:[%s0 + $0x210] sm:$0xff]
    %v183 = vld [vmem:[%s0 + $0x218] sm:$0xff]
    %v184 = vld [vmem:[%s0 + $0x220] sm:$0xff]
    %v185 = vld [vmem:[%s0 + $0x228] sm:$0xff]
    %v186 = vld [vmem:[%s0 + $0x230] sm:$0xff]
    %v187 = vld [vmem:[%s0 + $0x238] sm:$0xff]
    %v188 = vld [vmem:[%s0 + $0x240] sm:$0xff]
    %v189 = vld [vmem:[%s0 + $0x248] sm:$0xff]
    %v190 = vld [vmem:[%s0 + $0x250] sm:$0xff]
    %v191 = vld [vmem:[%s0 + $0x258] sm:$0xff]
    %v192 = vld [vmem:[%s0 + $0x260] sm:$0xff]
    %v193 = vld [vmem:[%s0 + $0x268] sm:$0xff]
    %v194 = vld [vmem:[%s0 + $0x270] sm:$0xff]
    %v195 = vld [vmem:[%s0 + $0x278] sm:$0xff]
    %v196 = vld [vmem:[%s0 + $0x280] sm:$0xff]
    %v197 = vld [vmem:[%s0 + $0x288] sm:$0xff]
    %v198 = vld [vmem:[%s0 + $0x290] sm:$0xff]
    %v199 = vld [vmem:[%s0 + $0x298] sm:$0xff]
    %v200 = vld [vmem:[%s0 + $0x2a0] sm:$0xff]
    %v201 = vld [vmem:[%s0 + $0x2a8] sm:$0xff]
    %v202 = vld [vmem:[%s0 + $0x2b0] sm:$0xff]
    %v203 = vld [vmem:[%s0 + $0x2b8] sm:$0xff]
    %v204 = vld [vmem:[%s0 + $0x2c0] sm:$0xff]
    %v205 = vld [vmem:[%s0 + $0x2c8] sm:$0xff]
    %v206 = vld [vmem:[%s0 + $0x2d0] sm:$0xff]
    %v207 = vld [vmem:[%s0 + $0x2d8] sm:$0xff]
    %v208 = vld [vmem:[%s0 + $0x2e0] sm:$0xff]
    %v209 = vld [vmem:[%s0 + $0x2e8] sm:$0xff]
    %v210 = vld [vmem:[%s0 + $0x2f0] sm:$0xff]
    %v211 = vld [vmem:[%s0 + $0x2f8] sm:$0xff]
    %v212 = vld [vmem:[%s0 + $0x300] sm:$0xff]
    %v213 = vld [vmem:[%s0 + $0x308] sm:$0xff]
    %v214 = vld [vmem:[%s0 + $0x310] sm:$0xff]
    %v215 = vld [vmem:[%s0 + $0x318] sm:$0xff]
    %v216 = vld [vmem:[%s0 + $0x320] sm:$0xff]
    %v217 = vld [vmem:[%s0 + $0x328] sm:$0xff]
    %v218 = vld [vmem:[%s0 + $0x330] sm:$0xff]
    %v219 = vld [vmem:[%s0 + $0x338] sm:$0xff]
    %v220 = vld [vmem:[%s0 + $0x340] sm:$0xff]
    %v221 = vld [vmem:[%s0 + $0x348] sm:$0xff]
    %v222 = vld [vmem:[%s0 + $0x350] sm:$0xff]
    %v223 = vld [vmem:[%s0 + $0x358] sm:$0xff]
    %v224 = vld [vmem:[%s0 + $0x360] sm:$0xff]
    %v225 = vld [vmem:[%s0 + $0x368] sm:$0xff]
    %v226 = vld [vmem:[%s0 + $0x370] sm:$0xff]
    %v227 = vld [vmem:[%s0 + $0x378] sm:$0xff]
    %v228 = vpack.c.bf16 %v123, %v116
    %v229 = vpack.c.bf16 %v124, %v117
    %v230 = vpack.c.bf16 %v125, %v118
    %v231 = vpack.c.bf16 %v126, %v119
    %v232 = vpack.c.bf16 %v127, %v120
    %v233 = vpack.c.bf16 %v128, %v121
    %v234 = vpack.c.bf16 %v129, %v122
    %v235 = vpack.c.bf16 %v137, %v130
    %v236 = vpack.c.bf16 %v138, %v131
    %v237 = vpack.c.bf16 %v139, %v132
    %v238 = vpack.c.bf16 %v140, %v133
    %v239 = vpack.c.bf16 %v141, %v134
    %v240 = vpack.c.bf16 %v142, %v135
    %v241 = vpack.c.bf16 %v143, %v136
    %v242 = vpack.c.bf16 %v151, %v144
    %v243 = vpack.c.bf16 %v152, %v145
    %v244 = vpack.c.bf16 %v153, %v146
    %v245 = vpack.c.bf16 %v154, %v147
    %v246 = vpack.c.bf16 %v155, %v148
    %v247 = vpack.c.bf16 %v156, %v149
    %v248 = vpack.c.bf16 %v157, %v150
    %v249 = vpack.c.bf16 %v165, %v158
    %v250 = vpack.c.bf16 %v166, %v159
    %v251 = vpack.c.bf16 %v167, %v160
    %v252 = vpack.c.bf16 %v168, %v161
    %v253 = vpack.c.bf16 %v169, %v162
    %v254 = vpack.c.bf16 %v170, %v163
    %v255 = vpack.c.bf16 %v171, %v164
    %v256 = vpack.c.bf16 %v179, %v172
    %v257 = vpack.c.bf16 %v180, %v173
    %v258 = vpack.c.bf16 %v181, %v174
    %v259 = vpack.c.bf16 %v182, %v175
    %v260 = vpack.c.bf16 %v183, %v176
    %v261 = vpack.c.bf16 %v184, %v177
    %v262 = vpack.c.bf16 %v185, %v178
    %v263 = vpack.c.bf16 %v193, %v186
    %v264 = vpack.c.bf16 %v194, %v187
    %v265 = vpack.c.bf16 %v195, %v188
    %v266 = vpack.c.bf16 %v196, %v189
    %v267 = vpack.c.bf16 %v197, %v190
    %v268 = vpack.c.bf16 %v198, %v191
    %v269 = vpack.c.bf16 %v199, %v192
    %v270 = vpack.c.bf16 %v207, %v200
    %v271 = vpack.c.bf16 %v208, %v201
    %v272 = vpack.c.bf16 %v209, %v202
    %v273 = vpack.c.bf16 %v210, %v203
    %v274 = vpack.c.bf16 %v211, %v204
    %v275 = vpack.c.bf16 %v212, %v205
    %v276 = vpack.c.bf16 %v213, %v206
    %v277 = vpack.c.bf16 %v221, %v214
    %v278 = vpack.c.bf16 %v222, %v215
    %v279 = vpack.c.bf16 %v223, %v216
    %v280 = vpack.c.bf16 %v224, %v217
    %v281 = vpack.c.bf16 %v225, %v218
    %v282 = vpack.c.bf16 %v226, %v219
    %v283 = vpack.c.bf16 %v227, %v220
    %v284 = vld [vmem:[%s1] sm:$0xff]
    %v285 = vld [vmem:[%s1 + $0x8] sm:$0xff]
    %v286 = vld [vmem:[%s1 + $0x10] sm:$0xff]
    %v287 = vld [vmem:[%s1 + $0x18] sm:$0xff]
    %v288 = vld [vmem:[%s1 + $0x20] sm:$0xff]
    %v289 = vld [vmem:[%s1 + $0x28] sm:$0xff]
    %v290 = vld [vmem:[%s1 + $0x30] sm:$0xff]
    %v291 = vld [vmem:[%s1 + $0x38] sm:$0xff]
    %v292 = vld [vmem:[%s1 + $0x40] sm:$0xff]
    %v293 = vld [vmem:[%s1 + $0x48] sm:$0xff]
    %v294 = vld [vmem:[%s1 + $0x50] sm:$0xff]
    %v295 = vld [vmem:[%s1 + $0x58] sm:$0xff]
    %v296 = vld [vmem:[%s1 + $0x60] sm:$0xff]
    %v297 = vld [vmem:[%s1 + $0x68] sm:$0xff]
    %v298 = vld [vmem:[%s1 + $0x70] sm:$0xff]
    %v299 = vld [vmem:[%s1 + $0x78] sm:$0xff]
    %v300 = vld [vmem:[%s1 + $0x80] sm:$0xff]
    %v301 = vld [vmem:[%s1 + $0x88] sm:$0xff]
    %v302 = vld [vmem:[%s1 + $0x90] sm:$0xff]
    %v303 = vld [vmem:[%s1 + $0x98] sm:$0xff]
    %v304 = vld [vmem:[%s1 + $0xa0] sm:$0xff]
    %v305 = vld [vmem:[%s1 + $0xa8] sm:$0xff]
    %v306 = vld [vmem:[%s1 + $0xb0] sm:$0xff]
    %v307 = vld [vmem:[%s1 + $0xb8] sm:$0xff]
    %v308 = vld [vmem:[%s1 + $0xc0] sm:$0xff]
    %v309 = vld [vmem:[%s1 + $0xc8] sm:$0xff]
    %v310 = vld [vmem:[%s1 + $0xd0] sm:$0xff]
    %v311 = vld [vmem:[%s1 + $0xd8] sm:$0xff]
    %v312 = vld [vmem:[%s1 + $0xe0] sm:$0xff]
    %v313 = vld [vmem:[%s1 + $0xe8] sm:$0xff]
    %v314 = vld [vmem:[%s1 + $0xf0] sm:$0xff]
    %v315 = vld [vmem:[%s1 + $0xf8] sm:$0xff]
    %v316 = vld [vmem:[%s1 + $0x100] sm:$0xff]
    %v317 = vld [vmem:[%s1 + $0x108] sm:$0xff]
    %v318 = vld [vmem:[%s1 + $0x110] sm:$0xff]
    %v319 = vld [vmem:[%s1 + $0x118] sm:$0xff]
    %v320 = vld [vmem:[%s1 + $0x120] sm:$0xff]
    %v321 = vld [vmem:[%s1 + $0x128] sm:$0xff]
    %v322 = vld [vmem:[%s1 + $0x130] sm:$0xff]
    %v323 = vld [vmem:[%s1 + $0x138] sm:$0xff]
    %v324 = vld [vmem:[%s1 + $0x140] sm:$0xff]
    %v325 = vld [vmem:[%s1 + $0x148] sm:$0xff]
    %v326 = vld [vmem:[%s1 + $0x150] sm:$0xff]
    %v327 = vld [vmem:[%s1 + $0x158] sm:$0xff]
    %v328 = vld [vmem:[%s1 + $0x160] sm:$0xff]
    %v329 = vld [vmem:[%s1 + $0x168] sm:$0xff]
    %v330 = vld [vmem:[%s1 + $0x170] sm:$0xff]
    %v331 = vld [vmem:[%s1 + $0x178] sm:$0xff]
    %v332 = vld [vmem:[%s1 + $0x180] sm:$0xff]
    %v333 = vld [vmem:[%s1 + $0x188] sm:$0xff]
    %v334 = vld [vmem:[%s1 + $0x190] sm:$0xff]
    %v335 = vld [vmem:[%s1 + $0x198] sm:$0xff]
    %v336 = vld [vmem:[%s1 + $0x1a0] sm:$0xff]
    %v337 = vld [vmem:[%s1 + $0x1a8] sm:$0xff]
    %v338 = vld [vmem:[%s1 + $0x1b0] sm:$0xff]
    %v339 = vld [vmem:[%s1 + $0x1b8] sm:$0xff]
    %v340 = vld [vmem:[%s1 + $0x1c0] sm:$0xff]
    %v341 = vld [vmem:[%s1 + $0x1c8] sm:$0xff]
    %v342 = vld [vmem:[%s1 + $0x1d0] sm:$0xff]
    %v343 = vld [vmem:[%s1 + $0x1d8] sm:$0xff]
    %v344 = vld [vmem:[%s1 + $0x1e0] sm:$0xff]
    %v345 = vld [vmem:[%s1 + $0x1e8] sm:$0xff]
    %v346 = vld [vmem:[%s1 + $0x1f0] sm:$0xff]
    %v347 = vld [vmem:[%s1 + $0x1f8] sm:$0xff]
    %v348 = vld [vmem:[%s1 + $0x200] sm:$0xff]
    %v349 = vld [vmem:[%s1 + $0x208] sm:$0xff]
    %v350 = vld [vmem:[%s1 + $0x210] sm:$0xff]
    %v351 = vld [vmem:[%s1 + $0x218] sm:$0xff]
    %v352 = vld [vmem:[%s1 + $0x220] sm:$0xff]
    %v353 = vld [vmem:[%s1 + $0x228] sm:$0xff]
    %v354 = vld [vmem:[%s1 + $0x230] sm:$0xff]
    %v355 = vld [vmem:[%s1 + $0x238] sm:$0xff]
    %v356 = vld [vmem:[%s1 + $0x240] sm:$0xff]
    %v357 = vld [vmem:[%s1 + $0x248] sm:$0xff]
    %v358 = vld [vmem:[%s1 + $0x250] sm:$0xff]
    %v359 = vld [vmem:[%s1 + $0x258] sm:$0xff]
    %v360 = vld [vmem:[%s1 + $0x260] sm:$0xff]
    %v361 = vld [vmem:[%s1 + $0x268] sm:$0xff]
    %v362 = vld [vmem:[%s1 + $0x270] sm:$0xff]
    %v363 = vld [vmem:[%s1 + $0x278] sm:$0xff]
    %v364 = vld [vmem:[%s1 + $0x280] sm:$0xff]
    %v365 = vld [vmem:[%s1 + $0x288] sm:$0xff]
    %v366 = vld [vmem:[%s1 + $0x290] sm:$0xff]
    %v367 = vld [vmem:[%s1 + $0x298] sm:$0xff]
    %v368 = vld [vmem:[%s1 + $0x2a0] sm:$0xff]
    %v369 = vld [vmem:[%s1 + $0x2a8] sm:$0xff]
    %v370 = vld [vmem:[%s1 + $0x2b0] sm:$0xff]
    %v371 = vld [vmem:[%s1 + $0x2b8] sm:$0xff]
    %v372 = vld [vmem:[%s1 + $0x2c0] sm:$0xff]
    %v373 = vld [vmem:[%s1 + $0x2c8] sm:$0xff]
    %v374 = vld [vmem:[%s1 + $0x2d0] sm:$0xff]
    %v375 = vld [vmem:[%s1 + $0x2d8] sm:$0xff]
    %v376 = vld [vmem:[%s1 + $0x2e0] sm:$0xff]
    %v377 = vld [vmem:[%s1 + $0x2e8] sm:$0xff]
    %v378 = vld [vmem:[%s1 + $0x2f0] sm:$0xff]
    %v379 = vld [vmem:[%s1 + $0x2f8] sm:$0xff]
    %v380 = vld [vmem:[%s1 + $0x300] sm:$0xff]
    %v381 = vld [vmem:[%s1 + $0x308] sm:$0xff]
    %v382 = vld [vmem:[%s1 + $0x310] sm:$0xff]
    %v383 = vld [vmem:[%s1 + $0x318] sm:$0xff]
    %v384 = vld [vmem:[%s1 + $0x320] sm:$0xff]
    %v385 = vld [vmem:[%s1 + $0x328] sm:$0xff]
    %v386 = vld [vmem:[%s1 + $0x330] sm:$0xff]
    %v387 = vld [vmem:[%s1 + $0x338] sm:$0xff]
    %v388 = vld [vmem:[%s1 + $0x340] sm:$0xff]
    %v389 = vld [vmem:[%s1 + $0x348] sm:$0xff]
    %v390 = vld [vmem:[%s1 + $0x350] sm:$0xff]
    %v391 = vld [vmem:[%s1 + $0x358] sm:$0xff]
    %v392 = vld [vmem:[%s1 + $0x360] sm:$0xff]
    %v393 = vld [vmem:[%s1 + $0x368] sm:$0xff]
    %v394 = vld [vmem:[%s1 + $0x370] sm:$0xff]
    %v395 = vld [vmem:[%s1 + $0x378] sm:$0xff]
    %v396 = vld [vmem:[%s1 + $0x380] sm:$0xff]
    %v397 = vld [vmem:[%s1 + $0x388] sm:$0xff]
    %v398 = vld [vmem:[%s1 + $0x390] sm:$0xff]
    %v399 = vld [vmem:[%s1 + $0x398] sm:$0xff]
    %v400 = vld [vmem:[%s1 + $0x3a0] sm:$0xff]
    %v401 = vld [vmem:[%s1 + $0x3a8] sm:$0xff]
    %v402 = vld [vmem:[%s1 + $0x3b0] sm:$0xff]
    %v403 = vld [vmem:[%s1 + $0x3b8] sm:$0xff]
    %v404 = vld [vmem:[%s1 + $0x3c0] sm:$0xff]
    %v405 = vld [vmem:[%s1 + $0x3c8] sm:$0xff]
    %v406 = vld [vmem:[%s1 + $0x3d0] sm:$0xff]
    %v407 = vld [vmem:[%s1 + $0x3d8] sm:$0xff]
    %v408 = vld [vmem:[%s1 + $0x3e0] sm:$0xff]
    %v409 = vld [vmem:[%s1 + $0x3e8] sm:$0xff]
    %v410 = vld [vmem:[%s1 + $0x3f0] sm:$0xff]
    %v411 = vld [vmem:[%s1 + $0x3f8] sm:$0xff]
    %v412 = vld [vmem:[%s1 + $0x400] sm:$0xff]
    %v413 = vld [vmem:[%s1 + $0x408] sm:$0xff]
    %v414 = vld [vmem:[%s1 + $0x410] sm:$0xff]
    %v415 = vld [vmem:[%s1 + $0x418] sm:$0xff]
    %v416 = vld [vmem:[%s1 + $0x420] sm:$0xff]
    %v417 = vld [vmem:[%s1 + $0x428] sm:$0xff]
    %v418 = vld [vmem:[%s1 + $0x430] sm:$0xff]
    %v419 = vld [vmem:[%s1 + $0x438] sm:$0xff]
    %v420 = vld [vmem:[%s1 + $0x440] sm:$0xff]
    %v421 = vld [vmem:[%s1 + $0x448] sm:$0xff]
    %v422 = vld [vmem:[%s1 + $0x450] sm:$0xff]
    %v423 = vld [vmem:[%s1 + $0x458] sm:$0xff]
    %v424 = vld [vmem:[%s1 + $0x460] sm:$0xff]
    %v425 = vld [vmem:[%s1 + $0x468] sm:$0xff]
    %v426 = vld [vmem:[%s1 + $0x470] sm:$0xff]
    %v427 = vld [vmem:[%s1 + $0x478] sm:$0xff]
    %v428 = vld [vmem:[%s1 + $0x480] sm:$0xff]
    %v429 = vld [vmem:[%s1 + $0x488] sm:$0xff]
    %v430 = vld [vmem:[%s1 + $0x490] sm:$0xff]
    %v431 = vld [vmem:[%s1 + $0x498] sm:$0xff]
    %v432 = vld [vmem:[%s1 + $0x4a0] sm:$0xff]
    %v433 = vld [vmem:[%s1 + $0x4a8] sm:$0xff]
    %v434 = vld [vmem:[%s1 + $0x4b0] sm:$0xff]
    %v435 = vld [vmem:[%s1 + $0x4b8] sm:$0xff]
    %v436 = vld [vmem:[%s1 + $0x4c0] sm:$0xff]
    %v437 = vld [vmem:[%s1 + $0x4c8] sm:$0xff]
    %v438 = vld [vmem:[%s1 + $0x4d0] sm:$0xff]
    %v439 = vld [vmem:[%s1 + $0x4d8] sm:$0xff]
    %v440 = vld [vmem:[%s1 + $0x4e0] sm:$0xff]
    %v441 = vld [vmem:[%s1 + $0x4e8] sm:$0xff]
    %v442 = vld [vmem:[%s1 + $0x4f0] sm:$0xff]
    %v443 = vld [vmem:[%s1 + $0x4f8] sm:$0xff]
    %v444 = vld [vmem:[%s1 + $0x500] sm:$0xff]
    %v445 = vld [vmem:[%s1 + $0x508] sm:$0xff]
    %v446 = vld [vmem:[%s1 + $0x510] sm:$0xff]
    %v447 = vld [vmem:[%s1 + $0x518] sm:$0xff]
    %v448 = vld [vmem:[%s1 + $0x520] sm:$0xff]
    %v449 = vld [vmem:[%s1 + $0x528] sm:$0xff]
    %v450 = vld [vmem:[%s1 + $0x530] sm:$0xff]
    %v451 = vld [vmem:[%s1 + $0x538] sm:$0xff]
    %v452 = vld [vmem:[%s1 + $0x540] sm:$0xff]
    %v453 = vld [vmem:[%s1 + $0x548] sm:$0xff]
    %v454 = vld [vmem:[%s1 + $0x550] sm:$0xff]
    %v455 = vld [vmem:[%s1 + $0x558] sm:$0xff]
    %v456 = vld [vmem:[%s1 + $0x560] sm:$0xff]
    %v457 = vld [vmem:[%s1 + $0x568] sm:$0xff]
    %v458 = vld [vmem:[%s1 + $0x570] sm:$0xff]
    %v459 = vld [vmem:[%s1 + $0x578] sm:$0xff]
    %v460 = vld [vmem:[%s1 + $0x580] sm:$0xff]
    %v461 = vld [vmem:[%s1 + $0x588] sm:$0xff]
    %v462 = vld [vmem:[%s1 + $0x590] sm:$0xff]
    %v463 = vld [vmem:[%s1 + $0x598] sm:$0xff]
    %v464 = vld [vmem:[%s1 + $0x5a0] sm:$0xff]
    %v465 = vld [vmem:[%s1 + $0x5a8] sm:$0xff]
    %v466 = vld [vmem:[%s1 + $0x5b0] sm:$0xff]
    %v467 = vld [vmem:[%s1 + $0x5b8] sm:$0xff]
    %v468 = vld [vmem:[%s1 + $0x5c0] sm:$0xff]
    %v469 = vld [vmem:[%s1 + $0x5c8] sm:$0xff]
    %v470 = vld [vmem:[%s1 + $0x5d0] sm:$0xff]
    %v471 = vld [vmem:[%s1 + $0x5d8] sm:$0xff]
    %v472 = vld [vmem:[%s1 + $0x5e0] sm:$0xff]
    %v473 = vld [vmem:[%s1 + $0x5e8] sm:$0xff]
    %v474 = vld [vmem:[%s1 + $0x5f0] sm:$0xff]
    %v475 = vld [vmem:[%s1 + $0x5f8] sm:$0xff]
    %v476 = vld [vmem:[%s1 + $0x600] sm:$0xff]
    %v477 = vld [vmem:[%s1 + $0x608] sm:$0xff]
    %v478 = vld [vmem:[%s1 + $0x610] sm:$0xff]
    %v479 = vld [vmem:[%s1 + $0x618] sm:$0xff]
    %v480 = vld [vmem:[#allocation2] sm:$0xf]
    %v482 = vlaneseq
    %v483 = vshrl.u32 %v482, 7
    %v484 = vsub.s32 0, %v483
    %v485 = vrot.slane %v480, %v484
    %v486 = vlaneseq
    %v487 = vshrl.u32 %v486, 7
    %v488 = vsub.s32 1, %v487
    %v489 = vrot.slane %v480, %v488
    %v490 = vlaneseq
    %v491 = vshrl.u32 %v490, 7
    %v492 = vsub.s32 2, %v491
    %v493 = vrot.slane %v480, %v492
    %v494 = vlaneseq
    %v495 = vshrl.u32 %v494, 7
    %v496 = vsub.s32 3, %v495
    %v497 = vrot.slane %v480, %v496
    %v698 = vunpack.c.l.b16 %v284
    %v699 = vunpack.c.h.b16 %v284
    %v700 = vunpack.c.l.b16 %v285
    %v701 = vunpack.c.h.b16 %v285
    %v702 = vunpack.c.l.b16 %v286
    %v703 = vunpack.c.h.b16 %v286
    %v704 = vunpack.c.l.b16 %v287
    %v705 = vunpack.c.h.b16 %v287
    %v706 = vunpack.c.l.b16 %v288
    %v707 = vunpack.c.h.b16 %v288
    %v708 = vunpack.c.l.b16 %v289
    %v709 = vunpack.c.h.b16 %v289
    %v710 = vunpack.c.l.b16 %v290
    %v711 = vunpack.c.h.b16 %v290
    %v712 = vunpack.c.l.b16 %v291
    %v713 = vunpack.c.h.b16 %v291
    %v714 = vunpack.c.l.b16 %v292
    %v715 = vunpack.c.h.b16 %v292
    %v716 = vunpack.c.l.b16 %v293
    %v717 = vunpack.c.h.b16 %v293
    %v718 = vunpack.c.l.b16 %v294
    %v719 = vunpack.c.h.b16 %v294
    %v720 = vunpack.c.l.b16 %v295
    %v721 = vunpack.c.h.b16 %v295
    %v722 = vunpack.c.l.b16 %v296
    %v723 = vunpack.c.h.b16 %v296
    %v724 = vunpack.c.l.b16 %v297
    %v725 = vunpack.c.h.b16 %v297
    %v726 = vunpack.c.l.b16 %v298
    %v727 = vunpack.c.h.b16 %v298
    %v728 = vunpack.c.l.b16 %v299
    %v729 = vunpack.c.h.b16 %v299
    %v730 = vunpack.c.l.b16 %v300
    %v731 = vunpack.c.h.b16 %v300
    %v732 = vunpack.c.l.b16 %v301
    %v733 = vunpack.c.h.b16 %v301
    %v734 = vunpack.c.l.b16 %v302
    %v735 = vunpack.c.h.b16 %v302
    %v736 = vunpack.c.l.b16 %v303
    %v737 = vunpack.c.h.b16 %v303
    %v738 = vunpack.c.l.b16 %v304
    %v739 = vunpack.c.h.b16 %v304
    %v740 = vunpack.c.l.b16 %v305
    %v741 = vunpack.c.h.b16 %v305
    %v742 = vunpack.c.l.b16 %v306
    %v743 = vunpack.c.h.b16 %v306
    %v744 = vunpack.c.l.b16 %v307
    %v745 = vunpack.c.h.b16 %v307
    %v746 = vunpack.c.l.b16 %v308
    %v747 = vunpack.c.h.b16 %v308
    %v748 = vunpack.c.l.b16 %v309
    %v749 = vunpack.c.h.b16 %v309
    %v750 = vunpack.c.l.b16 %v310
    %v751 = vunpack.c.h.b16 %v310
    %v752 = vunpack.c.l.b16 %v311
    %v753 = vunpack.c.h.b16 %v311
    %v754 = vunpack.c.l.b16 %v312
    %v755 = vunpack.c.h.b16 %v312
    %v756 = vunpack.c.l.b16 %v313
    %v757 = vunpack.c.h.b16 %v313
    %v758 = vunpack.c.l.b16 %v314
    %v759 = vunpack.c.h.b16 %v314
    %v760 = vunpack.c.l.b16 %v315
    %v761 = vunpack.c.h.b16 %v315
    %v762 = vunpack.c.l.b16 %v316
    %v763 = vunpack.c.h.b16 %v316
    %v764 = vunpack.c.l.b16 %v317
    %v765 = vunpack.c.h.b16 %v317
    %v766 = vunpack.c.l.b16 %v318
    %v767 = vunpack.c.h.b16 %v318
    %v768 = vunpack.c.l.b16 %v319
    %v769 = vunpack.c.h.b16 %v319
    %v770 = vunpack.c.l.b16 %v320
    %v771 = vunpack.c.h.b16 %v320
    %v772 = vunpack.c.l.b16 %v321
    %v773 = vunpack.c.h.b16 %v321
    %v774 = vunpack.c.l.b16 %v322
    %v775 = vunpack.c.h.b16 %v322
    %v776 = vunpack.c.l.b16 %v323
    %v777 = vunpack.c.h.b16 %v323
    %v778 = vunpack.c.l.b16 %v324
    %v779 = vunpack.c.h.b16 %v324
    %v780 = vunpack.c.l.b16 %v325
    %v781 = vunpack.c.h.b16 %v325
    %v782 = vunpack.c.l.b16 %v326
    %v783 = vunpack.c.h.b16 %v326
    %v784 = vunpack.c.l.b16 %v327
    %v785 = vunpack.c.h.b16 %v327
    %v786 = vunpack.c.l.b16 %v328
    %v787 = vunpack.c.h.b16 %v328
    %v788 = vunpack.c.l.b16 %v329
    %v789 = vunpack.c.h.b16 %v329
    %v790 = vunpack.c.l.b16 %v330
    %v791 = vunpack.c.h.b16 %v330
    %v792 = vunpack.c.l.b16 %v331
    %v793 = vunpack.c.h.b16 %v331
    %v794 = vunpack.c.l.b16 %v332
    %v795 = vunpack.c.h.b16 %v332
    %v796 = vunpack.c.l.b16 %v333
    %v797 = vunpack.c.h.b16 %v333
    %v798 = vunpack.c.l.b16 %v334
    %v799 = vunpack.c.h.b16 %v334
    %v800 = vunpack.c.l.b16 %v335
    %v801 = vunpack.c.h.b16 %v335
    %v802 = vunpack.c.l.b16 %v336
    %v803 = vunpack.c.h.b16 %v336
    %v804 = vunpack.c.l.b16 %v337
    %v805 = vunpack.c.h.b16 %v337
    %v806 = vunpack.c.l.b16 %v338
    %v807 = vunpack.c.h.b16 %v338
    %v808 = vunpack.c.l.b16 %v339
    %v809 = vunpack.c.h.b16 %v339
    %v810 = vunpack.c.l.b16 %v340
    %v811 = vunpack.c.h.b16 %v340
    %v812 = vunpack.c.l.b16 %v341
    %v813 = vunpack.c.h.b16 %v341
    %v814 = vunpack.c.l.b16 %v342
    %v815 = vunpack.c.h.b16 %v342
    %v816 = vunpack.c.l.b16 %v343
    %v817 = vunpack.c.h.b16 %v343
    %v818 = vunpack.c.l.b16 %v344
    %v819 = vunpack.c.h.b16 %v344
    %v820 = vunpack.c.l.b16 %v345
    %v821 = vunpack.c.h.b16 %v345
    %v822 = vunpack.c.l.b16 %v346
    %v823 = vunpack.c.h.b16 %v346
    %v824 = vunpack.c.l.b16 %v347
    %v825 = vunpack.c.h.b16 %v347
    %v826 = vunpack.c.l.b16 %v348
    %v827 = vunpack.c.h.b16 %v348
    %v828 = vunpack.c.l.b16 %v349
    %v829 = vunpack.c.h.b16 %v349
    %v830 = vunpack.c.l.b16 %v350
    %v831 = vunpack.c.h.b16 %v350
    %v832 = vunpack.c.l.b16 %v351
    %v833 = vunpack.c.h.b16 %v351
    %v834 = vunpack.c.l.b16 %v352
    %v835 = vunpack.c.h.b16 %v352
    %v836 = vunpack.c.l.b16 %v353
    %v837 = vunpack.c.h.b16 %v353
    %v838 = vunpack.c.l.b16 %v354
    %v839 = vunpack.c.h.b16 %v354
    %v840 = vunpack.c.l.b16 %v355
    %v841 = vunpack.c.h.b16 %v355
    %v842 = vunpack.c.l.b16 %v356
    %v843 = vunpack.c.h.b16 %v356
    %v844 = vunpack.c.l.b16 %v357
    %v845 = vunpack.c.h.b16 %v357
    %v846 = vunpack.c.l.b16 %v358
    %v847 = vunpack.c.h.b16 %v358
    %v848 = vunpack.c.l.b16 %v359
    %v849 = vunpack.c.h.b16 %v359
    %v850 = vunpack.c.l.b16 %v360
    %v851 = vunpack.c.h.b16 %v360
    %v852 = vunpack.c.l.b16 %v361
    %v853 = vunpack.c.h.b16 %v361
    %v854 = vunpack.c.l.b16 %v362
    %v855 = vunpack.c.h.b16 %v362
    %v856 = vunpack.c.l.b16 %v363
    %v857 = vunpack.c.h.b16 %v363
    %v858 = vunpack.c.l.b16 %v364
    %v859 = vunpack.c.h.b16 %v364
    %v860 = vunpack.c.l.b16 %v365
    %v861 = vunpack.c.h.b16 %v365
    %v862 = vunpack.c.l.b16 %v366
    %v863 = vunpack.c.h.b16 %v366
    %v864 = vunpack.c.l.b16 %v367
    %v865 = vunpack.c.h.b16 %v367
    %v866 = vunpack.c.l.b16 %v368
    %v867 = vunpack.c.h.b16 %v368
    %v868 = vunpack.c.l.b16 %v369
    %v869 = vunpack.c.h.b16 %v369
    %v870 = vunpack.c.l.b16 %v370
    %v871 = vunpack.c.h.b16 %v370
    %v872 = vunpack.c.l.b16 %v371
    %v873 = vunpack.c.h.b16 %v371
    %v874 = vunpack.c.l.b16 %v372
    %v875 = vunpack.c.h.b16 %v372
    %v876 = vunpack.c.l.b16 %v373
    %v877 = vunpack.c.h.b16 %v373
    %v878 = vunpack.c.l.b16 %v374
    %v879 = vunpack.c.h.b16 %v374
    %v880 = vunpack.c.l.b16 %v375
    %v881 = vunpack.c.h.b16 %v375
    %v882 = vunpack.c.l.b16 %v376
    %v883 = vunpack.c.h.b16 %v376
    %v884 = vunpack.c.l.b16 %v377
    %v885 = vunpack.c.h.b16 %v377
    %v886 = vunpack.c.l.b16 %v378
    %v887 = vunpack.c.h.b16 %v378
    %v888 = vunpack.c.l.b16 %v379
    %v889 = vunpack.c.h.b16 %v379
    %v890 = vunpack.c.l.b16 %v380
    %v891 = vunpack.c.h.b16 %v380
    %v892 = vunpack.c.l.b16 %v381
    %v893 = vunpack.c.h.b16 %v381
    %v894 = vunpack.c.l.b16 %v382
    %v895 = vunpack.c.h.b16 %v382
    %v896 = vunpack.c.l.b16 %v383
    %v897 = vunpack.c.h.b16 %v383
    %v898 = vunpack.c.l.b16 %v384
    %v899 = vunpack.c.h.b16 %v384
    %v900 = vunpack.c.l.b16 %v385
    %v901 = vunpack.c.h.b16 %v385
    %v902 = vunpack.c.l.b16 %v386
    %v903 = vunpack.c.h.b16 %v386
    %v904 = vunpack.c.l.b16 %v387
    %v905 = vunpack.c.h.b16 %v387
    %v906 = vunpack.c.l.b16 %v388
    %v907 = vunpack.c.h.b16 %v388
    %v908 = vunpack.c.l.b16 %v389
    %v909 = vunpack.c.h.b16 %v389
    %v910 = vunpack.c.l.b16 %v390
    %v911 = vunpack.c.h.b16 %v390
    %v912 = vunpack.c.l.b16 %v391
    %v913 = vunpack.c.h.b16 %v391
    %v914 = vunpack.c.l.b16 %v392
    %v915 = vunpack.c.h.b16 %v392
    %v916 = vunpack.c.l.b16 %v393
    %v917 = vunpack.c.h.b16 %v393
    %v918 = vunpack.c.l.b16 %v394
    %v919 = vunpack.c.h.b16 %v394
    %v920 = vunpack.c.l.b16 %v395
    %v921 = vunpack.c.h.b16 %v395
    %v922 = vunpack.c.l.b16 %v396
    %v923 = vunpack.c.h.b16 %v396
    %v924 = vunpack.c.l.b16 %v397
    %v925 = vunpack.c.h.b16 %v397
    %v926 = vunpack.c.l.b16 %v398
    %v927 = vunpack.c.h.b16 %v398
    %v928 = vunpack.c.l.b16 %v399
    %v929 = vunpack.c.h.b16 %v399
    %v930 = vunpack.c.l.b16 %v400
    %v931 = vunpack.c.h.b16 %v400
    %v932 = vunpack.c.l.b16 %v401
    %v933 = vunpack.c.h.b16 %v401
    %v934 = vunpack.c.l.b16 %v402
    %v935 = vunpack.c.h.b16 %v402
    %v936 = vunpack.c.l.b16 %v403
    %v937 = vunpack.c.h.b16 %v403
    %v938 = vunpack.c.l.b16 %v404
    %v939 = vunpack.c.h.b16 %v404
    %v940 = vunpack.c.l.b16 %v405
    %v941 = vunpack.c.h.b16 %v405
    %v942 = vunpack.c.l.b16 %v406
    %v943 = vunpack.c.h.b16 %v406
    %v944 = vunpack.c.l.b16 %v407
    %v945 = vunpack.c.h.b16 %v407
    %v946 = vunpack.c.l.b16 %v408
    %v947 = vunpack.c.h.b16 %v408
    %v948 = vunpack.c.l.b16 %v409
    %v949 = vunpack.c.h.b16 %v409
    %v950 = vunpack.c.l.b16 %v410
    %v951 = vunpack.c.h.b16 %v410
    %v952 = vunpack.c.l.b16 %v411
    %v953 = vunpack.c.h.b16 %v411
    %v954 = vunpack.c.l.b16 %v412
    %v955 = vunpack.c.h.b16 %v412
    %v956 = vunpack.c.l.b16 %v413
    %v957 = vunpack.c.h.b16 %v413
    %v958 = vunpack.c.l.b16 %v414
    %v959 = vunpack.c.h.b16 %v414
    %v960 = vunpack.c.l.b16 %v415
    %v961 = vunpack.c.h.b16 %v415
    %v962 = vunpack.c.l.b16 %v416
    %v963 = vunpack.c.h.b16 %v416
    %v964 = vunpack.c.l.b16 %v417
    %v965 = vunpack.c.h.b16 %v417
    %v966 = vunpack.c.l.b16 %v418
    %v967 = vunpack.c.h.b16 %v418
    %v968 = vunpack.c.l.b16 %v419
    %v969 = vunpack.c.h.b16 %v419
    %v970 = vunpack.c.l.b16 %v420
    %v971 = vunpack.c.h.b16 %v420
    %v972 = vunpack.c.l.b16 %v421
    %v973 = vunpack.c.h.b16 %v421
    %v974 = vunpack.c.l.b16 %v422
    %v975 = vunpack.c.h.b16 %v422
    %v976 = vunpack.c.l.b16 %v423
    %v977 = vunpack.c.h.b16 %v423
    %v978 = vunpack.c.l.b16 %v424
    %v979 = vunpack.c.h.b16 %v424
    %v980 = vunpack.c.l.b16 %v425
    %v981 = vunpack.c.h.b16 %v425
    %v982 = vunpack.c.l.b16 %v426
    %v983 = vunpack.c.h.b16 %v426
    %v984 = vunpack.c.l.b16 %v427
    %v985 = vunpack.c.h.b16 %v427
    %v986 = vunpack.c.l.b16 %v428
    %v987 = vunpack.c.h.b16 %v428
    %v988 = vunpack.c.l.b16 %v429
    %v989 = vunpack.c.h.b16 %v429
    %v990 = vunpack.c.l.b16 %v430
    %v991 = vunpack.c.h.b16 %v430
    %v992 = vunpack.c.l.b16 %v431
    %v993 = vunpack.c.h.b16 %v431
    %v994 = vunpack.c.l.b16 %v432
    %v995 = vunpack.c.h.b16 %v432
    %v996 = vunpack.c.l.b16 %v433
    %v997 = vunpack.c.h.b16 %v433
    %v998 = vunpack.c.l.b16 %v434
    %v999 = vunpack.c.h.b16 %v434
    %v1000 = vunpack.c.l.b16 %v435
    %v1001 = vunpack.c.h.b16 %v435
    %v1002 = vunpack.c.l.b16 %v436
    %v1003 = vunpack.c.h.b16 %v436
    %v1004 = vunpack.c.l.b16 %v437
    %v1005 = vunpack.c.h.b16 %v437
    %v1006 = vunpack.c.l.b16 %v438
    %v1007 = vunpack.c.h.b16 %v438
    %v1008 = vunpack.c.l.b16 %v439
    %v1009 = vunpack.c.h.b16 %v439
    %v1010 = vunpack.c.l.b16 %v440
    %v1011 = vunpack.c.h.b16 %v440
    %v1012 = vunpack.c.l.b16 %v441
    %v1013 = vunpack.c.h.b16 %v441
    %v1014 = vunpack.c.l.b16 %v442
    %v1015 = vunpack.c.h.b16 %v442
    %v1016 = vunpack.c.l.b16 %v443
    %v1017 = vunpack.c.h.b16 %v443
    %v1018 = vunpack.c.l.b16 %v444
    %v1019 = vunpack.c.h.b16 %v444
    %v1020 = vunpack.c.l.b16 %v445
    %v1021 = vunpack.c.h.b16 %v445
    %v1022 = vunpack.c.l.b16 %v446
    %v1023 = vunpack.c.h.b16 %v446
    %v1024 = vunpack.c.l.b16 %v447
    %v1025 = vunpack.c.h.b16 %v447
    %v1026 = vunpack.c.l.b16 %v448
    %v1027 = vunpack.c.h.b16 %v448
    %v1028 = vunpack.c.l.b16 %v449
    %v1029 = vunpack.c.h.b16 %v449
    %v1030 = vunpack.c.l.b16 %v450
    %v1031 = vunpack.c.h.b16 %v450
    %v1032 = vunpack.c.l.b16 %v451
    %v1033 = vunpack.c.h.b16 %v451
    %v1034 = vunpack.c.l.b16 %v452
    %v1035 = vunpack.c.h.b16 %v452
    %v1036 = vunpack.c.l.b16 %v453
    %v1037 = vunpack.c.h.b16 %v453
    %v1038 = vunpack.c.l.b16 %v454
    %v1039 = vunpack.c.h.b16 %v454
    %v1040 = vunpack.c.l.b16 %v455
    %v1041 = vunpack.c.h.b16 %v455
    %v1042 = vunpack.c.l.b16 %v456
    %v1043 = vunpack.c.h.b16 %v456
    %v1044 = vunpack.c.l.b16 %v457
    %v1045 = vunpack.c.h.b16 %v457
    %v1046 = vunpack.c.l.b16 %v458
    %v1047 = vunpack.c.h.b16 %v458
    %v1048 = vunpack.c.l.b16 %v459
    %v1049 = vunpack.c.h.b16 %v459
    %v1050 = vunpack.c.l.b16 %v460
    %v1051 = vunpack.c.h.b16 %v460
    %v1052 = vunpack.c.l.b16 %v461
    %v1053 = vunpack.c.h.b16 %v461
    %v1054 = vunpack.c.l.b16 %v462
    %v1055 = vunpack.c.h.b16 %v462
    %v1056 = vunpack.c.l.b16 %v463
    %v1057 = vunpack.c.h.b16 %v463
    %v1058 = vunpack.c.l.b16 %v464
    %v1059 = vunpack.c.h.b16 %v464
    %v1060 = vunpack.c.l.b16 %v465
    %v1061 = vunpack.c.h.b16 %v465
    %v1062 = vunpack.c.l.b16 %v466
    %v1063 = vunpack.c.h.b16 %v466
    %v1064 = vunpack.c.l.b16 %v467
    %v1065 = vunpack.c.h.b16 %v467
    %v1066 = vunpack.c.l.b16 %v468
    %v1067 = vunpack.c.h.b16 %v468
    %v1068 = vunpack.c.l.b16 %v469
    %v1069 = vunpack.c.h.b16 %v469
    %v1070 = vunpack.c.l.b16 %v470
    %v1071 = vunpack.c.h.b16 %v470
    %v1072 = vunpack.c.l.b16 %v471
    %v1073 = vunpack.c.h.b16 %v471
    %v1074 = vunpack.c.l.b16 %v472
    %v1075 = vunpack.c.h.b16 %v472
    %v1076 = vunpack.c.l.b16 %v473
    %v1077 = vunpack.c.h.b16 %v473
    %v1078 = vunpack.c.l.b16 %v474
    %v1079 = vunpack.c.h.b16 %v474
    %v1080 = vunpack.c.l.b16 %v475
    %v1081 = vunpack.c.h.b16 %v475
    %v1082 = vunpack.c.l.b16 %v476
    %v1083 = vunpack.c.h.b16 %v476
    %v1084 = vunpack.c.l.b16 %v477
    %v1085 = vunpack.c.h.b16 %v477
    %v1086 = vunpack.c.l.b16 %v478
    %v1087 = vunpack.c.h.b16 %v478
    %v1088 = vunpack.c.l.b16 %v479
    %v1089 = vunpack.c.h.b16 %v479
    %v1090 = vpack.c.b16 %v702, %v698
    %v1091 = vpack.c.b16 %v703, %v699
    %v1092 = vpack.c.b16 %v704, %v700
    %v1093 = vpack.c.b16 %v705, %v701
    %v1094 = vpack.c.b16 %v710, %v706
    %v1095 = vpack.c.b16 %v711, %v707
    %v1096 = vpack.c.b16 %v712, %v708
    %v1097 = vpack.c.b16 %v713, %v709
    %v1098 = vpack.c.b16 %v718, %v714
    %v1099 = vpack.c.b16 %v719, %v715
    %v1100 = vpack.c.b16 %v720, %v716
    %v1101 = vpack.c.b16 %v721, %v717
    %v1102 = vpack.c.b16 %v726, %v722
    %v1103 = vpack.c.b16 %v727, %v723
    %v1104 = vpack.c.b16 %v728, %v724
    %v1105 = vpack.c.b16 %v729, %v725
    %v1106 = vpack.c.b16 %v734, %v730
    %v1107 = vpack.c.b16 %v735, %v731
    %v1108 = vpack.c.b16 %v736, %v732
    %v1109 = vpack.c.b16 %v737, %v733
    %v1110 = vpack.c.b16 %v742, %v738
    %v1111 = vpack.c.b16 %v743, %v739
    %v1112 = vpack.c.b16 %v744, %v740
    %v1113 = vpack.c.b16 %v745, %v741
    %v1114 = vpack.c.b16 %v750, %v746
    %v1115 = vpack.c.b16 %v751, %v747
    %v1116 = vpack.c.b16 %v752, %v748
    %v1117 = vpack.c.b16 %v753, %v749
    %v1118 = vpack.c.b16 %v758, %v754
    %v1119 = vpack.c.b16 %v759, %v755
    %v1120 = vpack.c.b16 %v760, %v756
    %v1121 = vpack.c.b16 %v761, %v757
    %v1122 = vpack.c.b16 %v766, %v762
    %v1123 = vpack.c.b16 %v767, %v763
    %v1124 = vpack.c.b16 %v768, %v764
    %v1125 = vpack.c.b16 %v769, %v765
    %v1126 = vpack.c.b16 %v774, %v770
    %v1127 = vpack.c.b16 %v775, %v771
    %v1128 = vpack.c.b16 %v776, %v772
    %v1129 = vpack.c.b16 %v777, %v773
    %v1130 = vpack.c.b16 %v782, %v778
    %v1131 = vpack.c.b16 %v783, %v779
    %v1132 = vpack.c.b16 %v784, %v780
    %v1133 = vpack.c.b16 %v785, %v781
    %v1134 = vpack.c.b16 %v790, %v786
    %v1135 = vpack.c.b16 %v791, %v787
    %v1136 = vpack.c.b16 %v792, %v788
    %v1137 = vpack.c.b16 %v793, %v789
    %v1138 = vpack.c.b16 %v798, %v794
    %v1139 = vpack.c.b16 %v799, %v795
    %v1140 = vpack.c.b16 %v800, %v796
    %v1141 = vpack.c.b16 %v801, %v797
    %v1142 = vpack.c.b16 %v806, %v802
    %v1143 = vpack.c.b16 %v807, %v803
    %v1144 = vpack.c.b16 %v808, %v804
    %v1145 = vpack.c.b16 %v809, %v805
    %v1146 = vpack.c.b16 %v814, %v810
    %v1147 = vpack.c.b16 %v815, %v811
    %v1148 = vpack.c.b16 %v816, %v812
    %v1149 = vpack.c.b16 %v817, %v813
    %v1150 = vpack.c.b16 %v822, %v818
    %v1151 = vpack.c.b16 %v823, %v819
    %v1152 = vpack.c.b16 %v824, %v820
    %v1153 = vpack.c.b16 %v825, %v821
    %v1154 = vpack.c.b16 %v830, %v826
    %v1155 = vpack.c.b16 %v831, %v827
    %v1156 = vpack.c.b16 %v832, %v828
    %v1157 = vpack.c.b16 %v833, %v829
    %v1158 = vpack.c.b16 %v838, %v834
    %v1159 = vpack.c.b16 %v839, %v835
    %v1160 = vpack.c.b16 %v840, %v836
    %v1161 = vpack.c.b16 %v841, %v837
    %v1162 = vpack.c.b16 %v846, %v842
    %v1163 = vpack.c.b16 %v847, %v843
    %v1164 = vpack.c.b16 %v848, %v844
    %v1165 = vpack.c.b16 %v849, %v845
    %v1166 = vpack.c.b16 %v854, %v850
    %v1167 = vpack.c.b16 %v855, %v851
    %v1168 = vpack.c.b16 %v856, %v852
    %v1169 = vpack.c.b16 %v857, %v853
    %v1170 = vpack.c.b16 %v862, %v858
    %v1171 = vpack.c.b16 %v863, %v859
    %v1172 = vpack.c.b16 %v864, %v860
    %v1173 = vpack.c.b16 %v865, %v861
    %v1174 = vpack.c.b16 %v870, %v866
    %v1175 = vpack.c.b16 %v871, %v867
    %v1176 = vpack.c.b16 %v872, %v868
    %v1177 = vpack.c.b16 %v873, %v869
    %v1178 = vpack.c.b16 %v878, %v874
    %v1179 = vpack.c.b16 %v879, %v875
    %v1180 = vpack.c.b16 %v880, %v876
    %v1181 = vpack.c.b16 %v881, %v877
    %v1182 = vpack.c.b16 %v886, %v882
    %v1183 = vpack.c.b16 %v887, %v883
    %v1184 = vpack.c.b16 %v888, %v884
    %v1185 = vpack.c.b16 %v889, %v885
    %v1186 = vpack.c.b16 %v894, %v890
    %v1187 = vpack.c.b16 %v895, %v891
    %v1188 = vpack.c.b16 %v896, %v892
    %v1189 = vpack.c.b16 %v897, %v893
    %v1190 = vpack.c.b16 %v902, %v898
    %v1191 = vpack.c.b16 %v903, %v899
    %v1192 = vpack.c.b16 %v904, %v900
    %v1193 = vpack.c.b16 %v905, %v901
    %v1194 = vpack.c.b16 %v910, %v906
    %v1195 = vpack.c.b16 %v911, %v907
    %v1196 = vpack.c.b16 %v912, %v908
    %v1197 = vpack.c.b16 %v913, %v909
    %v1198 = vpack.c.b16 %v918, %v914
    %v1199 = vpack.c.b16 %v919, %v915
    %v1200 = vpack.c.b16 %v920, %v916
    %v1201 = vpack.c.b16 %v921, %v917
    %v1202 = vpack.c.b16 %v926, %v922
    %v1203 = vpack.c.b16 %v927, %v923
    %v1204 = vpack.c.b16 %v928, %v924
    %v1205 = vpack.c.b16 %v929, %v925
    %v1206 = vpack.c.b16 %v934, %v930
    %v1207 = vpack.c.b16 %v935, %v931
    %v1208 = vpack.c.b16 %v936, %v932
    %v1209 = vpack.c.b16 %v937, %v933
    %v1210 = vpack.c.b16 %v942, %v938
    %v1211 = vpack.c.b16 %v943, %v939
    %v1212 = vpack.c.b16 %v944, %v940
    %v1213 = vpack.c.b16 %v945, %v941
    %v1214 = vpack.c.b16 %v950, %v946
    %v1215 = vpack.c.b16 %v951, %v947
    %v1216 = vpack.c.b16 %v952, %v948
    %v1217 = vpack.c.b16 %v953, %v949
    %v1218 = vpack.c.b16 %v958, %v954
    %v1219 = vpack.c.b16 %v959, %v955
    %v1220 = vpack.c.b16 %v960, %v956
    %v1221 = vpack.c.b16 %v961, %v957
    %v1222 = vpack.c.b16 %v966, %v962
    %v1223 = vpack.c.b16 %v967, %v963
    %v1224 = vpack.c.b16 %v968, %v964
    %v1225 = vpack.c.b16 %v969, %v965
    %v1226 = vpack.c.b16 %v974, %v970
    %v1227 = vpack.c.b16 %v975, %v971
    %v1228 = vpack.c.b16 %v976, %v972
    %v1229 = vpack.c.b16 %v977, %v973
    %v1230 = vpack.c.b16 %v982, %v978
    %v1231 = vpack.c.b16 %v983, %v979
    %v1232 = vpack.c.b16 %v984, %v980
    %v1233 = vpack.c.b16 %v985, %v981
    %v1234 = vpack.c.b16 %v990, %v986
    %v1235 = vpack.c.b16 %v991, %v987
    %v1236 = vpack.c.b16 %v992, %v988
    %v1237 = vpack.c.b16 %v993, %v989
    %v1238 = vpack.c.b16 %v998, %v994
    %v1239 = vpack.c.b16 %v999, %v995
    %v1240 = vpack.c.b16 %v1000, %v996
    %v1241 = vpack.c.b16 %v1001, %v997
    %v1242 = vpack.c.b16 %v1006, %v1002
    %v1243 = vpack.c.b16 %v1007, %v1003
    %v1244 = vpack.c.b16 %v1008, %v1004
    %v1245 = vpack.c.b16 %v1009, %v1005
    %v1246 = vpack.c.b16 %v1014, %v1010
    %v1247 = vpack.c.b16 %v1015, %v1011
    %v1248 = vpack.c.b16 %v1016, %v1012
    %v1249 = vpack.c.b16 %v1017, %v1013
    %v1250 = vpack.c.b16 %v1022, %v1018
    %v1251 = vpack.c.b16 %v1023, %v1019
    %v1252 = vpack.c.b16 %v1024, %v1020
    %v1253 = vpack.c.b16 %v1025, %v1021
    %v1254 = vpack.c.b16 %v1030, %v1026
    %v1255 = vpack.c.b16 %v1031, %v1027
    %v1256 = vpack.c.b16 %v1032, %v1028
    %v1257 = vpack.c.b16 %v1033, %v1029
    %v1258 = vpack.c.b16 %v1038, %v1034
    %v1259 = vpack.c.b16 %v1039, %v1035
    %v1260 = vpack.c.b16 %v1040, %v1036
    %v1261 = vpack.c.b16 %v1041, %v1037
    %v1262 = vpack.c.b16 %v1046, %v1042
    %v1263 = vpack.c.b16 %v1047, %v1043
    %v1264 = vpack.c.b16 %v1048, %v1044
    %v1265 = vpack.c.b16 %v1049, %v1045
    %v1266 = vpack.c.b16 %v1054, %v1050
    %v1267 = vpack.c.b16 %v1055, %v1051
    %v1268 = vpack.c.b16 %v1056, %v1052
    %v1269 = vpack.c.b16 %v1057, %v1053
    %v1270 = vpack.c.b16 %v1062, %v1058
    %v1271 = vpack.c.b16 %v1063, %v1059
    %v1272 = vpack.c.b16 %v1064, %v1060
    %v1273 = vpack.c.b16 %v1065, %v1061
    %v1274 = vpack.c.b16 %v1070, %v1066
    %v1275 = vpack.c.b16 %v1071, %v1067
    %v1276 = vpack.c.b16 %v1072, %v1068
    %v1277 = vpack.c.b16 %v1073, %v1069
    %v1278 = vpack.c.b16 %v1078, %v1074
    %v1279 = vpack.c.b16 %v1079, %v1075
    %v1280 = vpack.c.b16 %v1080, %v1076
    %v1281 = vpack.c.b16 %v1081, %v1077
    %v1282 = vpack.c.b16 %v1086, %v1082
    %v1283 = vpack.c.b16 %v1087, %v1083
    %v1284 = vpack.c.b16 %v1088, %v1084
    %v1285 = vpack.c.b16 %v1089, %v1085
    %vm1482 = vcmask 130048
    %v1484 = vsel %vm1482, %v234, 0
    %v1487 = vsel %vm1482, %v241, 0
    %v1490 = vsel %vm1482, %v248, 0
    %v1493 = vsel %vm1482, %v255, 0
    %v1496 = vsel %vm1482, %v262, 0
    %v1499 = vsel %vm1482, %v269, 0
    %v1502 = vsel %vm1482, %v276, 0
    %v1505 = vsel %vm1482, %v283, 0
    %1507 = vmatprep.subr.bf16.mxu0 %v1091
    %1508 = vmatpush1.bf16.msra.mxu0 %v1090
    %1509 = vmatprep.subr.bf16.mxu0 %v1095
    %1510 = vmatpush1.bf16.msra.mxu0 %v1094
    %1511 = vmatprep.subr.bf16.mxu0 %v1099
    %1512 = vmatpush1.bf16.msra.mxu0 %v1098
    %1513 = vmatprep.subr.bf16.mxu0 %v1103
    %1514 = vmatpush1.bf16.msra.mxu0 %v1102
    %1515 = vmatprep.subr.bf16.mxu0 %v1107
    %1516 = vmatpush1.bf16.msra.mxu0 %v1106
    %1517 = vmatprep.subr.bf16.mxu0 %v1111
    %1518 = vmatpush1.bf16.msra.mxu0 %v1110
    %1519 = vmatprep.subr.bf16.mxu0 %v1115
    %1520 = vmatpush1.bf16.msra.mxu0 %v1114
    %1521 = vmatprep.subr.bf16.mxu0 %v1119
    %1522 = vmatpush1.bf16.msra.mxu0 %v1118
    %1523 = vmatprep.subr.bf16.mxu0 %v1123
    %1524 = vmatpush1.bf16.msra.mxu0 %v1122
    %1525 = vmatprep.subr.bf16.mxu0 %v1127
    %1526 = vmatpush1.bf16.msra.mxu0 %v1126
    %1527 = vmatprep.subr.bf16.mxu0 %v1131
    %1528 = vmatpush1.bf16.msra.mxu0 %v1130
    %1529 = vmatprep.subr.bf16.mxu0 %v1135
    %1530 = vmatpush1.bf16.msra.mxu0 %v1134
    %1531 = vmatprep.subr.bf16.mxu0 %v1139
    %1532 = vmatpush1.bf16.msra.mxu0 %v1138
    %1533 = vmatprep.subr.bf16.mxu0 %v1143
    %1534 = vmatpush1.bf16.msra.mxu0 %v1142
    %1535 = vmatprep.subr.bf16.mxu0 %v1147
    %1536 = vmatpush1.bf16.msra.mxu0 %v1146
    %1537 = vmatprep.subr.bf16.mxu0 %v1151
    %1538 = vmatpush1.bf16.msra.mxu0 %v1150
    %1539 = vmatprep.mubr.bf16.mxu0 %v229
    %1540 = vmatmul.mubr.bf16.gmra.mrb[0].mxu0 %v228
    %v1541 = vpop.f32.mrb[0].mxu0
    %v1542 = vadd.f32 %v485, %v1541
    %v1543 = vpop.f32.mrb[0].mxu0
    %v1544 = vadd.f32 %v489, %v1543
    %v1545 = vpop.f32.mrb[0].mxu0
    %v1546 = vadd.f32 %v485, %v1545
    %v1547 = vpop.f32.mrb[0].mxu0
    %v1548 = vadd.f32 %v489, %v1547
    %1549 = vmatprep.mubr.bf16.mxu0 %v236
    %1550 = vmatmul.mubr.bf16.gmra.mrb[0].mxu0 %v235
    %v1551 = vpop.f32.mrb[0].mxu0
    %v1552 = vadd.f32 %v485, %v1551
    %v1553 = vpop.f32.mrb[0].mxu0
    %v1554 = vadd.f32 %v489, %v1553
    %v1555 = vpop.f32.mrb[0].mxu0
    %v1556 = vadd.f32 %v485, %v1555
    %v1557 = vpop.f32.mrb[0].mxu0
    %v1558 = vadd.f32 %v489, %v1557
    %1559 = vmatprep.mubr.bf16.mxu0 %v243
    %1560 = vmatmul.mubr.bf16.gmra.mrb[0].mxu0 %v242
    %v1561 = vpop.f32.mrb[0].mxu0
    %v1562 = vadd.f32 %v485, %v1561
    %v1563 = vpop.f32.mrb[0].mxu0
    %v1564 = vadd.f32 %v489, %v1563
    %v1565 = vpop.f32.mrb[0].mxu0
    %v1566 = vadd.f32 %v485, %v1565
    %v1567 = vpop.f32.mrb[0].mxu0
    %v1568 = vadd.f32 %v489, %v1567
    %1569 = vmatprep.mubr.bf16.mxu0 %v250
    %1570 = vmatmul.mubr.bf16.gmra.mrb[0].mxu0 %v249
    %v1571 = vpop.f32.mrb[0].mxu0
    %v1572 = vadd.f32 %v485, %v1571
    %v1573 = vpop.f32.mrb[0].mxu0
    %v1574 = vadd.f32 %v489, %v1573
    %v1575 = vpop.f32.mrb[0].mxu0
    %v1576 = vadd.f32 %v485, %v1575
    %v1577 = vpop.f32.mrb[0].mxu0
    %v1578 = vadd.f32 %v489, %v1577
    %1579 = vmatprep.mubr.bf16.mxu0 %v257
    %1580 = vmatmul.mubr.bf16.gmra.mrb[0].mxu0 %v256
    %v1581 = vpop.f32.mrb[0].mxu0
    %v1582 = vadd.f32 %v485, %v1581
    %v1583 = vpop.f32.mrb[0].mxu0
    %v1584 = vadd.f32 %v489, %v1583
    %v1585 = vpop.f32.mrb[0].mxu0
    %v1586 = vadd.f32 %v485, %v1585
    %v1587 = vpop.f32.mrb[0].mxu0
    %v1588 = vadd.f32 %v489, %v1587
    %1589 = vmatprep.mubr.bf16.mxu0 %v264
    %1590 = vmatmul.mubr.bf16.gmra.mrb[0].mxu0 %v263
    %v1591 = vpop.f32.mrb[0].mxu0
    %v1592 = vadd.f32 %v485, %v1591
    %v1593 = vpop.f32.mrb[0].mxu0
    %v1594 = vadd.f32 %v489, %v1593
    %v1595 = vpop.f32.mrb[0].mxu0
    %v1596 = vadd.f32 %v485, %v1595
    %v1597 = vpop.f32.mrb[0].mxu0
    %v1598 = vadd.f32 %v489, %v1597
    %1599 = vmatprep.mubr.bf16.mxu0 %v271
    %1600 = vmatmul.mubr.bf16.gmra.mrb[0].mxu0 %v270
    %v1601 = vpop.f32.mrb[0].mxu0
    %v1602 = vadd.f32 %v485, %v1601
    %v1603 = vpop.f32.mrb[0].mxu0
    %v1604 = vadd.f32 %v489, %v1603
    %v1605 = vpop.f32.mrb[0].mxu0
    %v1606 = vadd.f32 %v485, %v1605
    %v1607 = vpop.f32.mrb[0].mxu0
    %v1608 = vadd.f32 %v489, %v1607
    %1609 = vmatprep.mubr.bf16.mxu0 %v278
    %1610 = vmatmul.mubr.bf16.gmra.mrb[0].mxu0 %v277
    %v1611 = vpop.f32.mrb[0].mxu0
    %v1612 = vadd.f32 %v485, %v1611
    %v1613 = vpop.f32.mrb[0].mxu0
    %v1614 = vadd.f32 %v489, %v1613
    %v1615 = vpop.f32.mrb[0].mxu0
    %v1616 = vadd.f32 %v485, %v1615
    %v1617 = vpop.f32.mrb[0].mxu0
    %v1618 = vadd.f32 %v489, %v1617
    %1619 = vdwg.mxu0
    %1620 = vmatprep.subr.bf16.mxu0 %v1155
    %1621 = vmatpush1.bf16.msra.mxu0 %v1154
    %1622 = vmatprep.subr.bf16.mxu0 %v1159
    %1623 = vmatpush1.bf16.msra.mxu0 %v1158
    %1624 = vmatprep.subr.bf16.mxu0 %v1163
    %1625 = vmatpush1.bf16.msra.mxu0 %v1162
    %1626 = vmatprep.subr.bf16.mxu0 %v1167
    %1627 = vmatpush1.bf16.msra.mxu0 %v1166
    %1628 = vmatprep.subr.bf16.mxu0 %v1171
    %1629 = vmatpush1.bf16.msra.mxu0 %v1170
    %1630 = vmatprep.subr.bf16.mxu0 %v1175
    %1631 = vmatpush1.bf16.msra.mxu0 %v1174
    %1632 = vmatprep.subr.bf16.mxu0 %v1179
    %1633 = vmatpush1.bf16.msra.mxu0 %v1178
    %1634 = vmatprep.subr.bf16.mxu0 %v1183
    %1635 = vmatpush1.bf16.msra.mxu0 %v1182
    %1636 = vmatprep.subr.bf16.mxu0 %v1187
    %1637 = vmatpush1.bf16.msra.mxu0 %v1186
    %1638 = vmatprep.subr.bf16.mxu0 %v1191
    %1639 = vmatpush1.bf16.msra.mxu0 %v1190
    %1640 = vmatprep.subr.bf16.mxu0 %v1195
    %1641 = vmatpush1.bf16.msra.mxu0 %v1194
    %1642 = vmatprep.subr.bf16.mxu0 %v1199
    %1643 = vmatpush1.bf16.msra.mxu0 %v1198
    %1644 = vmatprep.subr.bf16.mxu0 %v1203
    %1645 = vmatpush1.bf16.msra.mxu0 %v1202
    %1646 = vmatprep.subr.bf16.mxu0 %v1207
    %1647 = vmatpush1.bf16.msra.mxu0 %v1206
    %1648 = vmatprep.subr.bf16.mxu0 %v1211
    %1649 = vmatpush1.bf16.msra.mxu0 %v1210
    %1650 = vmatprep.subr.bf16.mxu0 %v1215
    %1651 = vmatpush1.bf16.msra.mxu0 %v1214
    %1652 = vmatprep.mubr.bf16.mxu0 %v231
    %1653 = vmatmul.mubr.bf16.gmra.mrb[0].mxu0 %v230
    %v1654 = vpop.f32.mrb[0].mxu0
    %v1655 = vadd.f32 %v1542, %v1654
    %v1656 = vpop.f32.mrb[0].mxu0
    %v1657 = vadd.f32 %v1544, %v1656
    %v1658 = vpop.f32.mrb[0].mxu0
    %v1659 = vadd.f32 %v1546, %v1658
    %v1660 = vpop.f32.mrb[0].mxu0
    %v1661 = vadd.f32 %v1548, %v1660
    %1662 = vmatprep.mubr.bf16.mxu0 %v238
    %1663 = vmatmul.mubr.bf16.gmra.mrb[0].mxu0 %v237
    %v1664 = vpop.f32.mrb[0].mxu0
    %v1665 = vadd.f32 %v1552, %v1664
    %v1666 = vpop.f32.mrb[0].mxu0
    %v1667 = vadd.f32 %v1554, %v1666
    %v1668 = vpop.f32.mrb[0].mxu0
    %v1669 = vadd.f32 %v1556, %v1668
    %v1670 = vpop.f32.mrb[0].mxu0
    %v1671 = vadd.f32 %v1558, %v1670
    %1672 = vmatprep.mubr.bf16.mxu0 %v245
    %1673 = vmatmul.mubr.bf16.gmra.mrb[0].mxu0 %v244
    %v1674 = vpop.f32.mrb[0].mxu0
    %v1675 = vadd.f32 %v1562, %v1674
    %v1676 = vpop.f32.mrb[0].mxu0
    %v1677 = vadd.f32 %v1564, %v1676
    %v1678 = vpop.f32.mrb[0].mxu0
    %v1679 = vadd.f32 %v1566, %v1678
    %v1680 = vpop.f32.mrb[0].mxu0
    %v1681 = vadd.f32 %v1568, %v1680
    %1682 = vmatprep.mubr.bf16.mxu0 %v252
    %1683 = vmatmul.mubr.bf16.gmra.mrb[0].mxu0 %v251
    %v1684 = vpop.f32.mrb[0].mxu0
    %v1685 = vadd.f32 %v1572, %v1684
    %v1686 = vpop.f32.mrb[0].mxu0
    %v1687 = vadd.f32 %v1574, %v1686
    %v1688 = vpop.f32.mrb[0].mxu0
    %v1689 = vadd.f32 %v1576, %v1688
    %v1690 = vpop.f32.mrb[0].mxu0
    %v1691 = vadd.f32 %v1578, %v1690
    %1692 = vmatprep.mubr.bf16.mxu0 %v259
    %1693 = vmatmul.mubr.bf16.gmra.mrb[0].mxu0 %v258
    %v1694 = vpop.f32.mrb[0].mxu0
    %v1695 = vadd.f32 %v1582, %v1694
    %v1696 = vpop.f32.mrb[0].mxu0
    %v1697 = vadd.f32 %v1584, %v1696
    %v1698 = vpop.f32.mrb[0].mxu0
    %v1699 = vadd.f32 %v1586, %v1698
    %v1700 = vpop.f32.mrb[0].mxu0
    %v1701 = vadd.f32 %v1588, %v1700
    %1702 = vmatprep.mubr.bf16.mxu0 %v266
    %1703 = vmatmul.mubr.bf16.gmra.mrb[0].mxu0 %v265
    %v1704 = vpop.f32.mrb[0].mxu0
    %v1705 = vadd.f32 %v1592, %v1704
    %v1706 = vpop.f32.mrb[0].mxu0
    %v1707 = vadd.f32 %v1594, %v1706
    %v1708 = vpop.f32.mrb[0].mxu0
    %v1709 = vadd.f32 %v1596, %v1708
    %v1710 = vpop.f32.mrb[0].mxu0
    %v1711 = vadd.f32 %v1598, %v1710
    %1712 = vmatprep.mubr.bf16.mxu0 %v273
    %1713 = vmatmul.mubr.bf16.gmra.mrb[0].mxu0 %v272
    %v1714 = vpop.f32.mrb[0].mxu0
    %v1715 = vadd.f32 %v1602, %v1714
    %v1716 = vpop.f32.mrb[0].mxu0
    %v1717 = vadd.f32 %v1604, %v1716
    %v1718 = vpop.f32.mrb[0].mxu0
    %v1719 = vadd.f32 %v1606, %v1718
    %v1720 = vpop.f32.mrb[0].mxu0
    %v1721 = vadd.f32 %v1608, %v1720
    %1722 = vmatprep.mubr.bf16.mxu0 %v280
    %1723 = vmatmul.mubr.bf16.gmra.mrb[0].mxu0 %v279
    %v1724 = vpop.f32.mrb[0].mxu0
    %v1725 = vadd.f32 %v1612, %v1724
    %v1726 = vpop.f32.mrb[0].mxu0
    %v1727 = vadd.f32 %v1614, %v1726
    %v1728 = vpop.f32.mrb[0].mxu0
    %v1729 = vadd.f32 %v1616, %v1728
    %v1730 = vpop.f32.mrb[0].mxu0
    %v1731 = vadd.f32 %v1618, %v1730
    %1732 = vdwg.mxu0
    %1733 = vmatprep.subr.bf16.mxu0 %v1219
    %1734 = vmatpush1.bf16.msra.mxu0 %v1218
    %1735 = vmatprep.subr.bf16.mxu0 %v1223
    %1736 = vmatpush1.bf16.msra.mxu0 %v1222
    %1737 = vmatprep.subr.bf16.mxu0 %v1227
    %1738 = vmatpush1.bf16.msra.mxu0 %v1226
    %1739 = vmatprep.subr.bf16.mxu0 %v1231
    %1740 = vmatpush1.bf16.msra.mxu0 %v1230
    %1741 = vmatprep.subr.bf16.mxu0 %v1235
    %1742 = vmatpush1.bf16.msra.mxu0 %v1234
    %1743 = vmatprep.subr.bf16.mxu0 %v1239
    %1744 = vmatpush1.bf16.msra.mxu0 %v1238
    %1745 = vmatprep.subr.bf16.mxu0 %v1243
    %1746 = vmatpush1.bf16.msra.mxu0 %v1242
    %1747 = vmatprep.subr.bf16.mxu0 %v1247
    %1748 = vmatpush1.bf16.msra.mxu0 %v1246
    %1749 = vmatprep.subr.bf16.mxu0 %v1251
    %1750 = vmatpush1.bf16.msra.mxu0 %v1250
    %1751 = vmatprep.subr.bf16.mxu0 %v1255
    %1752 = vmatpush1.bf16.msra.mxu0 %v1254
    %1753 = vmatprep.subr.bf16.mxu0 %v1259
    %1754 = vmatpush1.bf16.msra.mxu0 %v1258
    %1755 = vmatprep.subr.bf16.mxu0 %v1263
    %1756 = vmatpush1.bf16.msra.mxu0 %v1262
    %1757 = vmatprep.subr.bf16.mxu0 %v1267
    %1758 = vmatpush1.bf16.msra.mxu0 %v1266
    %1759 = vmatprep.subr.bf16.mxu0 %v1271
    %1760 = vmatpush1.bf16.msra.mxu0 %v1270
    %1761 = vmatprep.subr.bf16.mxu0 %v1275
    %1762 = vmatpush1.bf16.msra.mxu0 %v1274
    %1763 = vmatprep.subr.bf16.mxu0 %v1279
    %1764 = vmatpush1.bf16.msra.mxu0 %v1278
    %1765 = vmatprep.mubr.bf16.mxu0 %v233
    %1766 = vmatmul.mubr.bf16.gmra.mrb[0].mxu0 %v232
    %v1767 = vpop.f32.mrb[0].mxu0
    %v1768 = vadd.f32 %v1655, %v1767
    %v1769 = vpop.f32.mrb[0].mxu0
    %v1770 = vadd.f32 %v1657, %v1769
    %v1771 = vpop.f32.mrb[0].mxu0
    %v1772 = vadd.f32 %v1659, %v1771
    %v1773 = vpop.f32.mrb[0].mxu0
    %v1774 = vadd.f32 %v1661, %v1773
    %1775 = vmatprep.mubr.bf16.mxu0 %v240
    %1776 = vmatmul.mubr.bf16.gmra.mrb[0].mxu0 %v239
    %v1777 = vpop.f32.mrb[0].mxu0
    %v1778 = vadd.f32 %v1665, %v1777
    %v1779 = vpop.f32.mrb[0].mxu0
    %v1780 = vadd.f32 %v1667, %v1779
    %v1781 = vpop.f32.mrb[0].mxu0
    %v1782 = vadd.f32 %v1669, %v1781
    %v1783 = vpop.f32.mrb[0].mxu0
    %v1784 = vadd.f32 %v1671, %v1783
    %1785 = vmatprep.mubr.bf16.mxu0 %v247
    %1786 = vmatmul.mubr.bf16.gmra.mrb[0].mxu0 %v246
    %v1787 = vpop.f32.mrb[0].mxu0
    %v1788 = vadd.f32 %v1675, %v1787
    %v1789 = vpop.f32.mrb[0].mxu0
    %v1790 = vadd.f32 %v1677, %v1789
    %v1791 = vpop.f32.mrb[0].mxu0
    %v1792 = vadd.f32 %v1679, %v1791
    %v1793 = vpop.f32.mrb[0].mxu0
    %v1794 = vadd.f32 %v1681, %v1793
    %1795 = vmatprep.mubr.bf16.mxu0 %v254
    %1796 = vmatmul.mubr.bf16.gmra.mrb[0].mxu0 %v253
    %v1797 = vpop.f32.mrb[0].mxu0
    %v1798 = vadd.f32 %v1685, %v1797
    %v1799 = vpop.f32.mrb[0].mxu0
    %v1800 = vadd.f32 %v1687, %v1799
    %v1801 = vpop.f32.mrb[0].mxu0
    %v1802 = vadd.f32 %v1689, %v1801
    %v1803 = vpop.f32.mrb[0].mxu0
    %v1804 = vadd.f32 %v1691, %v1803
    %1805 = vmatprep.mubr.bf16.mxu0 %v261
    %1806 = vmatmul.mubr.bf16.gmra.mrb[0].mxu0 %v260
    %v1807 = vpop.f32.mrb[0].mxu0
    %v1808 = vadd.f32 %v1695, %v1807
    %v1809 = vpop.f32.mrb[0].mxu0
    %v1810 = vadd.f32 %v1697, %v1809
    %v1811 = vpop.f32.mrb[0].mxu0
    %v1812 = vadd.f32 %v1699, %v1811
    %v1813 = vpop.f32.mrb[0].mxu0
    %v1814 = vadd.f32 %v1701, %v1813
    %1815 = vmatprep.mubr.bf16.mxu0 %v268
    %1816 = vmatmul.mubr.bf16.gmra.mrb[0].mxu0 %v267
    %v1817 = vpop.f32.mrb[0].mxu0
    %v1818 = vadd.f32 %v1705, %v1817
    %v1819 = vpop.f32.mrb[0].mxu0
    %v1820 = vadd.f32 %v1707, %v1819
    %v1821 = vpop.f32.mrb[0].mxu0
    %v1822 = vadd.f32 %v1709, %v1821
    %v1823 = vpop.f32.mrb[0].mxu0
    %v1824 = vadd.f32 %v1711, %v1823
    %1825 = vmatprep.mubr.bf16.mxu0 %v275
    %1826 = vmatmul.mubr.bf16.gmra.mrb[0].mxu0 %v274
    %v1827 = vpop.f32.mrb[0].mxu0
    %v1828 = vadd.f32 %v1715, %v1827
    %v1829 = vpop.f32.mrb[0].mxu0
    %v1830 = vadd.f32 %v1717, %v1829
    %v1831 = vpop.f32.mrb[0].mxu0
    %v1832 = vadd.f32 %v1719, %v1831
    %v1833 = vpop.f32.mrb[0].mxu0
    %v1834 = vadd.f32 %v1721, %v1833
    %1835 = vmatprep.mubr.bf16.mxu0 %v282
    %1836 = vmatmul.mubr.bf16.gmra.mrb[0].mxu0 %v281
    %v1837 = vpop.f32.mrb[0].mxu0
    %v1838 = vadd.f32 %v1725, %v1837
    %v1839 = vpop.f32.mrb[0].mxu0
    %v1840 = vadd.f32 %v1727, %v1839
    %v1841 = vpop.f32.mrb[0].mxu0
    %v1842 = vadd.f32 %v1729, %v1841
    %v1843 = vpop.f32.mrb[0].mxu0
    %v1844 = vadd.f32 %v1731, %v1843
    %1845 = vdwg.mxu0
    %1846 = vmatprep.subr.bf16.mxu0 %v1283
    %1847 = vmatpush1.bf16.msra.mxu0 %v1282
    %1848 = vmatprep.subr.bf16.mxu0 0
    %1849 = vmatpush1.bf16.msra.mxu0 0
    %1850 = vmatprep.subr.bf16.mxu0 0
    %1851 = vmatpush1.bf16.msra.mxu0 0
    %1852 = vmatprep.subr.bf16.mxu0 0
    %1853 = vmatpush1.bf16.msra.mxu0 0
    %1854 = vmatprep.subr.bf16.mxu0 0
    %1855 = vmatpush1.bf16.msra.mxu0 0
    %1856 = vmatprep.subr.bf16.mxu0 0
    %1857 = vmatpush1.bf16.msra.mxu0 0
    %1858 = vmatprep.subr.bf16.mxu0 0
    %1859 = vmatpush1.bf16.msra.mxu0 0
    %1860 = vmatprep.subr.bf16.mxu0 0
    %1861 = vmatpush1.bf16.msra.mxu0 0
    %1862 = vmatprep.subr.bf16.mxu0 0
    %1863 = vmatpush1.bf16.msra.mxu0 0
    %1864 = vmatprep.subr.bf16.mxu0 0
    %1865 = vmatpush1.bf16.msra.mxu0 0
    %1866 = vmatprep.subr.bf16.mxu0 0
    %1867 = vmatpush1.bf16.msra.mxu0 0
    %1868 = vmatprep.subr.bf16.mxu0 0
    %1869 = vmatpush1.bf16.msra.mxu0 0
    %1870 = vmatprep.subr.bf16.mxu0 0
    %1871 = vmatpush1.bf16.msra.mxu0 0
    %1872 = vmatprep.subr.bf16.mxu0 0
    %1873 = vmatpush1.bf16.msra.mxu0 0
    %1874 = vmatprep.subr.bf16.mxu0 0
    %1875 = vmatpush1.bf16.msra.mxu0 0
    %1876 = vmatprep.subr.bf16.mxu0 0
    %1877 = vmatpush1.bf16.msra.mxu0 0
    %1878 = vmatprep.mubr.bf16.mxu0 0
    %1879 = vmatmul.mubr.bf16.gmra.mrb[0].mxu0 %v1484
    %v1880 = vpop.f32.mrb[0].mxu0
    %v1881 = vadd.f32 %v1768, %v1880
    %v1882 = vpop.f32.mrb[0].mxu0
    %v1883 = vadd.f32 %v1770, %v1882
    %v1884 = vpop.f32.mrb[0].mxu0
    %v1885 = vadd.f32 %v1772, %v1884
    %v1886 = vpop.f32.mrb[0].mxu0
    %v1887 = vadd.f32 %v1774, %v1886
    %1888 = vmatprep.mubr.bf16.mxu0 0
    %1889 = vmatmul.mubr.bf16.gmra.mrb[0].mxu0 %v1487
    %v1890 = vpop.f32.mrb[0].mxu0
    %v1891 = vadd.f32 %v1778, %v1890
    %v1892 = vpop.f32.mrb[0].mxu0
    %v1893 = vadd.f32 %v1780, %v1892
    %v1894 = vpop.f32.mrb[0].mxu0
    %v1895 = vadd.f32 %v1782, %v1894
    %v1896 = vpop.f32.mrb[0].mxu0
    %v1897 = vadd.f32 %v1784, %v1896
    %1898 = vmatprep.mubr.bf16.mxu0 0
    %1899 = vmatmul.mubr.bf16.gmra.mrb[0].mxu0 %v1490
    %v1900 = vpop.f32.mrb[0].mxu0
    %v1901 = vadd.f32 %v1788, %v1900
    %v1902 = vpop.f32.mrb[0].mxu0
    %v1903 = vadd.f32 %v1790, %v1902
    %v1904 = vpop.f32.mrb[0].mxu0
    %v1905 = vadd.f32 %v1792, %v1904
    %v1906 = vpop.f32.mrb[0].mxu0
    %v1907 = vadd.f32 %v1794, %v1906
    %1908 = vmatprep.mubr.bf16.mxu0 0
    %1909 = vmatmul.mubr.bf16.gmra.mrb[0].mxu0 %v1493
    %v1910 = vpop.f32.mrb[0].mxu0
    %v1911 = vadd.f32 %v1798, %v1910
    %v1912 = vpop.f32.mrb[0].mxu0
    %v1913 = vadd.f32 %v1800, %v1912
    %v1914 = vpop.f32.mrb[0].mxu0
    %v1915 = vadd.f32 %v1802, %v1914
    %v1916 = vpop.f32.mrb[0].mxu0
    %v1917 = vadd.f32 %v1804, %v1916
    %1918 = vmatprep.mubr.bf16.mxu0 0
    %1919 = vmatmul.mubr.bf16.gmra.mrb[0].mxu0 %v1496
    %v1920 = vpop.f32.mrb[0].mxu0
    %v1921 = vadd.f32 %v1808, %v1920
    %v1922 = vpop.f32.mrb[0].mxu0
    %v1923 = vadd.f32 %v1810, %v1922
    %v1924 = vpop.f32.mrb[0].mxu0
    %v1925 = vadd.f32 %v1812, %v1924
    %v1926 = vpop.f32.mrb[0].mxu0
    %v1927 = vadd.f32 %v1814, %v1926
    %1928 = vmatprep.mubr.bf16.mxu0 0
    %1929 = vmatmul.mubr.bf16.gmra.mrb[0].mxu0 %v1499
    %v1930 = vpop.f32.mrb[0].mxu0
    %v1931 = vadd.f32 %v1818, %v1930
    %v1932 = vpop.f32.mrb[0].mxu0
    %v1933 = vadd.f32 %v1820, %v1932
    %v1934 = vpop.f32.mrb[0].mxu0
    %v1935 = vadd.f32 %v1822, %v1934
    %v1936 = vpop.f32.mrb[0].mxu0
    %v1937 = vadd.f32 %v1824, %v1936
    %1938 = vmatprep.mubr.bf16.mxu0 0
    %1939 = vmatmul.mubr.bf16.gmra.mrb[0].mxu0 %v1502
    %v1940 = vpop.f32.mrb[0].mxu0
    %v1941 = vadd.f32 %v1828, %v1940
    %v1942 = vpop.f32.mrb[0].mxu0
    %v1943 = vadd.f32 %v1830, %v1942
    %v1944 = vpop.f32.mrb[0].mxu0
    %v1945 = vadd.f32 %v1832, %v1944
    %v1946 = vpop.f32.mrb[0].mxu0
    %v1947 = vadd.f32 %v1834, %v1946
    %1948 = vmatprep.mubr.bf16.mxu0 0
    %1949 = vmatmul.mubr.bf16.gmra.mrb[0].mxu0 %v1505
    %v1950 = vpop.f32.mrb[0].mxu0
    %v1951 = vadd.f32 %v1838, %v1950
    %v1952 = vpop.f32.mrb[0].mxu0
    %v1953 = vadd.f32 %v1840, %v1952
    %v1954 = vpop.f32.mrb[0].mxu0
    %v1955 = vadd.f32 %v1842, %v1954
    %v1956 = vpop.f32.mrb[0].mxu0
    %v1957 = vadd.f32 %v1844, %v1956
    %1958 = vdwg.mxu0
    %1959 = vmatprep.subr.bf16.mxu0 %v1093
    %1960 = vmatpush1.bf16.msra.mxu0 %v1092
    %1961 = vmatprep.subr.bf16.mxu0 %v1097
    %1962 = vmatpush1.bf16.msra.mxu0 %v1096
    %1963 = vmatprep.subr.bf16.mxu0 %v1101
    %1964 = vmatpush1.bf16.msra.mxu0 %v1100
    %1965 = vmatprep.subr.bf16.mxu0 %v1105
    %1966 = vmatpush1.bf16.msra.mxu0 %v1104
    %1967 = vmatprep.subr.bf16.mxu0 %v1109
    %1968 = vmatpush1.bf16.msra.mxu0 %v1108
    %1969 = vmatprep.subr.bf16.mxu0 %v1113
    %1970 = vmatpush1.bf16.msra.mxu0 %v1112
    %1971 = vmatprep.subr.bf16.mxu0 %v1117
    %1972 = vmatpush1.bf16.msra.mxu0 %v1116
    %1973 = vmatprep.subr.bf16.mxu0 %v1121
    %1974 = vmatpush1.bf16.msra.mxu0 %v1120
    %1975 = vmatprep.subr.bf16.mxu0 %v1125
    %1976 = vmatpush1.bf16.msra.mxu0 %v1124
    %1977 = vmatprep.subr.bf16.mxu0 %v1129
    %1978 = vmatpush1.bf16.msra.mxu0 %v1128
    %1979 = vmatprep.subr.bf16.mxu0 %v1133
    %1980 = vmatpush1.bf16.msra.mxu0 %v1132
    %1981 = vmatprep.subr.bf16.mxu0 %v1137
    %1982 = vmatpush1.bf16.msra.mxu0 %v1136
    %1983 = vmatprep.subr.bf16.mxu0 %v1141
    %1984 = vmatpush1.bf16.msra.mxu0 %v1140
    %1985 = vmatprep.subr.bf16.mxu0 %v1145
    %1986 = vmatpush1.bf16.msra.mxu0 %v1144
    %1987 = vmatprep.subr.bf16.mxu0 %v1149
    %1988 = vmatpush1.bf16.msra.mxu0 %v1148
    %1989 = vmatprep.subr.bf16.mxu0 %v1153
    %1990 = vmatpush1.bf16.msra.mxu0 %v1152
    %1991 = vmatprep.mubr.bf16.mxu0 %v229
    %1992 = vmatmul.mubr.bf16.gmra.mrb[0].mxu0 %v228
    %v1993 = vpop.f32.mrb[0].mxu0
    %v1994 = vadd.f32 %v493, %v1993
    %v1995 = vpop.f32.mrb[0].mxu0
    %v1996 = vadd.f32 %v497, %v1995
    %v1997 = vpop.f32.mrb[0].mxu0
    %v1998 = vadd.f32 %v493, %v1997
    %v1999 = vpop.f32.mrb[0].mxu0
    %v2000 = vadd.f32 %v497, %v1999
    %2001 = vmatprep.mubr.bf16.mxu0 %v236
    %2002 = vmatmul.mubr.bf16.gmra.mrb[0].mxu0 %v235
    %v2003 = vpop.f32.mrb[0].mxu0
    %v2004 = vadd.f32 %v493, %v2003
    %v2005 = vpop.f32.mrb[0].mxu0
    %v2006 = vadd.f32 %v497, %v2005
    %v2007 = vpop.f32.mrb[0].mxu0
    %v2008 = vadd.f32 %v493, %v2007
    %v2009 = vpop.f32.mrb[0].mxu0
    %v2010 = vadd.f32 %v497, %v2009
    %2011 = vmatprep.mubr.bf16.mxu0 %v243
    %2012 = vmatmul.mubr.bf16.gmra.mrb[0].mxu0 %v242
    %v2013 = vpop.f32.mrb[0].mxu0
    %v2014 = vadd.f32 %v493, %v2013
    %v2015 = vpop.f32.mrb[0].mxu0
    %v2016 = vadd.f32 %v497, %v2015
    %v2017 = vpop.f32.mrb[0].mxu0
    %v2018 = vadd.f32 %v493, %v2017
    %v2019 = vpop.f32.mrb[0].mxu0
    %v2020 = vadd.f32 %v497, %v2019
    %2021 = vmatprep.mubr.bf16.mxu0 %v250
    %2022 = vmatmul.mubr.bf16.gmra.mrb[0].mxu0 %v249
    %v2023 = vpop.f32.mrb[0].mxu0
    %v2024 = vadd.f32 %v493, %v2023
    %v2025 = vpop.f32.mrb[0].mxu0
    %v2026 = vadd.f32 %v497, %v2025
    %v2027 = vpop.f32.mrb[0].mxu0
    %v2028 = vadd.f32 %v493, %v2027
    %v2029 = vpop.f32.mrb[0].mxu0
    %v2030 = vadd.f32 %v497, %v2029
    %2031 = vmatprep.mubr.bf16.mxu0 %v257
    %2032 = vmatmul.mubr.bf16.gmra.mrb[0].mxu0 %v256
    %v2033 = vpop.f32.mrb[0].mxu0
    %v2034 = vadd.f32 %v493, %v2033
    %v2035 = vpop.f32.mrb[0].mxu0
    %v2036 = vadd.f32 %v497, %v2035
    %v2037 = vpop.f32.mrb[0].mxu0
    %v2038 = vadd.f32 %v493, %v2037
    %v2039 = vpop.f32.mrb[0].mxu0
    %v2040 = vadd.f32 %v497, %v2039
    %2041 = vmatprep.mubr.bf16.mxu0 %v264
    %2042 = vmatmul.mubr.bf16.gmra.mrb[0].mxu0 %v263
    %v2043 = vpop.f32.mrb[0].mxu0
    %v2044 = vadd.f32 %v493, %v2043
    %v2045 = vpop.f32.mrb[0].mxu0
    %v2046 = vadd.f32 %v497, %v2045
    %v2047 = vpop.f32.mrb[0].mxu0
    %v2048 = vadd.f32 %v493, %v2047
    %v2049 = vpop.f32.mrb[0].mxu0
    %v2050 = vadd.f32 %v497, %v2049
    %2051 = vmatprep.mubr.bf16.mxu0 %v271
    %2052 = vmatmul.mubr.bf16.gmra.mrb[0].mxu0 %v270
    %v2053 = vpop.f32.mrb[0].mxu0
    %v2054 = vadd.f32 %v493, %v2053
    %v2055 = vpop.f32.mrb[0].mxu0
    %v2056 = vadd.f32 %v497, %v2055
    %v2057 = vpop.f32.mrb[0].mxu0
    %v2058 = vadd.f32 %v493, %v2057
    %v2059 = vpop.f32.mrb[0].mxu0
    %v2060 = vadd.f32 %v497, %v2059
    %2061 = vmatprep.mubr.bf16.mxu0 %v278
    %2062 = vmatmul.mubr.bf16.gmra.mrb[0].mxu0 %v277
    %v2063 = vpop.f32.mrb[0].mxu0
    %v2064 = vadd.f32 %v493, %v2063
    %v2065 = vpop.f32.mrb[0].mxu0
    %v2066 = vadd.f32 %v497, %v2065
    %v2067 = vpop.f32.mrb[0].mxu0
    %v2068 = vadd.f32 %v493, %v2067
    %v2069 = vpop.f32.mrb[0].mxu0
    %v2070 = vadd.f32 %v497, %v2069
    %2071 = vdwg.mxu0
    %2072 = vmatprep.subr.bf16.mxu0 %v1157
    %2073 = vmatpush1.bf16.msra.mxu0 %v1156
    %2074 = vmatprep.subr.bf16.mxu0 %v1161
    %2075 = vmatpush1.bf16.msra.mxu0 %v1160
    %2076 = vmatprep.subr.bf16.mxu0 %v1165
    %2077 = vmatpush1.bf16.msra.mxu0 %v1164
    %2078 = vmatprep.subr.bf16.mxu0 %v1169
    %2079 = vmatpush1.bf16.msra.mxu0 %v1168
    %2080 = vmatprep.subr.bf16.mxu0 %v1173
    %2081 = vmatpush1.bf16.msra.mxu0 %v1172
    %2082 = vmatprep.subr.bf16.mxu0 %v1177
    %2083 = vmatpush1.bf16.msra.mxu0 %v1176
    %2084 = vmatprep.subr.bf16.mxu0 %v1181
    %2085 = vmatpush1.bf16.msra.mxu0 %v1180
    %2086 = vmatprep.subr.bf16.mxu0 %v1185
    %2087 = vmatpush1.bf16.msra.mxu0 %v1184
    %2088 = vmatprep.subr.bf16.mxu0 %v1189
    %2089 = vmatpush1.bf16.msra.mxu0 %v1188
    %2090 = vmatprep.subr.bf16.mxu0 %v1193
    %2091 = vmatpush1.bf16.msra.mxu0 %v1192
    %2092 = vmatprep.subr.bf16.mxu0 %v1197
    %2093 = vmatpush1.bf16.msra.mxu0 %v1196
    %2094 = vmatprep.subr.bf16.mxu0 %v1201
    %2095 = vmatpush1.bf16.msra.mxu0 %v1200
    %2096 = vmatprep.subr.bf16.mxu0 %v1205
    %2097 = vmatpush1.bf16.msra.mxu0 %v1204
    %2098 = vmatprep.subr.bf16.mxu0 %v1209
    %2099 = vmatpush1.bf16.msra.mxu0 %v1208
    %2100 = vmatprep.subr.bf16.mxu0 %v1213
    %2101 = vmatpush1.bf16.msra.mxu0 %v1212
    %2102 = vmatprep.subr.bf16.mxu0 %v1217
    %2103 = vmatpush1.bf16.msra.mxu0 %v1216
    %2104 = vmatprep.mubr.bf16.mxu0 %v231
    %2105 = vmatmul.mubr.bf16.gmra.mrb[0].mxu0 %v230
    %v2106 = vpop.f32.mrb[0].mxu0
    %v2107 = vadd.f32 %v1994, %v2106
    %v2108 = vpop.f32.mrb[0].mxu0
    %v2109 = vadd.f32 %v1996, %v2108
    %v2110 = vpop.f32.mrb[0].mxu0
    %v2111 = vadd.f32 %v1998, %v2110
    %v2112 = vpop.f32.mrb[0].mxu0
    %v2113 = vadd.f32 %v2000, %v2112
    %2114 = vmatprep.mubr.bf16.mxu0 %v238
    %2115 = vmatmul.mubr.bf16.gmra.mrb[0].mxu0 %v237
    %v2116 = vpop.f32.mrb[0].mxu0
    %v2117 = vadd.f32 %v2004, %v2116
    %v2118 = vpop.f32.mrb[0].mxu0
    %v2119 = vadd.f32 %v2006, %v2118
    %v2120 = vpop.f32.mrb[0].mxu0
    %v2121 = vadd.f32 %v2008, %v2120
    %v2122 = vpop.f32.mrb[0].mxu0
    %v2123 = vadd.f32 %v2010, %v2122
    %2124 = vmatprep.mubr.bf16.mxu0 %v245
    %2125 = vmatmul.mubr.bf16.gmra.mrb[0].mxu0 %v244
    %v2126 = vpop.f32.mrb[0].mxu0
    %v2127 = vadd.f32 %v2014, %v2126
    %v2128 = vpop.f32.mrb[0].mxu0
    %v2129 = vadd.f32 %v2016, %v2128
    %v2130 = vpop.f32.mrb[0].mxu0
    %v2131 = vadd.f32 %v2018, %v2130
    %v2132 = vpop.f32.mrb[0].mxu0
    %v2133 = vadd.f32 %v2020, %v2132
    %2134 = vmatprep.mubr.bf16.mxu0 %v252
    %2135 = vmatmul.mubr.bf16.gmra.mrb[0].mxu0 %v251
    %v2136 = vpop.f32.mrb[0].mxu0
    %v2137 = vadd.f32 %v2024, %v2136
    %v2138 = vpop.f32.mrb[0].mxu0
    %v2139 = vadd.f32 %v2026, %v2138
    %v2140 = vpop.f32.mrb[0].mxu0
    %v2141 = vadd.f32 %v2028, %v2140
    %v2142 = vpop.f32.mrb[0].mxu0
    %v2143 = vadd.f32 %v2030, %v2142
    %2144 = vmatprep.mubr.bf16.mxu0 %v259
    %2145 = vmatmul.mubr.bf16.gmra.mrb[0].mxu0 %v258
    %v2146 = vpop.f32.mrb[0].mxu0
    %v2147 = vadd.f32 %v2034, %v2146
    %v2148 = vpop.f32.mrb[0].mxu0
    %v2149 = vadd.f32 %v2036, %v2148
    %v2150 = vpop.f32.mrb[0].mxu0
    %v2151 = vadd.f32 %v2038, %v2150
    %v2152 = vpop.f32.mrb[0].mxu0
    %v2153 = vadd.f32 %v2040, %v2152
    %2154 = vmatprep.mubr.bf16.mxu0 %v266
    %2155 = vmatmul.mubr.bf16.gmra.mrb[0].mxu0 %v265
    %v2156 = vpop.f32.mrb[0].mxu0
    %v2157 = vadd.f32 %v2044, %v2156
    %v2158 = vpop.f32.mrb[0].mxu0
    %v2159 = vadd.f32 %v2046, %v2158
    %v2160 = vpop.f32.mrb[0].mxu0
    %v2161 = vadd.f32 %v2048, %v2160
    %v2162 = vpop.f32.mrb[0].mxu0
    %v2163 = vadd.f32 %v2050, %v2162
    %2164 = vmatprep.mubr.bf16.mxu0 %v273
    %2165 = vmatmul.mubr.bf16.gmra.mrb[0].mxu0 %v272
    %v2166 = vpop.f32.mrb[0].mxu0
    %v2167 = vadd.f32 %v2054, %v2166
    %v2168 = vpop.f32.mrb[0].mxu0
    %v2169 = vadd.f32 %v2056, %v2168
    %v2170 = vpop.f32.mrb[0].mxu0
    %v2171 = vadd.f32 %v2058, %v2170
    %v2172 = vpop.f32.mrb[0].mxu0
    %v2173 = vadd.f32 %v2060, %v2172
    %2174 = vmatprep.mubr.bf16.mxu0 %v280
    %2175 = vmatmul.mubr.bf16.gmra.mrb[0].mxu0 %v279
    %v2176 = vpop.f32.mrb[0].mxu0
    %v2177 = vadd.f32 %v2064, %v2176
    %v2178 = vpop.f32.mrb[0].mxu0
    %v2179 = vadd.f32 %v2066, %v2178
    %v2180 = vpop.f32.mrb[0].mxu0
    %v2181 = vadd.f32 %v2068, %v2180
    %v2182 = vpop.f32.mrb[0].mxu0
    %v2183 = vadd.f32 %v2070, %v2182
    %2184 = vdwg.mxu0
    %2185 = vmatprep.subr.bf16.mxu0 %v1221
    %2186 = vmatpush1.bf16.msra.mxu0 %v1220
    %2187 = vmatprep.subr.bf16.mxu0 %v1225
    %2188 = vmatpush1.bf16.msra.mxu0 %v1224
    %2189 = vmatprep.subr.bf16.mxu0 %v1229
    %2190 = vmatpush1.bf16.msra.mxu0 %v1228
    %2191 = vmatprep.subr.bf16.mxu0 %v1233
    %2192 = vmatpush1.bf16.msra.mxu0 %v1232
    %2193 = vmatprep.subr.bf16.mxu0 %v1237
    %2194 = vmatpush1.bf16.msra.mxu0 %v1236
    %2195 = vmatprep.subr.bf16.mxu0 %v1241
    %2196 = vmatpush1.bf16.msra.mxu0 %v1240
    %2197 = vmatprep.subr.bf16.mxu0 %v1245
    %2198 = vmatpush1.bf16.msra.mxu0 %v1244
    %2199 = vmatprep.subr.bf16.mxu0 %v1249
    %2200 = vmatpush1.bf16.msra.mxu0 %v1248
    %2201 = vmatprep.subr.bf16.mxu0 %v1253
    %2202 = vmatpush1.bf16.msra.mxu0 %v1252
    %2203 = vmatprep.subr.bf16.mxu0 %v1257
    %2204 = vmatpush1.bf16.msra.mxu0 %v1256
    %2205 = vmatprep.subr.bf16.mxu0 %v1261
    %2206 = vmatpush1.bf16.msra.mxu0 %v1260
    %2207 = vmatprep.subr.bf16.mxu0 %v1265
    %2208 = vmatpush1.bf16.msra.mxu0 %v1264
    %2209 = vmatprep.subr.bf16.mxu0 %v1269
    %2210 = vmatpush1.bf16.msra.mxu0 %v1268
    %2211 = vmatprep.subr.bf16.mxu0 %v1273
    %2212 = vmatpush1.bf16.msra.mxu0 %v1272
    %2213 = vmatprep.subr.bf16.mxu0 %v1277
    %2214 = vmatpush1.bf16.msra.mxu0 %v1276
    %2215 = vmatprep.subr.bf16.mxu0 %v1281
    %2216 = vmatpush1.bf16.msra.mxu0 %v1280
    %2217 = vmatprep.mubr.bf16.mxu0 %v233
    %2218 = vmatmul.mubr.bf16.gmra.mrb[0].mxu0 %v232
    %v2219 = vpop.f32.mrb[0].mxu0
    %v2220 = vadd.f32 %v2107, %v2219
    %v2221 = vpop.f32.mrb[0].mxu0
    %v2222 = vadd.f32 %v2109, %v2221
    %v2223 = vpop.f32.mrb[0].mxu0
    %v2224 = vadd.f32 %v2111, %v2223
    %v2225 = vpop.f32.mrb[0].mxu0
    %v2226 = vadd.f32 %v2113, %v2225
    %2227 = vmatprep.mubr.bf16.mxu0 %v240
    %2228 = vmatmul.mubr.bf16.gmra.mrb[0].mxu0 %v239
    %v2229 = vpop.f32.mrb[0].mxu0
    %v2230 = vadd.f32 %v2117, %v2229
    %v2231 = vpop.f32.mrb[0].mxu0
    %v2232 = vadd.f32 %v2119, %v2231
    %v2233 = vpop.f32.mrb[0].mxu0
    %v2234 = vadd.f32 %v2121, %v2233
    %v2235 = vpop.f32.mrb[0].mxu0
    %v2236 = vadd.f32 %v2123, %v2235
    %2237 = vmatprep.mubr.bf16.mxu0 %v247
    %2238 = vmatmul.mubr.bf16.gmra.mrb[0].mxu0 %v246
    %v2239 = vpop.f32.mrb[0].mxu0
    %v2240 = vadd.f32 %v2127, %v2239
    %v2241 = vpop.f32.mrb[0].mxu0
    %v2242 = vadd.f32 %v2129, %v2241
    %v2243 = vpop.f32.mrb[0].mxu0
    %v2244 = vadd.f32 %v2131, %v2243
    %v2245 = vpop.f32.mrb[0].mxu0
    %v2246 = vadd.f32 %v2133, %v2245
    %2247 = vmatprep.mubr.bf16.mxu0 %v254
    %2248 = vmatmul.mubr.bf16.gmra.mrb[0].mxu0 %v253
    %v2249 = vpop.f32.mrb[0].mxu0
    %v2250 = vadd.f32 %v2137, %v2249
    %v2251 = vpop.f32.mrb[0].mxu0
    %v2252 = vadd.f32 %v2139, %v2251
    %v2253 = vpop.f32.mrb[0].mxu0
    %v2254 = vadd.f32 %v2141, %v2253
    %v2255 = vpop.f32.mrb[0].mxu0
    %v2256 = vadd.f32 %v2143, %v2255
    %2257 = vmatprep.mubr.bf16.mxu0 %v261
    %2258 = vmatmul.mubr.bf16.gmra.mrb[0].mxu0 %v260
    %v2259 = vpop.f32.mrb[0].mxu0
    %v2260 = vadd.f32 %v2147, %v2259
    %v2261 = vpop.f32.mrb[0].mxu0
    %v2262 = vadd.f32 %v2149, %v2261
    %v2263 = vpop.f32.mrb[0].mxu0
    %v2264 = vadd.f32 %v2151, %v2263
    %v2265 = vpop.f32.mrb[0].mxu0
    %v2266 = vadd.f32 %v2153, %v2265
    %2267 = vmatprep.mubr.bf16.mxu0 %v268
    %2268 = vmatmul.mubr.bf16.gmra.mrb[0].mxu0 %v267
    %v2269 = vpop.f32.mrb[0].mxu0
    %v2270 = vadd.f32 %v2157, %v2269
    %v2271 = vpop.f32.mrb[0].mxu0
    %v2272 = vadd.f32 %v2159, %v2271
    %v2273 = vpop.f32.mrb[0].mxu0
    %v2274 = vadd.f32 %v2161, %v2273
    %v2275 = vpop.f32.mrb[0].mxu0
    %v2276 = vadd.f32 %v2163, %v2275
    %2277 = vmatprep.mubr.bf16.mxu0 %v275
    %2278 = vmatmul.mubr.bf16.gmra.mrb[0].mxu0 %v274
    %v2279 = vpop.f32.mrb[0].mxu0
    %v2280 = vadd.f32 %v2167, %v2279
    %v2281 = vpop.f32.mrb[0].mxu0
    %v2282 = vadd.f32 %v2169, %v2281
    %v2283 = vpop.f32.mrb[0].mxu0
    %v2284 = vadd.f32 %v2171, %v2283
    %v2285 = vpop.f32.mrb[0].mxu0
    %v2286 = vadd.f32 %v2173, %v2285
    %2287 = vmatprep.mubr.bf16.mxu0 %v282
    %2288 = vmatmul.mubr.bf16.gmra.mrb[0].mxu0 %v281
    %v2289 = vpop.f32.mrb[0].mxu0
    %v2290 = vadd.f32 %v2177, %v2289
    %v2291 = vpop.f32.mrb[0].mxu0
    %v2292 = vadd.f32 %v2179, %v2291
    %v2293 = vpop.f32.mrb[0].mxu0
    %v2294 = vadd.f32 %v2181, %v2293
    %v2295 = vpop.f32.mrb[0].mxu0
    %v2296 = vadd.f32 %v2183, %v2295
    %2297 = vdwg.mxu0
    %2298 = vmatprep.subr.bf16.mxu0 %v1285
    %2299 = vmatpush1.bf16.msra.mxu0 %v1284
    %2300 = vmatprep.subr.bf16.mxu0 0
    %2301 = vmatpush1.bf16.msra.mxu0 0
    %2302 = vmatprep.subr.bf16.mxu0 0
    %2303 = vmatpush1.bf16.msra.mxu0 0
    %2304 = vmatprep.subr.bf16.mxu0 0
    %2305 = vmatpush1.bf16.msra.mxu0 0
    %2306 = vmatprep.subr.bf16.mxu0 0
    %2307 = vmatpush1.bf16.msra.mxu0 0
    %2308 = vmatprep.subr.bf16.mxu0 0
    %2309 = vmatpush1.bf16.msra.mxu0 0
    %2310 = vmatprep.subr.bf16.mxu0 0
    %2311 = vmatpush1.bf16.msra.mxu0 0
    %2312 = vmatprep.subr.bf16.mxu0 0
    %2313 = vmatpush1.bf16.msra.mxu0 0
    %2314 = vmatprep.subr.bf16.mxu0 0
    %2315 = vmatpush1.bf16.msra.mxu0 0
    %2316 = vmatprep.subr.bf16.mxu0 0
    %2317 = vmatpush1.bf16.msra.mxu0 0
    %2318 = vmatprep.subr.bf16.mxu0 0
    %2319 = vmatpush1.bf16.msra.mxu0 0
    %2320 = vmatprep.subr.bf16.mxu0 0
    %2321 = vmatpush1.bf16.msra.mxu0 0
    %2322 = vmatprep.subr.bf16.mxu0 0
    %2323 = vmatpush1.bf16.msra.mxu0 0
    %2324 = vmatprep.subr.bf16.mxu0 0
    %2325 = vmatpush1.bf16.msra.mxu0 0
    %2326 = vmatprep.subr.bf16.mxu0 0
    %2327 = vmatpush1.bf16.msra.mxu0 0
    %2328 = vmatprep.subr.bf16.mxu0 0
    %2329 = vmatpush1.bf16.msra.mxu0 0
    %2330 = vmatprep.mubr.bf16.mxu0 0
    %2331 = vmatmul.mubr.bf16.gmra.mrb[0].mxu0 %v1484
    %v2332 = vpop.f32.mrb[0].mxu0
    %v2333 = vadd.f32 %v2220, %v2332
    %v2334 = vpop.f32.mrb[0].mxu0
    %v2335 = vadd.f32 %v2222, %v2334
    %v2336 = vpop.f32.mrb[0].mxu0
    %v2337 = vadd.f32 %v2224, %v2336
    %v2338 = vpop.f32.mrb[0].mxu0
    %v2339 = vadd.f32 %v2226, %v2338
    %2340 = vmatprep.mubr.bf16.mxu0 0
    %2341 = vmatmul.mubr.bf16.gmra.mrb[0].mxu0 %v1487
    %v2342 = vpop.f32.mrb[0].mxu0
    %v2343 = vadd.f32 %v2230, %v2342
    %v2344 = vpop.f32.mrb[0].mxu0
    %v2345 = vadd.f32 %v2232, %v2344
    %v2346 = vpop.f32.mrb[0].mxu0
    %v2347 = vadd.f32 %v2234, %v2346
    %v2348 = vpop.f32.mrb[0].mxu0
    %v2349 = vadd.f32 %v2236, %v2348
    %2350 = vmatprep.mubr.bf16.mxu0 0
    %2351 = vmatmul.mubr.bf16.gmra.mrb[0].mxu0 %v1490
    %v2352 = vpop.f32.mrb[0].mxu0
    %v2353 = vadd.f32 %v2240, %v2352
    %v2354 = vpop.f32.mrb[0].mxu0
    %v2355 = vadd.f32 %v2242, %v2354
    %v2356 = vpop.f32.mrb[0].mxu0
    %v2357 = vadd.f32 %v2244, %v2356
    %v2358 = vpop.f32.mrb[0].mxu0
    %v2359 = vadd.f32 %v2246, %v2358
    %2360 = vmatprep.mubr.bf16.mxu0 0
    %2361 = vmatmul.mubr.bf16.gmra.mrb[0].mxu0 %v1493
    %v2362 = vpop.f32.mrb[0].mxu0
    %v2363 = vadd.f32 %v2250, %v2362
    %v2364 = vpop.f32.mrb[0].mxu0
    %v2365 = vadd.f32 %v2252, %v2364
    %v2366 = vpop.f32.mrb[0].mxu0
    %v2367 = vadd.f32 %v2254, %v2366
    %v2368 = vpop.f32.mrb[0].mxu0
    %v2369 = vadd.f32 %v2256, %v2368
    %2370 = vmatprep.mubr.bf16.mxu0 0
    %2371 = vmatmul.mubr.bf16.gmra.mrb[0].mxu0 %v1496
    %v2372 = vpop.f32.mrb[0].mxu0
    %v2373 = vadd.f32 %v2260, %v2372
    %v2374 = vpop.f32.mrb[0].mxu0
    %v2375 = vadd.f32 %v2262, %v2374
    %v2376 = vpop.f32.mrb[0].mxu0
    %v2377 = vadd.f32 %v2264, %v2376
    %v2378 = vpop.f32.mrb[0].mxu0
    %v2379 = vadd.f32 %v2266, %v2378
    %2380 = vmatprep.mubr.bf16.mxu0 0
    %2381 = vmatmul.mubr.bf16.gmra.mrb[0].mxu0 %v1499
    %v2382 = vpop.f32.mrb[0].mxu0
    %v2383 = vadd.f32 %v2270, %v2382
    %v2384 = vpop.f32.mrb[0].mxu0
    %v2385 = vadd.f32 %v2272, %v2384
    %v2386 = vpop.f32.mrb[0].mxu0
    %v2387 = vadd.f32 %v2274, %v2386
    %v2388 = vpop.f32.mrb[0].mxu0
    %v2389 = vadd.f32 %v2276, %v2388
    %2390 = vmatprep.mubr.bf16.mxu0 0
    %2391 = vmatmul.mubr.bf16.gmra.mrb[0].mxu0 %v1502
    %v2392 = vpop.f32.mrb[0].mxu0
    %v2393 = vadd.f32 %v2280, %v2392
    %v2394 = vpop.f32.mrb[0].mxu0
    %v2395 = vadd.f32 %v2282, %v2394
    %v2396 = vpop.f32.mrb[0].mxu0
    %v2397 = vadd.f32 %v2284, %v2396
    %v2398 = vpop.f32.mrb[0].mxu0
    %v2399 = vadd.f32 %v2286, %v2398
    %2400 = vmatprep.mubr.bf16.mxu0 0
    %2401 = vmatmul.mubr.bf16.gmra.mrb[0].mxu0 %v1505
    %v2402 = vpop.f32.mrb[0].mxu0
    %v2403 = vadd.f32 %v2290, %v2402
    %v2404 = vpop.f32.mrb[0].mxu0
    %v2405 = vadd.f32 %v2292, %v2404
    %v2406 = vpop.f32.mrb[0].mxu0
    %v2407 = vadd.f32 %v2294, %v2406
    %v2408 = vpop.f32.mrb[0].mxu0
    %v2409 = vadd.f32 %v2296, %v2408
    %2410 = vdwg.mxu0
    %v2411 = vpack.c.bf16 %v1885, %v1881
    %v2412 = vpack.c.bf16 %v1887, %v1883
    %v2413 = vpack.c.bf16 %v2337, %v2333
    %v2414 = vpack.c.bf16 %v2339, %v2335
    %v2415 = vpack.c.bf16 %v1895, %v1891
    %v2416 = vpack.c.bf16 %v1897, %v1893
    %v2417 = vpack.c.bf16 %v2347, %v2343
    %v2418 = vpack.c.bf16 %v2349, %v2345
    %v2419 = vpack.c.bf16 %v1905, %v1901
    %v2420 = vpack.c.bf16 %v1907, %v1903
    %v2421 = vpack.c.bf16 %v2357, %v2353
    %v2422 = vpack.c.bf16 %v2359, %v2355
    %v2423 = vpack.c.bf16 %v1915, %v1911
    %v2424 = vpack.c.bf16 %v1917, %v1913
    %v2425 = vpack.c.bf16 %v2367, %v2363
    %v2426 = vpack.c.bf16 %v2369, %v2365
    %v2427 = vpack.c.bf16 %v1925, %v1921
    %v2428 = vpack.c.bf16 %v1927, %v1923
    %v2429 = vpack.c.bf16 %v2377, %v2373
    %v2430 = vpack.c.bf16 %v2379, %v2375
    %v2431 = vpack.c.bf16 %v1935, %v1931
    %v2432 = vpack.c.bf16 %v1937, %v1933
    %v2433 = vpack.c.bf16 %v2387, %v2383
    %v2434 = vpack.c.bf16 %v2389, %v2385
    %v2435 = vpack.c.bf16 %v1945, %v1941
    %v2436 = vpack.c.bf16 %v1947, %v1943
    %v2437 = vpack.c.bf16 %v2397, %v2393
    %v2438 = vpack.c.bf16 %v2399, %v2395
    %v2439 = vpack.c.bf16 %v1955, %v1951
    %v2440 = vpack.c.bf16 %v1957, %v1953
    %v2441 = vpack.c.bf16 %v2407, %v2403
    %v2442 = vpack.c.bf16 %v2409, %v2405
    %v2443 = vmax.bf16 %v2411, 0
    %v2444 = vmax.bf16 %v2412, 0
    %v2445 = vmax.bf16 %v2413, 0
    %v2446 = vmax.bf16 %v2414, 0
    %v2447 = vmax.bf16 %v2415, 0
    %v2448 = vmax.bf16 %v2416, 0
    %v2449 = vmax.bf16 %v2417, 0
    %v2450 = vmax.bf16 %v2418, 0
    %v2451 = vmax.bf16 %v2419, 0
    %v2452 = vmax.bf16 %v2420, 0
    %v2453 = vmax.bf16 %v2421, 0
    %v2454 = vmax.bf16 %v2422, 0
    %v2455 = vmax.bf16 %v2423, 0
    %v2456 = vmax.bf16 %v2424, 0
    %v2457 = vmax.bf16 %v2425, 0
    %v2458 = vmax.bf16 %v2426, 0
    %v2459 = vmax.bf16 %v2427, 0
    %v2460 = vmax.bf16 %v2428, 0
    %v2461 = vmax.bf16 %v2429, 0
    %v2462 = vmax.bf16 %v2430, 0
    %v2463 = vmax.bf16 %v2431, 0
    %v2464 = vmax.bf16 %v2432, 0
    %v2465 = vmax.bf16 %v2433, 0
    %v2466 = vmax.bf16 %v2434, 0
    %v2467 = vmax.bf16 %v2435, 0
    %v2468 = vmax.bf16 %v2436, 0
    %v2469 = vmax.bf16 %v2437, 0
    %v2470 = vmax.bf16 %v2438, 0
    %v2471 = vmax.bf16 %v2439, 0
    %v2472 = vmax.bf16 %v2440, 0
    %v2473 = vmax.bf16 %v2441, 0
    %v2474 = vmax.bf16 %v2442, 0
    %v2475 = vld [vmem:[#allocation5] sm:$0xff]
    %v2476 = vld [vmem:[#allocation5 + $0x8] sm:$0xff]
    %v2477 = vld [vmem:[#allocation5 + $0x10] sm:$0xff]
    %v2478 = vld [vmem:[#allocation5 + $0x18] sm:$0xff]
    %v2479 = vld [vmem:[#allocation5 + $0x20] sm:$0xff]
    %v2480 = vld [vmem:[#allocation5 + $0x28] sm:$0xff]
    %v2481 = vld [vmem:[#allocation5 + $0x30] sm:$0xff]
    %v2482 = vld [vmem:[#allocation5 + $0x38] sm:$0xff]
    %v2483 = vld [vmem:[#allocation5 + $0x40] sm:$0xff]
    %v2484 = vld [vmem:[#allocation5 + $0x48] sm:$0xff]
    %v2485 = vld [vmem:[#allocation5 + $0x50] sm:$0xff]
    %v2486 = vld [vmem:[#allocation5 + $0x58] sm:$0xff]
    %v2487 = vld [vmem:[#allocation5 + $0x60] sm:$0xff]
    %v2488 = vld [vmem:[#allocation5 + $0x68] sm:$0xff]
    %v2489 = vld [vmem:[#allocation5 + $0x70] sm:$0xff]
    %v2490 = vld [vmem:[#allocation5 + $0x78] sm:$0xff]
    %v2491 = vld [vmem:[#allocation5 + $0x80] sm:$0xff]
    %v2492 = vld [vmem:[#allocation5 + $0x88] sm:$0xff]
    %v2493 = vld [vmem:[#allocation5 + $0x90] sm:$0xff]
    %v2494 = vld [vmem:[#allocation5 + $0x98] sm:$0xff]
    %v2495 = vld [vmem:[#allocation5 + $0xa0] sm:$0xff]
    %v2496 = vld [vmem:[#allocation5 + $0xa8] sm:$0xff]
    %v2497 = vld [vmem:[#allocation5 + $0xb0] sm:$0xff]
    %v2498 = vld [vmem:[#allocation5 + $0xb8] sm:$0xff]
    %v2499 = vld [vmem:[#allocation5 + $0xc0] sm:$0xff]
    %v2500 = vld [vmem:[#allocation5 + $0xc8] sm:$0xff]
    %v2501 = vld [vmem:[#allocation5 + $0xd0] sm:$0xff]
    %v2502 = vld [vmem:[#allocation5 + $0xd8] sm:$0xff]
    %v2503 = vld [vmem:[#allocation5 + $0xe0] sm:$0xff]
    %v2504 = vld [vmem:[#allocation5 + $0xe8] sm:$0xff]
    %v2505 = vld [vmem:[#allocation5 + $0xf0] sm:$0xff]
    %v2506 = vld [vmem:[#allocation5 + $0xf8] sm:$0xff]
    %v2507 = vld [vmem:[#allocation5 + $0x100] sm:$0xff]
    %v2508 = vld [vmem:[#allocation5 + $0x108] sm:$0xff]
    %v2509 = vld [vmem:[#allocation5 + $0x110] sm:$0xff]
    %v2510 = vld [vmem:[#allocation5 + $0x118] sm:$0xff]
    %v2511 = vld [vmem:[#allocation5 + $0x120] sm:$0xff]
    %v2512 = vld [vmem:[#allocation5 + $0x128] sm:$0xff]
    %v2513 = vld [vmem:[#allocation5 + $0x130] sm:$0xff]
    %v2514 = vld [vmem:[#allocation5 + $0x138] sm:$0xff]
    %v2515 = vld [vmem:[#allocation5 + $0x140] sm:$0xff]
    %v2516 = vld [vmem:[#allocation5 + $0x148] sm:$0xff]
    %v2517 = vld [vmem:[#allocation5 + $0x150] sm:$0xff]
    %v2518 = vld [vmem:[#allocation5 + $0x158] sm:$0xff]
    %v2519 = vld [vmem:[#allocation5 + $0x160] sm:$0xff]
    %v2520 = vld [vmem:[#allocation5 + $0x168] sm:$0xff]
    %v2521 = vld [vmem:[#allocation5 + $0x170] sm:$0xff]
    %v2522 = vld [vmem:[#allocation5 + $0x178] sm:$0xff]
    %v2523 = vld [vmem:[#allocation5 + $0x180] sm:$0xff]
    %v2524 = vld [vmem:[#allocation5 + $0x188] sm:$0xff]
    %v2525 = vld [vmem:[#allocation5 + $0x190] sm:$0xff]
    %v2526 = vld [vmem:[#allocation5 + $0x198] sm:$0xff]
    %v2527 = vld [vmem:[#allocation5 + $0x1a0] sm:$0xff]
    %v2528 = vld [vmem:[#allocation5 + $0x1a8] sm:$0xff]
    %v2529 = vld [vmem:[#allocation5 + $0x1b0] sm:$0xff]
    %v2530 = vld [vmem:[#allocation5 + $0x1b8] sm:$0xff]
    %v2531 = vld [vmem:[#allocation5 + $0x1c0] sm:$0xff]
    %v2532 = vld [vmem:[#allocation5 + $0x1c8] sm:$0xff]
    %v2533 = vld [vmem:[#allocation5 + $0x1d0] sm:$0xff]
    %v2534 = vld [vmem:[#allocation5 + $0x1d8] sm:$0xff]
    %v2535 = vld [vmem:[#allocation5 + $0x1e0] sm:$0xff]
    %v2536 = vld [vmem:[#allocation5 + $0x1e8] sm:$0xff]
    %v2537 = vld [vmem:[#allocation5 + $0x1f0] sm:$0xff]
    %v2538 = vld [vmem:[#allocation5 + $0x1f8] sm:$0xff]
    %v2539 = vld [vmem:[%s4] sm:$0x3]
    %v2541 = vlaneseq
    %v2542 = vshrl.u32 %v2541, 7
    %v2543 = vsub.s32 0, %v2542
    %v2544 = vrot.slane %v2539, %v2543
    %v2545 = vlaneseq
    %v2546 = vshrl.u32 %v2545, 7
    %v2547 = vsub.s32 1, %v2546
    %v2548 = vrot.slane %v2539, %v2547
    %v2615 = vunpack.c.l.b16 %v2475
    %v2616 = vunpack.c.h.b16 %v2475
    %v2617 = vunpack.c.l.b16 %v2476
    %v2618 = vunpack.c.h.b16 %v2476
    %v2619 = vunpack.c.l.b16 %v2477
    %v2620 = vunpack.c.h.b16 %v2477
    %v2621 = vunpack.c.l.b16 %v2478
    %v2622 = vunpack.c.h.b16 %v2478
    %v2623 = vunpack.c.l.b16 %v2479
    %v2624 = vunpack.c.h.b16 %v2479
    %v2625 = vunpack.c.l.b16 %v2480
    %v2626 = vunpack.c.h.b16 %v2480
    %v2627 = vunpack.c.l.b16 %v2481
    %v2628 = vunpack.c.h.b16 %v2481
    %v2629 = vunpack.c.l.b16 %v2482
    %v2630 = vunpack.c.h.b16 %v2482
    %v2631 = vunpack.c.l.b16 %v2483
    %v2632 = vunpack.c.h.b16 %v2483
    %v2633 = vunpack.c.l.b16 %v2484
    %v2634 = vunpack.c.h.b16 %v2484
    %v2635 = vunpack.c.l.b16 %v2485
    %v2636 = vunpack.c.h.b16 %v2485
    %v2637 = vunpack.c.l.b16 %v2486
    %v2638 = vunpack.c.h.b16 %v2486
    %v2639 = vunpack.c.l.b16 %v2487
    %v2640 = vunpack.c.h.b16 %v2487
    %v2641 = vunpack.c.l.b16 %v2488
    %v2642 = vunpack.c.h.b16 %v2488
    %v2643 = vunpack.c.l.b16 %v2489
    %v2644 = vunpack.c.h.b16 %v2489
    %v2645 = vunpack.c.l.b16 %v2490
    %v2646 = vunpack.c.h.b16 %v2490
    %v2647 = vunpack.c.l.b16 %v2491
    %v2648 = vunpack.c.h.b16 %v2491
    %v2649 = vunpack.c.l.b16 %v2492
    %v2650 = vunpack.c.h.b16 %v2492
    %v2651 = vunpack.c.l.b16 %v2493
    %v2652 = vunpack.c.h.b16 %v2493
    %v2653 = vunpack.c.l.b16 %v2494
    %v2654 = vunpack.c.h.b16 %v2494
    %v2655 = vunpack.c.l.b16 %v2495
    %v2656 = vunpack.c.h.b16 %v2495
    %v2657 = vunpack.c.l.b16 %v2496
    %v2658 = vunpack.c.h.b16 %v2496
    %v2659 = vunpack.c.l.b16 %v2497
    %v2660 = vunpack.c.h.b16 %v2497
    %v2661 = vunpack.c.l.b16 %v2498
    %v2662 = vunpack.c.h.b16 %v2498
    %v2663 = vunpack.c.l.b16 %v2499
    %v2664 = vunpack.c.h.b16 %v2499
    %v2665 = vunpack.c.l.b16 %v2500
    %v2666 = vunpack.c.h.b16 %v2500
    %v2667 = vunpack.c.l.b16 %v2501
    %v2668 = vunpack.c.h.b16 %v2501
    %v2669 = vunpack.c.l.b16 %v2502
    %v2670 = vunpack.c.h.b16 %v2502
    %v2671 = vunpack.c.l.b16 %v2503
    %v2672 = vunpack.c.h.b16 %v2503
    %v2673 = vunpack.c.l.b16 %v2504
    %v2674 = vunpack.c.h.b16 %v2504
    %v2675 = vunpack.c.l.b16 %v2505
    %v2676 = vunpack.c.h.b16 %v2505
    %v2677 = vunpack.c.l.b16 %v2506
    %v2678 = vunpack.c.h.b16 %v2506
    %v2679 = vunpack.c.l.b16 %v2507
    %v2680 = vunpack.c.h.b16 %v2507
    %v2681 = vunpack.c.l.b16 %v2508
    %v2682 = vunpack.c.h.b16 %v2508
    %v2683 = vunpack.c.l.b16 %v2509
    %v2684 = vunpack.c.h.b16 %v2509
    %v2685 = vunpack.c.l.b16 %v2510
    %v2686 = vunpack.c.h.b16 %v2510
    %v2687 = vunpack.c.l.b16 %v2511
    %v2688 = vunpack.c.h.b16 %v2511
    %v2689 = vunpack.c.l.b16 %v2512
    %v2690 = vunpack.c.h.b16 %v2512
    %v2691 = vunpack.c.l.b16 %v2513
    %v2692 = vunpack.c.h.b16 %v2513
    %v2693 = vunpack.c.l.b16 %v2514
    %v2694 = vunpack.c.h.b16 %v2514
    %v2695 = vunpack.c.l.b16 %v2515
    %v2696 = vunpack.c.h.b16 %v2515
    %v2697 = vunpack.c.l.b16 %v2516
    %v2698 = vunpack.c.h.b16 %v2516
    %v2699 = vunpack.c.l.b16 %v2517
    %v2700 = vunpack.c.h.b16 %v2517
    %v2701 = vunpack.c.l.b16 %v2518
    %v2702 = vunpack.c.h.b16 %v2518
    %v2703 = vunpack.c.l.b16 %v2519
    %v2704 = vunpack.c.h.b16 %v2519
    %v2705 = vunpack.c.l.b16 %v2520
    %v2706 = vunpack.c.h.b16 %v2520
    %v2707 = vunpack.c.l.b16 %v2521
    %v2708 = vunpack.c.h.b16 %v2521
    %v2709 = vunpack.c.l.b16 %v2522
    %v2710 = vunpack.c.h.b16 %v2522
    %v2711 = vunpack.c.l.b16 %v2523
    %v2712 = vunpack.c.h.b16 %v2523
    %v2713 = vunpack.c.l.b16 %v2524
    %v2714 = vunpack.c.h.b16 %v2524
    %v2715 = vunpack.c.l.b16 %v2525
    %v2716 = vunpack.c.h.b16 %v2525
    %v2717 = vunpack.c.l.b16 %v2526
    %v2718 = vunpack.c.h.b16 %v2526
    %v2719 = vunpack.c.l.b16 %v2527
    %v2720 = vunpack.c.h.b16 %v2527
    %v2721 = vunpack.c.l.b16 %v2528
    %v2722 = vunpack.c.h.b16 %v2528
    %v2723 = vunpack.c.l.b16 %v2529
    %v2724 = vunpack.c.h.b16 %v2529
    %v2725 = vunpack.c.l.b16 %v2530
    %v2726 = vunpack.c.h.b16 %v2530
    %v2727 = vunpack.c.l.b16 %v2531
    %v2728 = vunpack.c.h.b16 %v2531
    %v2729 = vunpack.c.l.b16 %v2532
    %v2730 = vunpack.c.h.b16 %v2532
    %v2731 = vunpack.c.l.b16 %v2533
    %v2732 = vunpack.c.h.b16 %v2533
    %v2733 = vunpack.c.l.b16 %v2534
    %v2734 = vunpack.c.h.b16 %v2534
    %v2735 = vunpack.c.l.b16 %v2535
    %v2736 = vunpack.c.h.b16 %v2535
    %v2737 = vunpack.c.l.b16 %v2536
    %v2738 = vunpack.c.h.b16 %v2536
    %v2739 = vunpack.c.l.b16 %v2537
    %v2740 = vunpack.c.h.b16 %v2537
    %v2741 = vunpack.c.l.b16 %v2538
    %v2742 = vunpack.c.h.b16 %v2538
    %v2743 = vpack.c.b16 %v2617, %v2615
    %v2744 = vpack.c.b16 %v2618, %v2616
    %v2745 = vpack.c.b16 %v2621, %v2619
    %v2746 = vpack.c.b16 %v2622, %v2620
    %v2747 = vpack.c.b16 %v2625, %v2623
    %v2748 = vpack.c.b16 %v2626, %v2624
    %v2749 = vpack.c.b16 %v2629, %v2627
    %v2750 = vpack.c.b16 %v2630, %v2628
    %v2751 = vpack.c.b16 %v2633, %v2631
    %v2752 = vpack.c.b16 %v2634, %v2632
    %v2753 = vpack.c.b16 %v2637, %v2635
    %v2754 = vpack.c.b16 %v2638, %v2636
    %v2755 = vpack.c.b16 %v2641, %v2639
    %v2756 = vpack.c.b16 %v2642, %v2640
    %v2757 = vpack.c.b16 %v2645, %v2643
    %v2758 = vpack.c.b16 %v2646, %v2644
    %v2759 = vpack.c.b16 %v2649, %v2647
    %v2760 = vpack.c.b16 %v2650, %v2648
    %v2761 = vpack.c.b16 %v2653, %v2651
    %v2762 = vpack.c.b16 %v2654, %v2652
    %v2763 = vpack.c.b16 %v2657, %v2655
    %v2764 = vpack.c.b16 %v2658, %v2656
    %v2765 = vpack.c.b16 %v2661, %v2659
    %v2766 = vpack.c.b16 %v2662, %v2660
    %v2767 = vpack.c.b16 %v2665, %v2663
    %v2768 = vpack.c.b16 %v2666, %v2664
    %v2769 = vpack.c.b16 %v2669, %v2667
    %v2770 = vpack.c.b16 %v2670, %v2668
    %v2771 = vpack.c.b16 %v2673, %v2671
    %v2772 = vpack.c.b16 %v2674, %v2672
    %v2773 = vpack.c.b16 %v2677, %v2675
    %v2774 = vpack.c.b16 %v2678, %v2676
    %v2775 = vpack.c.b16 %v2681, %v2679
    %v2776 = vpack.c.b16 %v2682, %v2680
    %v2777 = vpack.c.b16 %v2685, %v2683
    %v2778 = vpack.c.b16 %v2686, %v2684
    %v2779 = vpack.c.b16 %v2689, %v2687
    %v2780 = vpack.c.b16 %v2690, %v2688
    %v2781 = vpack.c.b16 %v2693, %v2691
    %v2782 = vpack.c.b16 %v2694, %v2692
    %v2783 = vpack.c.b16 %v2697, %v2695
    %v2784 = vpack.c.b16 %v2698, %v2696
    %v2785 = vpack.c.b16 %v2701, %v2699
    %v2786 = vpack.c.b16 %v2702, %v2700
    %v2787 = vpack.c.b16 %v2705, %v2703
    %v2788 = vpack.c.b16 %v2706, %v2704
    %v2789 = vpack.c.b16 %v2709, %v2707
    %v2790 = vpack.c.b16 %v2710, %v2708
    %v2791 = vpack.c.b16 %v2713, %v2711
    %v2792 = vpack.c.b16 %v2714, %v2712
    %v2793 = vpack.c.b16 %v2717, %v2715
    %v2794 = vpack.c.b16 %v2718, %v2716
    %v2795 = vpack.c.b16 %v2721, %v2719
    %v2796 = vpack.c.b16 %v2722, %v2720
    %v2797 = vpack.c.b16 %v2725, %v2723
    %v2798 = vpack.c.b16 %v2726, %v2724
    %v2799 = vpack.c.b16 %v2729, %v2727
    %v2800 = vpack.c.b16 %v2730, %v2728
    %v2801 = vpack.c.b16 %v2733, %v2731
    %v2802 = vpack.c.b16 %v2734, %v2732
    %v2803 = vpack.c.b16 %v2737, %v2735
    %v2804 = vpack.c.b16 %v2738, %v2736
    %v2805 = vpack.c.b16 %v2741, %v2739
    %v2806 = vpack.c.b16 %v2742, %v2740
    %2871 = vmatprep.subr.bf16.mxu0 %v2744
    %2872 = vmatpush1.bf16.msra.mxu0 %v2743
    %2873 = vmatprep.subr.bf16.mxu0 %v2746
    %2874 = vmatpush1.bf16.msra.mxu0 %v2745
    %2875 = vmatprep.subr.bf16.mxu0 %v2748
    %2876 = vmatpush1.bf16.msra.mxu0 %v2747
    %2877 = vmatprep.subr.bf16.mxu0 %v2750
    %2878 = vmatpush1.bf16.msra.mxu0 %v2749
    %2879 = vmatprep.subr.bf16.mxu0 %v2752
    %2880 = vmatpush1.bf16.msra.mxu0 %v2751
    %2881 = vmatprep.subr.bf16.mxu0 %v2754
    %2882 = vmatpush1.bf16.msra.mxu0 %v2753
    %2883 = vmatprep.subr.bf16.mxu0 %v2756
    %2884 = vmatpush1.bf16.msra.mxu0 %v2755
    %2885 = vmatprep.subr.bf16.mxu0 %v2758
    %2886 = vmatpush1.bf16.msra.mxu0 %v2757
    %2887 = vmatprep.subr.bf16.mxu0 %v2760
    %2888 = vmatpush1.bf16.msra.mxu0 %v2759
    %2889 = vmatprep.subr.bf16.mxu0 %v2762
    %2890 = vmatpush1.bf16.msra.mxu0 %v2761
    %2891 = vmatprep.subr.bf16.mxu0 %v2764
    %2892 = vmatpush1.bf16.msra.mxu0 %v2763
    %2893 = vmatprep.subr.bf16.mxu0 %v2766
    %2894 = vmatpush1.bf16.msra.mxu0 %v2765
    %2895 = vmatprep.subr.bf16.mxu0 %v2768
    %2896 = vmatpush1.bf16.msra.mxu0 %v2767
    %2897 = vmatprep.subr.bf16.mxu0 %v2770
    %2898 = vmatpush1.bf16.msra.mxu0 %v2769
    %2899 = vmatprep.subr.bf16.mxu0 %v2772
    %2900 = vmatpush1.bf16.msra.mxu0 %v2771
    %2901 = vmatprep.subr.bf16.mxu0 %v2774
    %2902 = vmatpush1.bf16.msra.mxu0 %v2773
    %2903 = vmatprep.mubr.bf16.mxu0 %v2444
    %2904 = vmatmul.mubr.bf16.gmra.mrb[0].mxu0 %v2443
    %v2905 = vpop.f32.mrb[0].mxu0
    %v2906 = vadd.f32 %v2544, %v2905
    %v2907 = vpop.f32.mrb[0].mxu0
    %v2908 = vadd.f32 %v2548, %v2907
    %v2909 = vpop.f32.mrb[0].mxu0
    %v2910 = vadd.f32 %v2544, %v2909
    %v2911 = vpop.f32.mrb[0].mxu0
    %v2912 = vadd.f32 %v2548, %v2911
    %2913 = vmatprep.mubr.bf16.mxu0 %v2448
    %2914 = vmatmul.mubr.bf16.gmra.mrb[0].mxu0 %v2447
    %v2915 = vpop.f32.mrb[0].mxu0
    %v2916 = vadd.f32 %v2544, %v2915
    %v2917 = vpop.f32.mrb[0].mxu0
    %v2918 = vadd.f32 %v2548, %v2917
    %v2919 = vpop.f32.mrb[0].mxu0
    %v2920 = vadd.f32 %v2544, %v2919
    %v2921 = vpop.f32.mrb[0].mxu0
    %v2922 = vadd.f32 %v2548, %v2921
    %2923 = vmatprep.mubr.bf16.mxu0 %v2452
    %2924 = vmatmul.mubr.bf16.gmra.mrb[0].mxu0 %v2451
    %v2925 = vpop.f32.mrb[0].mxu0
    %v2926 = vadd.f32 %v2544, %v2925
    %v2927 = vpop.f32.mrb[0].mxu0
    %v2928 = vadd.f32 %v2548, %v2927
    %v2929 = vpop.f32.mrb[0].mxu0
    %v2930 = vadd.f32 %v2544, %v2929
    %v2931 = vpop.f32.mrb[0].mxu0
    %v2932 = vadd.f32 %v2548, %v2931
    %2933 = vmatprep.mubr.bf16.mxu0 %v2456
    %2934 = vmatmul.mubr.bf16.gmra.mrb[0].mxu0 %v2455
    %v2935 = vpop.f32.mrb[0].mxu0
    %v2936 = vadd.f32 %v2544, %v2935
    %v2937 = vpop.f32.mrb[0].mxu0
    %v2938 = vadd.f32 %v2548, %v2937
    %v2939 = vpop.f32.mrb[0].mxu0
    %v2940 = vadd.f32 %v2544, %v2939
    %v2941 = vpop.f32.mrb[0].mxu0
    %v2942 = vadd.f32 %v2548, %v2941
    %2943 = vmatprep.mubr.bf16.mxu0 %v2460
    %2944 = vmatmul.mubr.bf16.gmra.mrb[0].mxu0 %v2459
    %v2945 = vpop.f32.mrb[0].mxu0
    %v2946 = vadd.f32 %v2544, %v2945
    %v2947 = vpop.f32.mrb[0].mxu0
    %v2948 = vadd.f32 %v2548, %v2947
    %v2949 = vpop.f32.mrb[0].mxu0
    %v2950 = vadd.f32 %v2544, %v2949
    %v2951 = vpop.f32.mrb[0].mxu0
    %v2952 = vadd.f32 %v2548, %v2951
    %2953 = vmatprep.mubr.bf16.mxu0 %v2464
    %2954 = vmatmul.mubr.bf16.gmra.mrb[0].mxu0 %v2463
    %v2955 = vpop.f32.mrb[0].mxu0
    %v2956 = vadd.f32 %v2544, %v2955
    %v2957 = vpop.f32.mrb[0].mxu0
    %v2958 = vadd.f32 %v2548, %v2957
    %v2959 = vpop.f32.mrb[0].mxu0
    %v2960 = vadd.f32 %v2544, %v2959
    %v2961 = vpop.f32.mrb[0].mxu0
    %v2962 = vadd.f32 %v2548, %v2961
    %2963 = vmatprep.mubr.bf16.mxu0 %v2468
    %2964 = vmatmul.mubr.bf16.gmra.mrb[0].mxu0 %v2467
    %v2965 = vpop.f32.mrb[0].mxu0
    %v2966 = vadd.f32 %v2544, %v2965
    %v2967 = vpop.f32.mrb[0].mxu0
    %v2968 = vadd.f32 %v2548, %v2967
    %v2969 = vpop.f32.mrb[0].mxu0
    %v2970 = vadd.f32 %v2544, %v2969
    %v2971 = vpop.f32.mrb[0].mxu0
    %v2972 = vadd.f32 %v2548, %v2971
    %2973 = vmatprep.mubr.bf16.mxu0 %v2472
    %2974 = vmatmul.mubr.bf16.gmra.mrb[0].mxu0 %v2471
    %v2975 = vpop.f32.mrb[0].mxu0
    %v2976 = vadd.f32 %v2544, %v2975
    %v2977 = vpop.f32.mrb[0].mxu0
    %v2978 = vadd.f32 %v2548, %v2977
    %v2979 = vpop.f32.mrb[0].mxu0
    %v2980 = vadd.f32 %v2544, %v2979
    %v2981 = vpop.f32.mrb[0].mxu0
    %v2982 = vadd.f32 %v2548, %v2981
    %2983 = vdwg.mxu0
    %2984 = vmatprep.subr.bf16.mxu0 %v2776
    %2985 = vmatpush1.bf16.msra.mxu0 %v2775
    %2986 = vmatprep.subr.bf16.mxu0 %v2778
    %2987 = vmatpush1.bf16.msra.mxu0 %v2777
    %2988 = vmatprep.subr.bf16.mxu0 %v2780
    %2989 = vmatpush1.bf16.msra.mxu0 %v2779
    %2990 = vmatprep.subr.bf16.mxu0 %v2782
    %2991 = vmatpush1.bf16.msra.mxu0 %v2781
    %2992 = vmatprep.subr.bf16.mxu0 %v2784
    %2993 = vmatpush1.bf16.msra.mxu0 %v2783
    %2994 = vmatprep.subr.bf16.mxu0 %v2786
    %2995 = vmatpush1.bf16.msra.mxu0 %v2785
    %2996 = vmatprep.subr.bf16.mxu0 %v2788
    %2997 = vmatpush1.bf16.msra.mxu0 %v2787
    %2998 = vmatprep.subr.bf16.mxu0 %v2790
    %2999 = vmatpush1.bf16.msra.mxu0 %v2789
    %3000 = vmatprep.subr.bf16.mxu0 %v2792
    %3001 = vmatpush1.bf16.msra.mxu0 %v2791
    %3002 = vmatprep.subr.bf16.mxu0 %v2794
    %3003 = vmatpush1.bf16.msra.mxu0 %v2793
    %3004 = vmatprep.subr.bf16.mxu0 %v2796
    %3005 = vmatpush1.bf16.msra.mxu0 %v2795
    %3006 = vmatprep.subr.bf16.mxu0 %v2798
    %3007 = vmatpush1.bf16.msra.mxu0 %v2797
    %3008 = vmatprep.subr.bf16.mxu0 %v2800
    %3009 = vmatpush1.bf16.msra.mxu0 %v2799
    %3010 = vmatprep.subr.bf16.mxu0 %v2802
    %3011 = vmatpush1.bf16.msra.mxu0 %v2801
    %3012 = vmatprep.subr.bf16.mxu0 %v2804
    %3013 = vmatpush1.bf16.msra.mxu0 %v2803
    %3014 = vmatprep.subr.bf16.mxu0 %v2806
    %3015 = vmatpush1.bf16.msra.mxu0 %v2805
    %3016 = vmatprep.mubr.bf16.mxu0 %v2446
    %3017 = vmatmul.mubr.bf16.gmra.mrb[0].mxu0 %v2445
    %v3018 = vpop.f32.mrb[0].mxu0
    %v3019 = vadd.f32 %v2906, %v3018
    %v3020 = vpop.f32.mrb[0].mxu0
    %v3021 = vadd.f32 %v2908, %v3020
    %v3022 = vpop.f32.mrb[0].mxu0
    %v3023 = vadd.f32 %v2910, %v3022
    %v3024 = vpop.f32.mrb[0].mxu0
    %v3025 = vadd.f32 %v2912, %v3024
    %3026 = vmatprep.mubr.bf16.mxu0 %v2450
    %3027 = vmatmul.mubr.bf16.gmra.mrb[0].mxu0 %v2449
    %v3028 = vpop.f32.mrb[0].mxu0
    %v3029 = vadd.f32 %v2916, %v3028
    %v3030 = vpop.f32.mrb[0].mxu0
    %v3031 = vadd.f32 %v2918, %v3030
    %v3032 = vpop.f32.mrb[0].mxu0
    %v3033 = vadd.f32 %v2920, %v3032
    %v3034 = vpop.f32.mrb[0].mxu0
    %v3035 = vadd.f32 %v2922, %v3034
    %3036 = vmatprep.mubr.bf16.mxu0 %v2454
    %3037 = vmatmul.mubr.bf16.gmra.mrb[0].mxu0 %v2453
    %v3038 = vpop.f32.mrb[0].mxu0
    %v3039 = vadd.f32 %v2926, %v3038
    %v3040 = vpop.f32.mrb[0].mxu0
    %v3041 = vadd.f32 %v2928, %v3040
    %v3042 = vpop.f32.mrb[0].mxu0
    %v3043 = vadd.f32 %v2930, %v3042
    %v3044 = vpop.f32.mrb[0].mxu0
    %v3045 = vadd.f32 %v2932, %v3044
    %3046 = vmatprep.mubr.bf16.mxu0 %v2458
    %3047 = vmatmul.mubr.bf16.gmra.mrb[0].mxu0 %v2457
    %v3048 = vpop.f32.mrb[0].mxu0
    %v3049 = vadd.f32 %v2936, %v3048
    %v3050 = vpop.f32.mrb[0].mxu0
    %v3051 = vadd.f32 %v2938, %v3050
    %v3052 = vpop.f32.mrb[0].mxu0
    %v3053 = vadd.f32 %v2940, %v3052
    %v3054 = vpop.f32.mrb[0].mxu0
    %v3055 = vadd.f32 %v2942, %v3054
    %3056 = vmatprep.mubr.bf16.mxu0 %v2462
    %3057 = vmatmul.mubr.bf16.gmra.mrb[0].mxu0 %v2461
    %v3058 = vpop.f32.mrb[0].mxu0
    %v3059 = vadd.f32 %v2946, %v3058
    %v3060 = vpop.f32.mrb[0].mxu0
    %v3061 = vadd.f32 %v2948, %v3060
    %v3062 = vpop.f32.mrb[0].mxu0
    %v3063 = vadd.f32 %v2950, %v3062
    %v3064 = vpop.f32.mrb[0].mxu0
    %v3065 = vadd.f32 %v2952, %v3064
    %3066 = vmatprep.mubr.bf16.mxu0 %v2466
    %3067 = vmatmul.mubr.bf16.gmra.mrb[0].mxu0 %v2465
    %v3068 = vpop.f32.mrb[0].mxu0
    %v3069 = vadd.f32 %v2956, %v3068
    %v3070 = vpop.f32.mrb[0].mxu0
    %v3071 = vadd.f32 %v2958, %v3070
    %v3072 = vpop.f32.mrb[0].mxu0
    %v3073 = vadd.f32 %v2960, %v3072
    %v3074 = vpop.f32.mrb[0].mxu0
    %v3075 = vadd.f32 %v2962, %v3074
    %3076 = vmatprep.mubr.bf16.mxu0 %v2470
    %3077 = vmatmul.mubr.bf16.gmra.mrb[0].mxu0 %v2469
    %v3078 = vpop.f32.mrb[0].mxu0
    %v3079 = vadd.f32 %v2966, %v3078
    %v3080 = vpop.f32.mrb[0].mxu0
    %v3081 = vadd.f32 %v2968, %v3080
    %v3082 = vpop.f32.mrb[0].mxu0
    %v3083 = vadd.f32 %v2970, %v3082
    %v3084 = vpop.f32.mrb[0].mxu0
    %v3085 = vadd.f32 %v2972, %v3084
    %3086 = vmatprep.mubr.bf16.mxu0 %v2474
    %3087 = vmatmul.mubr.bf16.gmra.mrb[0].mxu0 %v2473
    %v3088 = vpop.f32.mrb[0].mxu0
    %v3089 = vadd.f32 %v2976, %v3088
    %v3090 = vpop.f32.mrb[0].mxu0
    %v3091 = vadd.f32 %v2978, %v3090
    %v3092 = vpop.f32.mrb[0].mxu0
    %v3093 = vadd.f32 %v2980, %v3092
    %v3094 = vpop.f32.mrb[0].mxu0
    %v3095 = vadd.f32 %v2982, %v3094
    %3096 = vdwg.mxu0
    %v3097 = vpack.c.bf16 %v3023, %v3019
    %v3098 = vpack.c.bf16 %v3025, %v3021
    %v3099 = vpack.c.bf16 %v3033, %v3029
    %v3100 = vpack.c.bf16 %v3035, %v3031
    %v3101 = vpack.c.bf16 %v3043, %v3039
    %v3102 = vpack.c.bf16 %v3045, %v3041
    %v3103 = vpack.c.bf16 %v3053, %v3049
    %v3104 = vpack.c.bf16 %v3055, %v3051
    %v3105 = vpack.c.bf16 %v3063, %v3059
    %v3106 = vpack.c.bf16 %v3065, %v3061
    %v3107 = vpack.c.bf16 %v3073, %v3069
    %v3108 = vpack.c.bf16 %v3075, %v3071
    %v3109 = vpack.c.bf16 %v3083, %v3079
    %v3110 = vpack.c.bf16 %v3085, %v3081
    %v3111 = vpack.c.bf16 %v3093, %v3089
    %v3112 = vpack.c.bf16 %v3095, %v3091
    %v3113 = vmax.bf16 %v3097, 0
    %v3114 = vmax.bf16 %v3098, 0
    %v3115 = vmax.bf16 %v3099, 0
    %v3116 = vmax.bf16 %v3100, 0
    %v3117 = vmax.bf16 %v3101, 0
    %v3118 = vmax.bf16 %v3102, 0
    %v3119 = vmax.bf16 %v3103, 0
    %v3120 = vmax.bf16 %v3104, 0
    %v3121 = vmax.bf16 %v3105, 0
    %v3122 = vmax.bf16 %v3106, 0
    %v3123 = vmax.bf16 %v3107, 0
    %v3124 = vmax.bf16 %v3108, 0
    %v3125 = vmax.bf16 %v3109, 0
    %v3126 = vmax.bf16 %v3110, 0
    %v3127 = vmax.bf16 %v3111, 0
    %v3128 = vmax.bf16 %v3112, 0
    %v3129 = vld [vmem:[%s5] sm:$0xf]
    %v3130 = vld [vmem:[%s5 + $0x4] sm:$0xf]
    %v3131 = vld [vmem:[%s5 + $0x8] sm:$0xf]
    %v3132 = vld [vmem:[%s5 + $0xc] sm:$0xf]
    %v3133 = vld [vmem:[%s5 + $0x10] sm:$0xf]
    %v3134 = vld [vmem:[%s5 + $0x14] sm:$0xf]
    %v3135 = vld [vmem:[%s5 + $0x18] sm:$0xf]
    %v3136 = vld [vmem:[%s5 + $0x1c] sm:$0xf]
    %v3137 = vld [vmem:[%s5 + $0x20] sm:$0xf]
    %v3138 = vld [vmem:[%s5 + $0x24] sm:$0xf]
    %v3139 = vld [vmem:[%s5 + $0x28] sm:$0xf]
    %v3140 = vld [vmem:[%s5 + $0x2c] sm:$0xf]
    %v3141 = vld [vmem:[%s5 + $0x30] sm:$0xf]
    %v3142 = vld [vmem:[%s5 + $0x34] sm:$0xf]
    %v3143 = vld [vmem:[%s5 + $0x38] sm:$0xf]
    %v3144 = vld [vmem:[%s5 + $0x3c] sm:$0xf]
    %v3145 = vld [vmem:[%s5 + $0x40] sm:$0xf]
    %v3146 = vld [vmem:[%s5 + $0x44] sm:$0xf]
    %v3147 = vld [vmem:[%s5 + $0x48] sm:$0xf]
    %v3148 = vld [vmem:[%s5 + $0x4c] sm:$0xf]
    %v3149 = vld [vmem:[%s5 + $0x50] sm:$0xf]
    %v3150 = vld [vmem:[%s5 + $0x54] sm:$0xf]
    %v3151 = vld [vmem:[%s5 + $0x58] sm:$0xf]
    %v3152 = vld [vmem:[%s5 + $0x5c] sm:$0xf]
    %v3153 = vld [vmem:[%s5 + $0x60] sm:$0xf]
    %v3154 = vld [vmem:[%s5 + $0x64] sm:$0xf]
    %v3155 = vld [vmem:[%s5 + $0x68] sm:$0xf]
    %v3156 = vld [vmem:[%s5 + $0x6c] sm:$0xf]
    %v3157 = vld [vmem:[%s5 + $0x70] sm:$0xf]
    %v3158 = vld [vmem:[%s5 + $0x74] sm:$0xf]
    %v3159 = vld [vmem:[%s5 + $0x78] sm:$0xf]
    %v3160 = vld [vmem:[%s5 + $0x7c] sm:$0xf]
    %v3161 = vld [vmem:[#allocation7] sm:$0x1]
    %v3163 = vlaneseq
    %v3164 = vshrl.u32 %v3163, 7
    %v3165 = vsub.s32 0, %v3164
    %v3166 = vrot.slane %v3161, %v3165
    %v3200 = vunpack.c.l.b16 %v3129
    %v3201 = vunpack.c.l.b16 %v3130
    %v3202 = vunpack.c.l.b16 %v3131
    %v3203 = vunpack.c.l.b16 %v3132
    %v3204 = vunpack.c.l.b16 %v3133
    %v3205 = vunpack.c.l.b16 %v3134
    %v3206 = vunpack.c.l.b16 %v3135
    %v3207 = vunpack.c.l.b16 %v3136
    %v3208 = vunpack.c.l.b16 %v3137
    %v3209 = vunpack.c.l.b16 %v3138
    %v3210 = vunpack.c.l.b16 %v3139
    %v3211 = vunpack.c.l.b16 %v3140
    %v3212 = vunpack.c.l.b16 %v3141
    %v3213 = vunpack.c.l.b16 %v3142
    %v3214 = vunpack.c.l.b16 %v3143
    %v3215 = vunpack.c.l.b16 %v3144
    %v3216 = vunpack.c.l.b16 %v3145
    %v3217 = vunpack.c.l.b16 %v3146
    %v3218 = vunpack.c.l.b16 %v3147
    %v3219 = vunpack.c.l.b16 %v3148
    %v3220 = vunpack.c.l.b16 %v3149
    %v3221 = vunpack.c.l.b16 %v3150
    %v3222 = vunpack.c.l.b16 %v3151
    %v3223 = vunpack.c.l.b16 %v3152
    %v3224 = vunpack.c.l.b16 %v3153
    %v3225 = vunpack.c.l.b16 %v3154
    %v3226 = vunpack.c.l.b16 %v3155
    %v3227 = vunpack.c.l.b16 %v3156
    %v3228 = vunpack.c.l.b16 %v3157
    %v3229 = vunpack.c.l.b16 %v3158
    %v3230 = vunpack.c.l.b16 %v3159
    %v3231 = vunpack.c.l.b16 %v3160
    %v3232 = vpack.c.b16 %v3201, %v3200
    %v3233 = vpack.c.b16 %v3203, %v3202
    %v3234 = vpack.c.b16 %v3205, %v3204
    %v3235 = vpack.c.b16 %v3207, %v3206
    %v3236 = vpack.c.b16 %v3209, %v3208
    %v3237 = vpack.c.b16 %v3211, %v3210
    %v3238 = vpack.c.b16 %v3213, %v3212
    %v3239 = vpack.c.b16 %v3215, %v3214
    %v3240 = vpack.c.b16 %v3217, %v3216
    %v3241 = vpack.c.b16 %v3219, %v3218
    %v3242 = vpack.c.b16 %v3221, %v3220
    %v3243 = vpack.c.b16 %v3223, %v3222
    %v3244 = vpack.c.b16 %v3225, %v3224
    %v3245 = vpack.c.b16 %v3227, %v3226
    %v3246 = vpack.c.b16 %v3229, %v3228
    %v3247 = vpack.c.b16 %v3231, %v3230
    %3264 = vmatprep.subr.bf16.mxu0 0
    %3265 = vmatpush1.bf16.msra.mxu0 %v3232
    %3266 = vmatprep.subr.bf16.mxu0 0
    %3267 = vmatpush1.bf16.msra.mxu0 %v3233
    %3268 = vmatprep.subr.bf16.mxu0 0
    %3269 = vmatpush1.bf16.msra.mxu0 %v3234
    %3270 = vmatprep.subr.bf16.mxu0 0
    %3271 = vmatpush1.bf16.msra.mxu0 %v3235
    %3272 = vmatprep.subr.bf16.mxu0 0
    %3273 = vmatpush1.bf16.msra.mxu0 %v3236
    %3274 = vmatprep.subr.bf16.mxu0 0
    %3275 = vmatpush1.bf16.msra.mxu0 %v3237
    %3276 = vmatprep.subr.bf16.mxu0 0
    %3277 = vmatpush1.bf16.msra.mxu0 %v3238
    %3278 = vmatprep.subr.bf16.mxu0 0
    %3279 = vmatpush1.bf16.msra.mxu0 %v3239
    %3280 = vmatprep.subr.bf16.mxu0 0
    %3281 = vmatpush1.bf16.msra.mxu0 %v3240
    %3282 = vmatprep.subr.bf16.mxu0 0
    %3283 = vmatpush1.bf16.msra.mxu0 %v3241
    %3284 = vmatprep.subr.bf16.mxu0 0
    %3285 = vmatpush1.bf16.msra.mxu0 %v3242
    %3286 = vmatprep.subr.bf16.mxu0 0
    %3287 = vmatpush1.bf16.msra.mxu0 %v3243
    %3288 = vmatprep.subr.bf16.mxu0 0
    %3289 = vmatpush1.bf16.msra.mxu0 %v3244
    %3290 = vmatprep.subr.bf16.mxu0 0
    %3291 = vmatpush1.bf16.msra.mxu0 %v3245
    %3292 = vmatprep.subr.bf16.mxu0 0
    %3293 = vmatpush1.bf16.msra.mxu0 %v3246
    %3294 = vmatprep.subr.bf16.mxu0 0
    %3295 = vmatpush1.bf16.msra.mxu0 %v3247
    %3296 = vmatprep.mubr.bf16.mxu0 %v3114
    %3297 = vmatmul.mubr.bf16.gmra.mrb[0].mxu0 %v3113
    %v3298 = vpop.f32.mrb[0].mxu0
    %v3299 = vadd.f32 %v3166, %v3298
    %v3300 = vpop.f32.mrb[0].mxu0
    %v3301 = vpop.f32.mrb[0].mxu0
    %v3302 = vadd.f32 %v3166, %v3301
    %v3303 = vpop.f32.mrb[0].mxu0
    %3304 = vmatprep.mubr.bf16.mxu0 %v3116
    %3305 = vmatmul.mubr.bf16.gmra.mrb[0].mxu0 %v3115
    %v3306 = vpop.f32.mrb[0].mxu0
    %v3307 = vadd.f32 %v3166, %v3306
    %v3308 = vpop.f32.mrb[0].mxu0
    %v3309 = vpop.f32.mrb[0].mxu0
    %v3310 = vadd.f32 %v3166, %v3309
    %v3311 = vpop.f32.mrb[0].mxu0
    %3312 = vmatprep.mubr.bf16.mxu0 %v3118
    %3313 = vmatmul.mubr.bf16.gmra.mrb[0].mxu0 %v3117
    %v3314 = vpop.f32.mrb[0].mxu0
    %v3315 = vadd.f32 %v3166, %v3314
    %v3316 = vpop.f32.mrb[0].mxu0
    %v3317 = vpop.f32.mrb[0].mxu0
    %v3318 = vadd.f32 %v3166, %v3317
    %v3319 = vpop.f32.mrb[0].mxu0
    %3320 = vmatprep.mubr.bf16.mxu0 %v3120
    %3321 = vmatmul.mubr.bf16.gmra.mrb[0].mxu0 %v3119
    %v3322 = vpop.f32.mrb[0].mxu0
    %v3323 = vadd.f32 %v3166, %v3322
    %v3324 = vpop.f32.mrb[0].mxu0
    %v3325 = vpop.f32.mrb[0].mxu0
    %v3326 = vadd.f32 %v3166, %v3325
    %v3327 = vpop.f32.mrb[0].mxu0
    %3328 = vmatprep.mubr.bf16.mxu0 %v3122
    %3329 = vmatmul.mubr.bf16.gmra.mrb[0].mxu0 %v3121
    %v3330 = vpop.f32.mrb[0].mxu0
    %v3331 = vadd.f32 %v3166, %v3330
    %v3332 = vpop.f32.mrb[0].mxu0
    %v3333 = vpop.f32.mrb[0].mxu0
    %v3334 = vadd.f32 %v3166, %v3333
    %v3335 = vpop.f32.mrb[0].mxu0
    %3336 = vmatprep.mubr.bf16.mxu0 %v3124
    %3337 = vmatmul.mubr.bf16.gmra.mrb[0].mxu0 %v3123
    %v3338 = vpop.f32.mrb[0].mxu0
    %v3339 = vadd.f32 %v3166, %v3338
    %v3340 = vpop.f32.mrb[0].mxu0
    %v3341 = vpop.f32.mrb[0].mxu0
    %v3342 = vadd.f32 %v3166, %v3341
    %v3343 = vpop.f32.mrb[0].mxu0
    %3344 = vmatprep.mubr.bf16.mxu0 %v3126
    %3345 = vmatmul.mubr.bf16.gmra.mrb[0].mxu0 %v3125
    %v3346 = vpop.f32.mrb[0].mxu0
    %v3347 = vadd.f32 %v3166, %v3346
    %v3348 = vpop.f32.mrb[0].mxu0
    %v3349 = vpop.f32.mrb[0].mxu0
    %v3350 = vadd.f32 %v3166, %v3349
    %v3351 = vpop.f32.mrb[0].mxu0
    %3352 = vmatprep.mubr.bf16.mxu0 %v3128
    %3353 = vmatmul.mubr.bf16.gmra.mrb[0].mxu0 %v3127
    %v3354 = vpop.f32.mrb[0].mxu0
    %v3355 = vadd.f32 %v3166, %v3354
    %v3356 = vpop.f32.mrb[0].mxu0
    %v3357 = vpop.f32.mrb[0].mxu0
    %v3358 = vadd.f32 %v3166, %v3357
    %v3359 = vpop.f32.mrb[0].mxu0
    %3360 = vdwg.mxu0
    %v3361 = vpack.c.bf16 %v3302, %v3299
    %v3362 = vpack.c.bf16 %v3310, %v3307
    %v3363 = vpack.c.bf16 %v3318, %v3315
    %v3364 = vpack.c.bf16 %v3326, %v3323
    %v3365 = vpack.c.bf16 %v3334, %v3331
    %v3366 = vpack.c.bf16 %v3342, %v3339
    %v3367 = vpack.c.bf16 %v3350, %v3347
    %v3368 = vpack.c.bf16 %v3358, %v3355
    %v3369 = vmax.bf16 %v3361, 0
    %v3370 = vmax.bf16 %v3362, 0
    %v3371 = vmax.bf16 %v3363, 0
    %v3372 = vmax.bf16 %v3364, 0
    %v3373 = vmax.bf16 %v3365, 0
    %v3374 = vmax.bf16 %v3366, 0
    %v3375 = vmax.bf16 %v3367, 0
    %v3376 = vmax.bf16 %v3368, 0
    %v3377 = vld [vmem:[#allocation8] sm:$0xf]
    %v3378 = vld [vmem:[#allocation8 + $0x4] sm:$0xf]
    %v3379 = vld [vmem:[#allocation8 + $0x8] sm:$0xf]
    %v3380 = vld [vmem:[#allocation8 + $0xc] sm:$0xf]
    %v3381 = vld [vmem:[#allocation8 + $0x10] sm:$0xf]
    %v3382 = vld [vmem:[#allocation8 + $0x14] sm:$0xf]
    %v3383 = vld [vmem:[#allocation8 + $0x18] sm:$0xf]
    %v3384 = vld [vmem:[#allocation8 + $0x1c] sm:$0xf]
    %v3385 = vld [vmem:[#allocation8 + $0x20] sm:$0xf]
    %v3386 = vld [vmem:[#allocation8 + $0x24] sm:$0xf]
    %v3387 = vld [vmem:[#allocation8 + $0x28] sm:$0xf]
    %v3388 = vld [vmem:[#allocation8 + $0x2c] sm:$0xf]
    %v3389 = vld [vmem:[#allocation8 + $0x30] sm:$0xf]
    %v3390 = vld [vmem:[#allocation8 + $0x34] sm:$0xf]
    %v3391 = vld [vmem:[#allocation8 + $0x38] sm:$0xf]
    %v3392 = vld [vmem:[#allocation8 + $0x3c] sm:$0xf]
    %v3393 = vld [vmem:[#allocation10] sm:$0x1]
    %v3395 = vlaneseq
    %v3396 = vshrl.u32 %v3395, 7
    %v3397 = vsub.s32 0, %v3396
    %v3398 = vrot.slane %v3393, %v3397
    %v3416 = vunpack.c.l.b16 %v3377
    %v3417 = vunpack.c.l.b16 %v3378
    %v3418 = vunpack.c.l.b16 %v3379
    %v3419 = vunpack.c.l.b16 %v3380
    %v3420 = vunpack.c.l.b16 %v3381
    %v3421 = vunpack.c.l.b16 %v3382
    %v3422 = vunpack.c.l.b16 %v3383
    %v3423 = vunpack.c.l.b16 %v3384
    %v3424 = vunpack.c.l.b16 %v3385
    %v3425 = vunpack.c.l.b16 %v3386
    %v3426 = vunpack.c.l.b16 %v3387
    %v3427 = vunpack.c.l.b16 %v3388
    %v3428 = vunpack.c.l.b16 %v3389
    %v3429 = vunpack.c.l.b16 %v3390
    %v3430 = vunpack.c.l.b16 %v3391
    %v3431 = vunpack.c.l.b16 %v3392
    %v3432 = vpack.c.b16 %v3417, %v3416
    %v3433 = vpack.c.b16 %v3419, %v3418
    %v3434 = vpack.c.b16 %v3421, %v3420
    %v3435 = vpack.c.b16 %v3423, %v3422
    %v3436 = vpack.c.b16 %v3425, %v3424
    %v3437 = vpack.c.b16 %v3427, %v3426
    %v3438 = vpack.c.b16 %v3429, %v3428
    %v3439 = vpack.c.b16 %v3431, %v3430
    %3448 = vmatprep.subr.bf16.mxu0 0
    %3449 = vmatpush1.bf16.msra.mxu0 %v3432
    %3450 = vmatprep.subr.bf16.mxu0 0
    %3451 = vmatpush1.bf16.msra.mxu0 %v3433
    %3452 = vmatprep.subr.bf16.mxu0 0
    %3453 = vmatpush1.bf16.msra.mxu0 %v3434
    %3454 = vmatprep.subr.bf16.mxu0 0
    %3455 = vmatpush1.bf16.msra.mxu0 %v3435
    %3456 = vmatprep.subr.bf16.mxu0 0
    %3457 = vmatpush1.bf16.msra.mxu0 %v3436
    %3458 = vmatprep.subr.bf16.mxu0 0
    %3459 = vmatpush1.bf16.msra.mxu0 %v3437
    %3460 = vmatprep.subr.bf16.mxu0 0
    %3461 = vmatpush1.bf16.msra.mxu0 %v3438
    %3462 = vmatprep.subr.bf16.mxu0 0
    %3463 = vmatpush1.bf16.msra.mxu0 %v3439
    %3464 = vmatprep.subr.bf16.mxu0 0
    %3465 = vmatpush1.bf16.msra.mxu0 0
    %3466 = vmatprep.subr.bf16.mxu0 0
    %3467 = vmatpush1.bf16.msra.mxu0 0
    %3468 = vmatprep.subr.bf16.mxu0 0
    %3469 = vmatpush1.bf16.msra.mxu0 0
    %3470 = vmatprep.subr.bf16.mxu0 0
    %3471 = vmatpush1.bf16.msra.mxu0 0
    %3472 = vmatprep.subr.bf16.mxu0 0
    %3473 = vmatpush1.bf16.msra.mxu0 0
    %3474 = vmatprep.subr.bf16.mxu0 0
    %3475 = vmatpush1.bf16.msra.mxu0 0
    %3476 = vmatprep.subr.bf16.mxu0 0
    %3477 = vmatpush1.bf16.msra.mxu0 0
    %3478 = vmatprep.subr.bf16.mxu0 0
    %3479 = vmatpush1.bf16.msra.mxu0 0
    %3480 = vmatprep.mubr.bf16.mxu0 0
    %3481 = vmatmul.mubr.bf16.gmra.mrb[0].mxu0 %v3369
    %v3482 = vpop.f32.mrb[0].mxu0
    %v3483 = vadd.f32 %v3398, %v3482
    %v3484 = vpop.f32.mrb[0].mxu0
    %v3485 = vpop.f32.mrb[0].mxu0
    %v3486 = vadd.f32 %v3398, %v3485
    %v3487 = vpop.f32.mrb[0].mxu0
    %3488 = vmatprep.mubr.bf16.mxu0 0
    %3489 = vmatmul.mubr.bf16.gmra.mrb[0].mxu0 %v3370
    %v3490 = vpop.f32.mrb[0].mxu0
    %v3491 = vadd.f32 %v3398, %v3490
    %v3492 = vpop.f32.mrb[0].mxu0
    %v3493 = vpop.f32.mrb[0].mxu0
    %v3494 = vadd.f32 %v3398, %v3493
    %v3495 = vpop.f32.mrb[0].mxu0
    %3496 = vmatprep.mubr.bf16.mxu0 0
    %3497 = vmatmul.mubr.bf16.gmra.mrb[0].mxu0 %v3371
    %v3498 = vpop.f32.mrb[0].mxu0
    %v3499 = vadd.f32 %v3398, %v3498
    %v3500 = vpop.f32.mrb[0].mxu0
    %v3501 = vpop.f32.mrb[0].mxu0
    %v3502 = vadd.f32 %v3398, %v3501
    %v3503 = vpop.f32.mrb[0].mxu0
    %3504 = vmatprep.mubr.bf16.mxu0 0
    %3505 = vmatmul.mubr.bf16.gmra.mrb[0].mxu0 %v3372
    %v3506 = vpop.f32.mrb[0].mxu0
    %v3507 = vadd.f32 %v3398, %v3506
    %v3508 = vpop.f32.mrb[0].mxu0
    %v3509 = vpop.f32.mrb[0].mxu0
    %v3510 = vadd.f32 %v3398, %v3509
    %v3511 = vpop.f32.mrb[0].mxu0
    %3512 = vmatprep.mubr.bf16.mxu0 0
    %3513 = vmatmul.mubr.bf16.gmra.mrb[0].mxu0 %v3373
    %v3514 = vpop.f32.mrb[0].mxu0
    %v3515 = vadd.f32 %v3398, %v3514
    %v3516 = vpop.f32.mrb[0].mxu0
    %v3517 = vpop.f32.mrb[0].mxu0
    %v3518 = vadd.f32 %v3398, %v3517
    %v3519 = vpop.f32.mrb[0].mxu0
    %3520 = vmatprep.mubr.bf16.mxu0 0
    %3521 = vmatmul.mubr.bf16.gmra.mrb[0].mxu0 %v3374
    %v3522 = vpop.f32.mrb[0].mxu0
    %v3523 = vadd.f32 %v3398, %v3522
    %v3524 = vpop.f32.mrb[0].mxu0
    %v3525 = vpop.f32.mrb[0].mxu0
    %v3526 = vadd.f32 %v3398, %v3525
    %v3527 = vpop.f32.mrb[0].mxu0
    %3528 = vmatprep.mubr.bf16.mxu0 0
    %3529 = vmatmul.mubr.bf16.gmra.mrb[0].mxu0 %v3375
    %v3530 = vpop.f32.mrb[0].mxu0
    %v3531 = vadd.f32 %v3398, %v3530
    %v3532 = vpop.f32.mrb[0].mxu0
    %v3533 = vpop.f32.mrb[0].mxu0
    %v3534 = vadd.f32 %v3398, %v3533
    %v3535 = vpop.f32.mrb[0].mxu0
    %3536 = vmatprep.mubr.bf16.mxu0 0
    %3537 = vmatmul.mubr.bf16.gmra.mrb[0].mxu0 %v3376
    %v3538 = vpop.f32.mrb[0].mxu0
    %v3539 = vadd.f32 %v3398, %v3538
    %v3540 = vpop.f32.mrb[0].mxu0
    %v3541 = vpop.f32.mrb[0].mxu0
    %v3542 = vadd.f32 %v3398, %v3541
    %v3543 = vpop.f32.mrb[0].mxu0
    %3544 = vdwg.mxu0
    %v3545 = vpack.c.bf16 %v3486, %v3483
    %v3546 = vpack.c.bf16 %v3494, %v3491
    %v3547 = vpack.c.bf16 %v3502, %v3499
    %v3548 = vpack.c.bf16 %v3510, %v3507
    %v3549 = vpack.c.bf16 %v3518, %v3515
    %v3550 = vpack.c.bf16 %v3526, %v3523
    %v3551 = vpack.c.bf16 %v3534, %v3531
    %v3552 = vpack.c.bf16 %v3542, %v3539
    %v3553 = vmax.bf16 %v3545, 0
    %v3554 = vmax.bf16 %v3546, 0
    %v3555 = vmax.bf16 %v3547, 0
    %v3556 = vmax.bf16 %v3548, 0
    %v3557 = vmax.bf16 %v3549, 0
    %v3558 = vmax.bf16 %v3550, 0
    %v3559 = vmax.bf16 %v3551, 0
    %v3560 = vmax.bf16 %v3552, 0
    %v3561 = vld [vmem:[#allocation11] sm:$0xf]
    %v3562 = vld [vmem:[#allocation11 + $0x4] sm:$0xf]
    %v3563 = vld [vmem:[#allocation11 + $0x8] sm:$0xf]
    %v3564 = vld [vmem:[#allocation11 + $0xc] sm:$0xf]
    %v3565 = vld [vmem:[#allocation11 + $0x10] sm:$0xf]
    %v3566 = vld [vmem:[#allocation11 + $0x14] sm:$0xf]
    %v3567 = vld [vmem:[#allocation11 + $0x18] sm:$0xf]
    %v3568 = vld [vmem:[#allocation11 + $0x1c] sm:$0xf]
    %v3569 = vld [vmem:[#allocation11 + $0x20] sm:$0xf]
    %v3570 = vld [vmem:[#allocation11 + $0x24] sm:$0xf]
    %v3571 = vld [vmem:[#allocation11 + $0x28] sm:$0xf]
    %v3572 = vld [vmem:[#allocation11 + $0x2c] sm:$0xf]
    %v3573 = vld [vmem:[#allocation11 + $0x30] sm:$0xf]
    %v3574 = vld [vmem:[#allocation11 + $0x34] sm:$0xf]
    %v3575 = vld [vmem:[#allocation11 + $0x38] sm:$0xf]
    %v3576 = vld [vmem:[#allocation11 + $0x3c] sm:$0xf]
    %v3577 = vld [vmem:[%s10] sm:$0x1]
    %v3579 = vlaneseq
    %v3580 = vshrl.u32 %v3579, 7
    %v3581 = vsub.s32 0, %v3580
    %v3582 = vrot.slane %v3577, %v3581
    %v3600 = vunpack.c.l.b16 %v3561
    %v3601 = vunpack.c.l.b16 %v3562
    %v3602 = vunpack.c.l.b16 %v3563
    %v3603 = vunpack.c.l.b16 %v3564
    %v3604 = vunpack.c.l.b16 %v3565
    %v3605 = vunpack.c.l.b16 %v3566
    %v3606 = vunpack.c.l.b16 %v3567
    %v3607 = vunpack.c.l.b16 %v3568
    %v3608 = vunpack.c.l.b16 %v3569
    %v3609 = vunpack.c.l.b16 %v3570
    %v3610 = vunpack.c.l.b16 %v3571
    %v3611 = vunpack.c.l.b16 %v3572
    %v3612 = vunpack.c.l.b16 %v3573
    %v3613 = vunpack.c.l.b16 %v3574
    %v3614 = vunpack.c.l.b16 %v3575
    %v3615 = vunpack.c.l.b16 %v3576
    %v3616 = vpack.c.b16 %v3601, %v3600
    %v3617 = vpack.c.b16 %v3603, %v3602
    %v3618 = vpack.c.b16 %v3605, %v3604
    %v3619 = vpack.c.b16 %v3607, %v3606
    %v3620 = vpack.c.b16 %v3609, %v3608
    %v3621 = vpack.c.b16 %v3611, %v3610
    %v3622 = vpack.c.b16 %v3613, %v3612
    %v3623 = vpack.c.b16 %v3615, %v3614
    %3632 = vmatprep.subr.bf16.mxu0 0
    %3633 = vmatpush1.bf16.msra.mxu0 %v3616
    %3634 = vmatprep.subr.bf16.mxu0 0
    %3635 = vmatpush1.bf16.msra.mxu0 %v3617
    %3636 = vmatprep.subr.bf16.mxu0 0
    %3637 = vmatpush1.bf16.msra.mxu0 %v3618
    %3638 = vmatprep.subr.bf16.mxu0 0
    %3639 = vmatpush1.bf16.msra.mxu0 %v3619
    %3640 = vmatprep.subr.bf16.mxu0 0
    %3641 = vmatpush1.bf16.msra.mxu0 %v3620
    %3642 = vmatprep.subr.bf16.mxu0 0
    %3643 = vmatpush1.bf16.msra.mxu0 %v3621
    %3644 = vmatprep.subr.bf16.mxu0 0
    %3645 = vmatpush1.bf16.msra.mxu0 %v3622
    %3646 = vmatprep.subr.bf16.mxu0 0
    %3647 = vmatpush1.bf16.msra.mxu0 %v3623
    %3648 = vmatprep.subr.bf16.mxu0 0
    %3649 = vmatpush1.bf16.msra.mxu0 0
    %3650 = vmatprep.subr.bf16.mxu0 0
    %3651 = vmatpush1.bf16.msra.mxu0 0
    %3652 = vmatprep.subr.bf16.mxu0 0
    %3653 = vmatpush1.bf16.msra.mxu0 0
    %3654 = vmatprep.subr.bf16.mxu0 0
    %3655 = vmatpush1.bf16.msra.mxu0 0
    %3656 = vmatprep.subr.bf16.mxu0 0
    %3657 = vmatpush1.bf16.msra.mxu0 0
    %3658 = vmatprep.subr.bf16.mxu0 0
    %3659 = vmatpush1.bf16.msra.mxu0 0
    %3660 = vmatprep.subr.bf16.mxu0 0
    %3661 = vmatpush1.bf16.msra.mxu0 0
    %3662 = vmatprep.subr.bf16.mxu0 0
    %3663 = vmatpush1.bf16.msra.mxu0 0
    %3664 = vmatprep.mubr.bf16.mxu0 0
    %3665 = vmatmul.mubr.bf16.gmra.mrb[0].mxu0 %v3553
    %v3666 = vpop.f32.mrb[0].mxu0
    %v3667 = vadd.f32 %v3582, %v3666
    %v3668 = vpop.f32.mrb[0].mxu0
    %v3669 = vpop.f32.mrb[0].mxu0
    %v3670 = vadd.f32 %v3582, %v3669
    %v3671 = vpop.f32.mrb[0].mxu0
    %3672 = vmatprep.mubr.bf16.mxu0 0
    %3673 = vmatmul.mubr.bf16.gmra.mrb[0].mxu0 %v3554
    %v3674 = vpop.f32.mrb[0].mxu0
    %v3675 = vadd.f32 %v3582, %v3674
    %v3676 = vpop.f32.mrb[0].mxu0
    %v3677 = vpop.f32.mrb[0].mxu0
    %v3678 = vadd.f32 %v3582, %v3677
    %v3679 = vpop.f32.mrb[0].mxu0
    %3680 = vmatprep.mubr.bf16.mxu0 0
    %3681 = vmatmul.mubr.bf16.gmra.mrb[0].mxu0 %v3555
    %v3682 = vpop.f32.mrb[0].mxu0
    %v3683 = vadd.f32 %v3582, %v3682
    %v3684 = vpop.f32.mrb[0].mxu0
    %v3685 = vpop.f32.mrb[0].mxu0
    %v3686 = vadd.f32 %v3582, %v3685
    %v3687 = vpop.f32.mrb[0].mxu0
    %3688 = vmatprep.mubr.bf16.mxu0 0
    %3689 = vmatmul.mubr.bf16.gmra.mrb[0].mxu0 %v3556
    %v3690 = vpop.f32.mrb[0].mxu0
    %v3691 = vadd.f32 %v3582, %v3690
    %v3692 = vpop.f32.mrb[0].mxu0
    %v3693 = vpop.f32.mrb[0].mxu0
    %v3694 = vadd.f32 %v3582, %v3693
    %v3695 = vpop.f32.mrb[0].mxu0
    %3696 = vmatprep.mubr.bf16.mxu0 0
    %3697 = vmatmul.mubr.bf16.gmra.mrb[0].mxu0 %v3557
    %v3698 = vpop.f32.mrb[0].mxu0
    %v3699 = vadd.f32 %v3582, %v3698
    %v3700 = vpop.f32.mrb[0].mxu0
    %v3701 = vpop.f32.mrb[0].mxu0
    %v3702 = vadd.f32 %v3582, %v3701
    %v3703 = vpop.f32.mrb[0].mxu0
    %3704 = vmatprep.mubr.bf16.mxu0 0
    %3705 = vmatmul.mubr.bf16.gmra.mrb[0].mxu0 %v3558
    %v3706 = vpop.f32.mrb[0].mxu0
    %v3707 = vadd.f32 %v3582, %v3706
    %v3708 = vpop.f32.mrb[0].mxu0
    %v3709 = vpop.f32.mrb[0].mxu0
    %v3710 = vadd.f32 %v3582, %v3709
    %v3711 = vpop.f32.mrb[0].mxu0
    %3712 = vmatprep.mubr.bf16.mxu0 0
    %3713 = vmatmul.mubr.bf16.gmra.mrb[0].mxu0 %v3559
    %v3714 = vpop.f32.mrb[0].mxu0
    %v3715 = vadd.f32 %v3582, %v3714
    %v3716 = vpop.f32.mrb[0].mxu0
    %v3717 = vpop.f32.mrb[0].mxu0
    %v3718 = vadd.f32 %v3582, %v3717
    %v3719 = vpop.f32.mrb[0].mxu0
    %3720 = vmatprep.mubr.bf16.mxu0 0
    %3721 = vmatmul.mubr.bf16.gmra.mrb[0].mxu0 %v3560
    %v3722 = vpop.f32.mrb[0].mxu0
    %v3723 = vadd.f32 %v3582, %v3722
    %v3724 = vpop.f32.mrb[0].mxu0
    %v3725 = vpop.f32.mrb[0].mxu0
    %v3726 = vadd.f32 %v3582, %v3725
    %v3727 = vpop.f32.mrb[0].mxu0
    %3728 = vdwg.mxu0
    %v3729 = vpack.c.bf16 %v3670, %v3667
    %v3730 = vpack.c.bf16 %v3678, %v3675
    %v3731 = vpack.c.bf16 %v3686, %v3683
    %v3732 = vpack.c.bf16 %v3694, %v3691
    %v3733 = vpack.c.bf16 %v3702, %v3699
    %v3734 = vpack.c.bf16 %v3710, %v3707
    %v3735 = vpack.c.bf16 %v3718, %v3715
    %v3736 = vpack.c.bf16 %v3726, %v3723
    %v3745 = vunpack.c.l.b16 %v3729
    %v3746 = vunpack.c.h.b16 %v3729
    %v3747 = vunpack.c.l.b16 %v3730
    %v3748 = vunpack.c.h.b16 %v3730
    %v3749 = vunpack.c.l.b16 %v3731
    %v3750 = vunpack.c.h.b16 %v3731
    %v3751 = vunpack.c.l.b16 %v3732
    %v3752 = vunpack.c.h.b16 %v3732
    %v3753 = vunpack.c.l.b16 %v3733
    %v3754 = vunpack.c.h.b16 %v3733
    %v3755 = vunpack.c.l.b16 %v3734
    %v3756 = vunpack.c.h.b16 %v3734
    %v3757 = vunpack.c.l.b16 %v3735
    %v3758 = vunpack.c.h.b16 %v3735
    %v3759 = vunpack.c.l.b16 %v3736
    %v3760 = vunpack.c.h.b16 %v3736
    %v3761 = vpack.c.b16 %v3745, %v3745
    %v3762 = vpack.c.b16 %v3746, %v3746
    %v3763 = vpack.c.b16 %v3747, %v3747
    %v3764 = vpack.c.b16 %v3748, %v3748
    %v3765 = vpack.c.b16 %v3749, %v3749
    %v3766 = vpack.c.b16 %v3750, %v3750
    %v3767 = vpack.c.b16 %v3751, %v3751
    %v3768 = vpack.c.b16 %v3752, %v3752
    %v3769 = vpack.c.b16 %v3753, %v3753
    %v3770 = vpack.c.b16 %v3754, %v3754
    %v3771 = vpack.c.b16 %v3755, %v3755
    %v3772 = vpack.c.b16 %v3756, %v3756
    %v3773 = vpack.c.b16 %v3757, %v3757
    %v3774 = vpack.c.b16 %v3758, %v3758
    %v3775 = vpack.c.b16 %v3759, %v3759
    %v3776 = vpack.c.b16 %v3760, %v3760
    %3793 = vst [vmem:[#allocation13] sm:$0xf] %v3761
    %3794 = vst [vmem:[#allocation13 + $0x4] sm:$0xf] %v3762
    %3795 = vst [vmem:[#allocation13 + $0x8] sm:$0xf] %v3763
    %3796 = vst [vmem:[#allocation13 + $0xc] sm:$0xf] %v3764
    %3797 = vst [vmem:[#allocation13 + $0x10] sm:$0xf] %v3765
    %3798 = vst [vmem:[#allocation13 + $0x14] sm:$0xf] %v3766
    %3799 = vst [vmem:[#allocation13 + $0x18] sm:$0xf] %v3767
    %3800 = vst [vmem:[#allocation13 + $0x1c] sm:$0xf] %v3768
    %3801 = vst [vmem:[#allocation13 + $0x20] sm:$0xf] %v3769
    %3802 = vst [vmem:[#allocation13 + $0x24] sm:$0xf] %v3770
    %3803 = vst [vmem:[#allocation13 + $0x28] sm:$0xf] %v3771
    %3804 = vst [vmem:[#allocation13 + $0x2c] sm:$0xf] %v3772
    %3805 = vst [vmem:[#allocation13 + $0x30] sm:$0xf] %v3773
    %3806 = vst [vmem:[#allocation13 + $0x34] sm:$0xf] %v3774
    %3807 = vst [vmem:[#allocation13 + $0x38] sm:$0xf] %v3775
    %3808 = vst [vmem:[#allocation13 + $0x3c] sm:$0xf] %v3776
    // Predicated region
    $region70: #{tpu_custom_call.1} parent=1 // pred_check
      _
    $region71: #{tpu_custom_call.1} parent=1 // pred_check_branch
      %3810 = sbr.rel (0) target = $region73
    $region72: #{tpu_custom_call.1} parent=1 // pred_region
      %s3812 = ssub.s32 1024, 1024
      %3813 = vsyncadd [#allocation4], %s3812
      %s3814 = sshll.u32 [#allocation13], 4
      %s3815 = int_to_ptr.vmem [resolvable:$true] %s3814
      %3820 = dma.vmem_to_hbm [thread:$0]  %s3815, 1024, %s11, [#allocation4], 64, 64, 4
    $region73: #{tpu_custom_call.1} parent=1 // pred_fallthru
      _
    // Predicated region
    $region74: #{tpu_custom_call.1} parent=1 // pred_check
      _
    $region75: #{tpu_custom_call.1} parent=1 // pred_check_branch
      %3822 = sbr.rel (0) target = $region77
    $region76: #{tpu_custom_call.1} parent=1 // pred_region
      %3823 = dma.done [#allocation4], 1024
    $region77: #{tpu_custom_call.1} parent=1 // pred_fallthru
      _
    %3824 = vsyncpa [#allocation3], 1
    %3825 = vsyncpa [#allocation6], 1
    %3826 = vsyncpa [#allocation9], 1
    %3827 = vsyncpa [#allocation12], 1
    %3828 = vsyncpa [#allocation4], 1

</llo_original>
